<compile_context>
chip_gen: v5e
topology: v5e:2x2
jax: 0.10.0
libtpu: 0.0.40
codegen_flags: <defaults>
</compile_context>

<pallas_src>
import functools

import jax
import jax.numpy as jnp
import numpy as np
from jax import lax
from jax.experimental import pallas as pl
from jax.experimental.pallas import tpu as pltpu


def _round_up(x, m):
    return (x + m - 1) // m * m


def _gru_kernel(zb_ref, x_ref, wi_ref, wh_ref, b_ref, bhn_ref, h_out_ref, ip_ref,
                *, chunk, hidden_p, unroll, mask_needed):
    """One grid step = one (batch-block, time-chunk).

    zb_ref : SMEM (Tp,) int32    z-gate saturation bias per timestep
                                 (0 = valid step, ~1e9 = padded step); scalar prefetch.
    x_ref  : VMEM (Tc, Bb, Fp)   raw input chunk (time-major, zero padded).
    wi_ref : VMEM (Fp, 3Hp)      fused input weights  [W_ir | W_iz | W_in].
    wh_ref : VMEM (Hp, 3Hp)      fused hidden weights [W_hr | W_hz | W_hn].
    b_ref  : VMEM (1, 3Hp)       folded biases [b_ir+b_hr | b_iz+b_hz | b_in].
    bhn_ref: VMEM (1, Hp)        b_hn (kept separate: it is gated by r).
    h_out_ref: VMEM (1, Bb, Hp)  resident output block; doubles as the hidden-state
                                 carry across time chunks.
    ip_ref : VMEM scratch (Tc, Bb, 3Hp)  per-chunk input projections.
    """
    c = pl.program_id(1)
    Hp = hidden_p

    @pl.when(c == 0)
    def _():
        h_out_ref[...] = jnp.zeros(h_out_ref.shape, h_out_ref.dtype)

    Tc, Bb, Fp = x_ref.shape

    # ---- fused input projection: one big parallel GEMM per chunk ----
    x2 = x_ref[...].reshape(Tc * Bb, Fp)
    ip = jnp.dot(x2, wi_ref[...], preferred_element_type=jnp.float32)
    ip = ip + b_ref[...]                                   # broadcast (1, 3Hp)
    ip_ref[...] = ip.reshape(Tc, Bb, 3 * Hp)

    wh = wh_ref[...]                                       # (Hp, 3Hp), VMEM-resident
    bhn = bhn_ref[...]                                      # (1, Hp)
    h0 = h_out_ref[0].astype(jnp.float32)                  # carry from previous chunk

    def step(s, h):
        ipt = ip_ref[s]                                             # (Bb, 3Hp)
        hg = jnp.dot(h, wh, preferred_element_type=jnp.float32)     # (Bb, 3Hp)
        z_pre = ipt[:, Hp:2 * Hp] + hg[:, Hp:2 * Hp]
        if mask_needed:
            # Padded timestep -> huge positive bias -> sigmoid == 1.0 -> h unchanged.
            z_pre = z_pre + zb_ref[c * chunk + s].astype(jnp.float32)
        r = jax.nn.sigmoid(ipt[:, 0:Hp] + hg[:, 0:Hp])
        z = jax.nn.sigmoid(z_pre)
        n = jnp.tanh(ipt[:, 2 * Hp:3 * Hp] + r * (hg[:, 2 * Hp:3 * Hp] + bhn))
        return (1.0 - z) * n + z * h

    h = lax.fori_loop(0, chunk, step, h0, unroll=unroll)
    h_out_ref[0] = h.astype(h_out_ref.dtype)


def gru_encoder_forward(x, params, *, time_chunk=32, batch_block=None,
                        single_buffer_weights=True):
    """x: (B, T, F) float32.  Returns the final hidden state, shape (1, B, H)."""
    B, T, F = x.shape
    H = params["w_hr"].shape[0]
    f32 = jnp.float32

    Bp = _round_up(B, 8)          # sublane padding
    Hp = _round_up(H, 128)        # lane padding (128 granularity also optimal on v5e)
    Fp = _round_up(F, 8)          # sublane-align the input-GEMM contraction dim
    Tc = min(time_chunk, T)       # timesteps per grid step
    Tp = _round_up(T, Tc)
    n_chunks = Tp // Tc
    mask_needed = Tp != T

    if batch_block is None:
        Bb = Bp                   # one batch block (v5e/v6e single TensorCore)
    else:
        Bb = min(_round_up(batch_block, 8), Bp)
        if Bp % Bb != 0:
            Bb = Bp
    n_b = Bp // Bb

    # ---- weights / biases: pad to lane-dense shapes, fuse the three gates ----
    def pad_wi(w):   # (H, F) -> (Fp, Hp), x @ W orientation
        return jnp.zeros((Fp, Hp), f32).at[:F, :H].set(w.T.astype(f32))

    def pad_wh(w):   # (H, H) -> (Hp, Hp)
        return jnp.zeros((Hp, Hp), f32).at[:H, :H].set(w.T.astype(f32))

    def pad_b(b):    # (H,) -> (Hp,)
        return jnp.zeros((Hp,), f32).at[:H].set(b.astype(f32))

    wi_cat = jnp.concatenate([pad_wi(params["w_ir"]), pad_wi(params["w_iz"]),
                              pad_wi(params["w_in"])], axis=1)        # (Fp, 3Hp)
    wh_cat = jnp.concatenate([pad_wh(params["w_hr"]), pad_wh(params["w_hz"]),
                              pad_wh(params["w_hn"])], axis=1)        # (Hp, 3Hp)
    b_cat = jnp.concatenate([pad_b(params["b_ir"] + params["b_hr"]),
                             pad_b(params["b_iz"] + params["b_hz"]),
                             pad_b(params["b_in"])]).reshape(1, 3 * Hp)
    b_hn = pad_b(params["b_hn"]).reshape(1, Hp)

    # ---- pad x once (tiny), time-major; NO 3Hp-wide intermediate in HBM ----
    xT = jnp.zeros((Tp, Bp, Fp), f32).at[:T, :B, :F].set(
        jnp.transpose(x.astype(f32), (1, 0, 2)))

    # z-gate saturation bias for padded tail timesteps (scalar-prefetched to SMEM).
    zb = jnp.where(jnp.arange(Tp, dtype=jnp.int32) < T,
                   jnp.int32(0), jnp.int32(1_000_000_000))

    # Cap the unroll so per-step live values (x_t, hg, h) fit in the 64x4KiB vreg file.
    step_live_f32 = Bb * 7 * Hp
    unroll = int(max(1, min(Tc, (64 * 1024) // max(step_live_f32, 1))))

    kernel = functools.partial(_gru_kernel, chunk=Tc, hidden_p=Hp,
                               unroll=unroll, mask_needed=mask_needed)

    # VMEM budget: x chunk (double-buffered) + weights + ip scratch + output block.
    est_vmem = (2 * Tc * Bb * Fp + 2 * (Fp * 3 * Hp + Hp * 3 * Hp + 4 * Hp)
                + Tc * Bb * 3 * Hp + 2 * Bb * Hp) * 4
    vmem_limit = int(min(100 * 1024 * 1024, max(32 * 1024 * 1024, 2 * est_vmem)))

    cost = pl.CostEstimate(
        flops=int(2 * Tp * Bp * 3 * Hp * (Fp + Hp) + 10 * Tp * Bp * Hp),
        transcendentals=int(3 * Tp * Bp * Hp),
        bytes_accessed=int(4 * (Tp * Bp * Fp + Fp * 3 * Hp + Hp * 3 * Hp
                                + 4 * Hp + Bp * Hp)),
    )

    def build(single_buf):
        def const_spec(shape):
            kwargs = {}
            if single_buf:
                # Loop-invariant operand: no need to double-buffer it.
                kwargs["pipeline_mode"] = pl.Buffered(1)
            return pl.BlockSpec(shape, lambda b, c, zs: (0,) * len(shape), **kwargs)

        grid_spec = pltpu.PrefetchScalarGridSpec(
            num_scalar_prefetch=1,
            grid=(n_b, n_chunks),
            in_specs=[
                pl.BlockSpec((Tc, Bb, Fp), lambda b, c, zs: (c, b, 0)),   # x chunk
                const_spec((Fp, 3 * Hp)),                                 # W_i (fused)
                const_spec((Hp, 3 * Hp)),                                 # W_h (fused)
                const_spec((1, 3 * Hp)),                                  # folded biases
                const_spec((1, Hp)),                                      # b_hn
            ],
            out_specs=pl.BlockSpec((1, Bb, Hp), lambda b, c, zs: (0, b, 0)),
            scratch_shapes=[pltpu.VMEM((Tc, Bb, 3 * Hp), jnp.float32)],
        )
        return pl.pallas_call(
            kernel,
            out_shape=jax.ShapeDtypeStruct((1, Bp, Hp), jnp.float32),
            grid_spec=grid_spec,
            compiler_params=pltpu.CompilerParams(
                dimension_semantics=("parallel", "arbitrary"),  # batch ||, time serial
                vmem_limit_bytes=vmem_limit),
            cost_estimate=cost,
        )

    args = (zb, xT, wi_cat, wh_cat, b_cat, b_hn)
    try:
        hidden_p = jax.block_until_ready(build(single_buffer_weights)(*args))
    except Exception:
        # Fallback if pipeline_mode=pl.Buffered(1) is unsupported by this JAX build.
        hidden_p = jax.block_until_ready(build(False)(*args))

    return hidden_p[:, :B, :H].astype(x.dtype)


def init_params(key, features, hidden):
    """Deterministic synthetic GRU parameters (PyTorch gate order r, z, n)."""
    scale = 1.0 / np.sqrt(hidden)
    names = ["w_ir", "w_iz", "w_in", "w_hr", "w_hz", "w_hn",
             "b_ir", "b_iz", "b_in", "b_hr", "b_hz", "b_hn"]
    shapes = [(hidden, features)] * 3 + [(hidden, hidden)] * 3 + [(hidden,)] * 6
    keys = jax.random.split(key, len(names))
    return {n: jax.random.uniform(k, s, jnp.float32, -scale, scale)
            for n, k, s in zip(names, keys, shapes)}


def gru_reference(x, params):
    """Pure-JAX reference (lax.scan) matching torch.nn.GRU semantics."""
    B, T, F = x.shape
    H = params["w_hr"].shape[0]
    h0 = jnp.zeros((B, H), jnp.float32)

    def step(h, x_t):
        i_r = x_t @ params["w_ir"].T + params["b_ir"]
        i_z = x_t @ params["w_iz"].T + params["b_iz"]
        i_n = x_t @ params["w_in"].T + params["b_in"]
        h_r = h @ params["w_hr"].T + params["b_hr"]
        h_z = h @ params["w_hz"].T + params["b_hz"]
        h_n = h @ params["w_hn"].T + params["b_hn"]
        r = jax.nn.sigmoid(i_r + h_r)
        z = jax.nn.sigmoid(i_z + h_z)
        n = jnp.tanh(i_n + r * h_n)
        return (1.0 - z) * n + z * h, None

    h_final, _ = jax.lax.scan(step, h0, jnp.transpose(x, (1, 0, 2)))
    return h_final[None]  # (1, B, H)


if __name__ == "__main__":
    key = jax.random.PRNGKey(0)
    k_x, k_p, k_x2 = jax.random.split(key, 3)

    # Shapes implied by the module: batch=2, seq=8, features=4, hidden=32.
    B, T, F, H = 2, 8, 4, 32
    x = jax.random.normal(k_x, (B, T, F), jnp.float32)
    params = init_params(k_p, F, H)

    hidden = jax.block_until_ready(gru_encoder_forward(x, params))
    ref = jax.block_until_ready(gru_reference(x, params))
    assert hidden.shape == (1, B, H), hidden.shape
    np.testing.assert_allclose(np.asarray(hidden), np.asarray(ref),
                               rtol=1e-5, atol=1e-5)

    # Second check: ragged T (exercises multi-chunk carry + padded-step neutralization).
    T2 = 5
    x2 = jax.random.normal(k_x2, (B, T2, F), jnp.float32)
    hidden2 = jax.block_until_ready(gru_encoder_forward(x2, params, time_chunk=4))
    ref2 = jax.block_until_ready(gru_reference(x2, params))
    np.testing.assert_allclose(np.asarray(hidden2), np.asarray(ref2),
                               rtol=1e-5, atol=1e-5)

    print("KERNEL_OK")
</pallas_src>

<mosaic_0001>
module attributes {stable_mosaic.version = 11 : i64} {
  func.func @_gru_kernel(%arg0: i32, %arg1: i32, %arg2: memref<8xi32, #tpu.memory_space<smem>>, %arg3: memref<8x8x8xf32, #tpu.memory_space<vmem>>, %arg4: memref<8x384xf32, #tpu.memory_space<vmem>>, %arg5: memref<128x384xf32, #tpu.memory_space<vmem>>, %arg6: memref<1x384xf32, #tpu.memory_space<vmem>>, %arg7: memref<1x128xf32, #tpu.memory_space<vmem>>, %arg8: memref<1x8x128xf32, #tpu.memory_space<vmem>>, %arg9: memref<8x8x384xf32, #tpu.memory_space<vmem>>) attributes {dimension_semantics = [#tpu.dimension_semantics<parallel>, #tpu.dimension_semantics<arbitrary>], iteration_bounds = array<i64: 1, 1>, scalar_prefetch = 1 : i64, scratch_operands = 1 : i64, tpu.core_type = #tpu.core_type<tc>, window_params = [{transform_indices = @transform_0, window_bounds = array<i64: 8, 8, 8>}, {pipeline_mode = #tpu.pipeline_mode<synchronous>, transform_indices = @transform_1, window_bounds = array<i64: 8, 384>}, {pipeline_mode = #tpu.pipeline_mode<synchronous>, transform_indices = @transform_2, window_bounds = array<i64: 128, 384>}, {pipeline_mode = #tpu.pipeline_mode<synchronous>, transform_indices = @transform_3, window_bounds = array<i64: 1, 384>}, {pipeline_mode = #tpu.pipeline_mode<synchronous>, transform_indices = @transform_4, window_bounds = array<i64: 1, 128>}, {transform_indices = @transform_5, window_bounds = array<i64: 1, 8, 128>}]} {
    %c0_i32 = arith.constant 0 : i32
    %0 = arith.cmpi eq, %arg1, %c0_i32 : i32
    %1 = arith.extui %0 : i1 to i32
    %c0_i32_0 = arith.constant 0 : i32
    %2 = arith.cmpi ne, %1, %c0_i32_0 : i32
    scf.if %2 {
      %cst_69 = arith.constant 0.000000e+00 : f32
      %275 = vector.broadcast %cst_69 : f32 to vector<1x8x128xf32>
      %c0_70 = arith.constant 0 : index
      %c0_71 = arith.constant 0 : index
      %c0_72 = arith.constant 0 : index
      %276 = vector.load %arg8[%c0_70, %c0_71, %c0_72] : memref<1x8x128xf32, #tpu.memory_space<vmem>>, vector<1x8x128xf32>
      tpu.vector_store %arg8[%c0_70, %c0_71, %c0_72], %275 {strides = array<i32>} : memref<1x8x128xf32, #tpu.memory_space<vmem>>, vector<1x8x128xf32>,
    } else {
    }
    %c0 = arith.constant 0 : index
    %c0_1 = arith.constant 0 : index
    %c0_2 = arith.constant 0 : index
    %3 = vector.load %arg3[%c0, %c0_1, %c0_2] : memref<8x8x8xf32, #tpu.memory_space<vmem>>, vector<8x8x8xf32>
    %4 = vector.shape_cast %3 : vector<8x8x8xf32> to vector<64x8xf32>
    %c0_3 = arith.constant 0 : index
    %c0_4 = arith.constant 0 : index
    %5 = vector.load %arg4[%c0_3, %c0_4] : memref<8x384xf32, #tpu.memory_space<vmem>>, vector<8x384xf32>
    %cst = arith.constant dense<0.000000e+00> : vector<64x384xf32>
    %6 = tpu.matmul %4, %5, %cst {dimension_numbers = #tpu.dot_dimension_numbers<[1], [0], [0], [1], [0, 0, 1, 1], [], []>} : vector<64x8xf32>, vector<8x384xf32>, vector<64x384xf32> -> vector<64x384xf32>
    %c0_5 = arith.constant 0 : index
    %c0_6 = arith.constant 0 : index
    %7 = vector.load %arg6[%c0_5, %c0_6] : memref<1x384xf32, #tpu.memory_space<vmem>>, vector<1x384xf32>
    %8 = vector.broadcast %7 : vector<1x384xf32> to vector<64x384xf32>
    %9 = arith.addf %6, %8 : vector<64x384xf32>
    %10 = vector.shape_cast %9 : vector<64x384xf32> to vector<8x8x384xf32>
    %c0_7 = arith.constant 0 : index
    %c0_8 = arith.constant 0 : index
    %c0_9 = arith.constant 0 : index
    %11 = vector.load %arg9[%c0_7, %c0_8, %c0_9] : memref<8x8x384xf32, #tpu.memory_space<vmem>>, vector<8x8x384xf32>
    tpu.vector_store %arg9[%c0_7, %c0_8, %c0_9], %10 {strides = array<i32>} : memref<8x8x384xf32, #tpu.memory_space<vmem>>, vector<8x8x384xf32>,
    %c0_10 = arith.constant 0 : index
    %c0_11 = arith.constant 0 : index
    %12 = vector.load %arg5[%c0_10, %c0_11] : memref<128x384xf32, #tpu.memory_space<vmem>>, vector<128x384xf32>
    %c0_12 = arith.constant 0 : index
    %c0_13 = arith.constant 0 : index
    %13 = vector.load %arg7[%c0_12, %c0_13] : memref<1x128xf32, #tpu.memory_space<vmem>>, vector<1x128xf32>
    %c0_14 = arith.constant 0 : index
    %c0_15 = arith.constant 0 : index
    %c0_16 = arith.constant 0 : index
    %14 = vector.load %arg8[%c0_14, %c0_15, %c0_16] : memref<1x8x128xf32, #tpu.memory_space<vmem>>, vector<1x8x128xf32>
    %15 = vector.shape_cast %14 : vector<1x8x128xf32> to vector<8x128xf32>
    %c0_i32_17 = arith.constant 0 : i32
    %16 = arith.index_cast %c0_i32_17 : i32 to index
    %c0_18 = arith.constant 0 : index
    %c0_19 = arith.constant 0 : index
    %17 = vector.load %arg9[%16, %c0_18, %c0_19] : memref<8x8x384xf32, #tpu.memory_space<vmem>>, vector<1x8x384xf32>
    %18 = vector.shape_cast %17 : vector<1x8x384xf32> to vector<8x384xf32>
    %cst_20 = arith.constant dense<0.000000e+00> : vector<8x384xf32>
    %19 = tpu.matmul %15, %12, %cst_20 {dimension_numbers = #tpu.dot_dimension_numbers<[1], [0], [0], [1], [0, 0, 1, 1], [], []>} : vector<8x128xf32>, vector<128x384xf32>, vector<8x384xf32> -> vector<8x384xf32>
    %20 = vector.extract_strided_slice %18 {offsets = [0, 128], sizes = [8, 128], strides = [1, 1]} : vector<8x384xf32> to vector<8x128xf32>
    %21 = vector.extract_strided_slice %19 {offsets = [0, 128], sizes = [8, 128], strides = [1, 1]} : vector<8x384xf32> to vector<8x128xf32>
    %22 = arith.addf %20, %21 : vector<8x128xf32>
    %23 = vector.extract_strided_slice %18 {offsets = [0, 0], sizes = [8, 128], strides = [1, 1]} : vector<8x384xf32> to vector<8x128xf32>
    %24 = vector.extract_strided_slice %19 {offsets = [0, 0], sizes = [8, 128], strides = [1, 1]} : vector<8x384xf32> to vector<8x128xf32>
    %25 = arith.addf %23, %24 : vector<8x128xf32>
    %26 = arith.negf %25 : vector<8x128xf32>
    %27 = math.exp %26 : vector<8x128xf32>
    %cst_21 = arith.constant 1.000000e+00 : f32
    %28 = vector.broadcast %cst_21 : f32 to vector<8x128xf32>
    %29 = arith.addf %28, %27 : vector<8x128xf32>
    %30 = arith.divf %28, %29 : vector<8x128xf32>
    %31 = arith.negf %22 : vector<8x128xf32>
    %32 = math.exp %31 : vector<8x128xf32>
    %cst_22 = arith.constant 1.000000e+00 : f32
    %33 = vector.broadcast %cst_22 : f32 to vector<8x128xf32>
    %34 = arith.addf %33, %32 : vector<8x128xf32>
    %35 = arith.divf %33, %34 : vector<8x128xf32>
    %36 = vector.extract_strided_slice %18 {offsets = [0, 256], sizes = [8, 128], strides = [1, 1]} : vector<8x384xf32> to vector<8x128xf32>
    %37 = vector.extract_strided_slice %19 {offsets = [0, 256], sizes = [8, 128], strides = [1, 1]} : vector<8x384xf32> to vector<8x128xf32>
    %38 = vector.broadcast %13 : vector<1x128xf32> to vector<8x128xf32>
    %39 = arith.addf %37, %38 : vector<8x128xf32>
    %40 = arith.mulf %30, %39 : vector<8x128xf32>
    %41 = arith.addf %36, %40 : vector<8x128xf32>
    %42 = math.tanh %41 : vector<8x128xf32>
    %cst_23 = arith.constant 1.000000e+00 : f32
    %43 = vector.broadcast %cst_23 : f32 to vector<8x128xf32>
    %44 = arith.subf %43, %35 : vector<8x128xf32>
    %45 = arith.mulf %44, %42 : vector<8x128xf32>
    %46 = arith.mulf %35, %15 : vector<8x128xf32>
    %47 = arith.addf %45, %46 : vector<8x128xf32>
    %c1_i32 = arith.constant 1 : i32
    %48 = arith.index_cast %c1_i32 : i32 to index
    %c0_24 = arith.constant 0 : index
    %c0_25 = arith.constant 0 : index
    %49 = vector.load %arg9[%48, %c0_24, %c0_25] : memref<8x8x384xf32, #tpu.memory_space<vmem>>, vector<1x8x384xf32>
    %50 = vector.shape_cast %49 : vector<1x8x384xf32> to vector<8x384xf32>
    %cst_26 = arith.constant dense<0.000000e+00> : vector<8x384xf32>
    %51 = tpu.matmul %47, %12, %cst_26 {dimension_numbers = #tpu.dot_dimension_numbers<[1], [0], [0], [1], [0, 0, 1, 1], [], []>} : vector<8x128xf32>, vector<128x384xf32>, vector<8x384xf32> -> vector<8x384xf32>
    %52 = vector.extract_strided_slice %50 {offsets = [0, 128], sizes = [8, 128], strides = [1, 1]} : vector<8x384xf32> to vector<8x128xf32>
    %53 = vector.extract_strided_slice %51 {offsets = [0, 128], sizes = [8, 128], strides = [1, 1]} : vector<8x384xf32> to vector<8x128xf32>
    %54 = arith.addf %52, %53 : vector<8x128xf32>
    %55 = vector.extract_strided_slice %50 {offsets = [0, 0], sizes = [8, 128], strides = [1, 1]} : vector<8x384xf32> to vector<8x128xf32>
    %56 = vector.extract_strided_slice %51 {offsets = [0, 0], sizes = [8, 128], strides = [1, 1]} : vector<8x384xf32> to vector<8x128xf32>
    %57 = arith.addf %55, %56 : vector<8x128xf32>
    %58 = arith.negf %57 : vector<8x128xf32>
    %59 = math.exp %58 : vector<8x128xf32>
    %cst_27 = arith.constant 1.000000e+00 : f32
    %60 = vector.broadcast %cst_27 : f32 to vector<8x128xf32>
    %61 = arith.addf %60, %59 : vector<8x128xf32>
    %62 = arith.divf %60, %61 : vector<8x128xf32>
    %63 = arith.negf %54 : vector<8x128xf32>
    %64 = math.exp %63 : vector<8x128xf32>
    %cst_28 = arith.constant 1.000000e+00 : f32
    %65 = vector.broadcast %cst_28 : f32 to vector<8x128xf32>
    %66 = arith.addf %65, %64 : vector<8x128xf32>
    %67 = arith.divf %65, %66 : vector<8x128xf32>
    %68 = vector.extract_strided_slice %50 {offsets = [0, 256], sizes = [8, 128], strides = [1, 1]} : vector<8x384xf32> to vector<8x128xf32>
    %69 = vector.extract_strided_slice %51 {offsets = [0, 256], sizes = [8, 128], strides = [1, 1]} : vector<8x384xf32> to vector<8x128xf32>
    %70 = vector.broadcast %13 : vector<1x128xf32> to vector<8x128xf32>
    %71 = arith.addf %69, %70 : vector<8x128xf32>
    %72 = arith.mulf %62, %71 : vector<8x128xf32>
    %73 = arith.addf %68, %72 : vector<8x128xf32>
    %74 = math.tanh %73 : vector<8x128xf32>
    %cst_29 = arith.constant 1.000000e+00 : f32
    %75 = vector.broadcast %cst_29 : f32 to vector<8x128xf32>
    %76 = arith.subf %75, %67 : vector<8x128xf32>
    %77 = arith.mulf %76, %74 : vector<8x128xf32>
    %78 = arith.mulf %67, %47 : vector<8x128xf32>
    %79 = arith.addf %77, %78 : vector<8x128xf32>
    %c2_i32 = arith.constant 2 : i32
    %80 = arith.index_cast %c2_i32 : i32 to index
    %c0_30 = arith.constant 0 : index
    %c0_31 = arith.constant 0 : index
    %81 = vector.load %arg9[%80, %c0_30, %c0_31] : memref<8x8x384xf32, #tpu.memory_space<vmem>>, vector<1x8x384xf32>
    %82 = vector.shape_cast %81 : vector<1x8x384xf32> to vector<8x384xf32>
    %cst_32 = arith.constant dense<0.000000e+00> : vector<8x384xf32>
    %83 = tpu.matmul %79, %12, %cst_32 {dimension_numbers = #tpu.dot_dimension_numbers<[1], [0], [0], [1], [0, 0, 1, 1], [], []>} : vector<8x128xf32>, vector<128x384xf32>, vector<8x384xf32> -> vector<8x384xf32>
    %84 = vector.extract_strided_slice %82 {offsets = [0, 128], sizes = [8, 128], strides = [1, 1]} : vector<8x384xf32> to vector<8x128xf32>
    %85 = vector.extract_strided_slice %83 {offsets = [0, 128], sizes = [8, 128], strides = [1, 1]} : vector<8x384xf32> to vector<8x128xf32>
    %86 = arith.addf %84, %85 : vector<8x128xf32>
    %87 = vector.extract_strided_slice %82 {offsets = [0, 0], sizes = [8, 128], strides = [1, 1]} : vector<8x384xf32> to vector<8x128xf32>
    %88 = vector.extract_strided_slice %83 {offsets = [0, 0], sizes = [8, 128], strides = [1, 1]} : vector<8x384xf32> to vector<8x128xf32>
    %89 = arith.addf %87, %88 : vector<8x128xf32>
    %90 = arith.negf %89 : vector<8x128xf32>
    %91 = math.exp %90 : vector<8x128xf32>
    %cst_33 = arith.constant 1.000000e+00 : f32
    %92 = vector.broadcast %cst_33 : f32 to vector<8x128xf32>
    %93 = arith.addf %92, %91 : vector<8x128xf32>
    %94 = arith.divf %92, %93 : vector<8x128xf32>
    %95 = arith.negf %86 : vector<8x128xf32>
    %96 = math.exp %95 : vector<8x128xf32>
    %cst_34 = arith.constant 1.000000e+00 : f32
    %97 = vector.broadcast %cst_34 : f32 to vector<8x128xf32>
    %98 = arith.addf %97, %96 : vector<8x128xf32>
    %99 = arith.divf %97, %98 : vector<8x128xf32>
    %100 = vector.extract_strided_slice %82 {offsets = [0, 256], sizes = [8, 128], strides = [1, 1]} : vector<8x384xf32> to vector<8x128xf32>
    %101 = vector.extract_strided_slice %83 {offsets = [0, 256], sizes = [8, 128], strides = [1, 1]} : vector<8x384xf32> to vector<8x128xf32>
    %102 = vector.broadcast %13 : vector<1x128xf32> to vector<8x128xf32>
    %103 = arith.addf %101, %102 : vector<8x128xf32>
    %104 = arith.mulf %94, %103 : vector<8x128xf32>
    %105 = arith.addf %100, %104 : vector<8x128xf32>
    %106 = math.tanh %105 : vector<8x128xf32>
    %cst_35 = arith.constant 1.000000e+00 : f32
    %107 = vector.broadcast %cst_35 : f32 to vector<8x128xf32>
    %108 = arith.subf %107, %99 : vector<8x128xf32>
    %109 = arith.mulf %108, %106 : vector<8x128xf32>
    %110 = arith.mulf %99, %79 : vector<8x128xf32>
    %111 = arith.addf %109, %110 : vector<8x128xf32>
    %c3_i32 = arith.constant 3 : i32
    %112 = arith.index_cast %c3_i32 : i32 to index
    %c0_36 = arith.constant 0 : index
    %c0_37 = arith.constant 0 : index
    %113 = vector.load %arg9[%112, %c0_36, %c0_37] : memref<8x8x384xf32, #tpu.memory_space<vmem>>, vector<1x8x384xf32>
    %114 = vector.shape_cast %113 : vector<1x8x384xf32> to vector<8x384xf32>
    %cst_38 = arith.constant dense<0.000000e+00> : vector<8x384xf32>
    %115 = tpu.matmul %111, %12, %cst_38 {dimension_numbers = #tpu.dot_dimension_numbers<[1], [0], [0], [1], [0, 0, 1, 1], [], []>} : vector<8x128xf32>, vector<128x384xf32>, vector<8x384xf32> -> vector<8x384xf32>
    %116 = vector.extract_strided_slice %114 {offsets = [0, 128], sizes = [8, 128], strides = [1, 1]} : vector<8x384xf32> to vector<8x128xf32>
    %117 = vector.extract_strided_slice %115 {offsets = [0, 128], sizes = [8, 128], strides = [1, 1]} : vector<8x384xf32> to vector<8x128xf32>
    %118 = arith.addf %116, %117 : vector<8x128xf32>
    %119 = vector.extract_strided_slice %114 {offsets = [0, 0], sizes = [8, 128], strides = [1, 1]} : vector<8x384xf32> to vector<8x128xf32>
    %120 = vector.extract_strided_slice %115 {offsets = [0, 0], sizes = [8, 128], strides = [1, 1]} : vector<8x384xf32> to vector<8x128xf32>
    %121 = arith.addf %119, %120 : vector<8x128xf32>
    %122 = arith.negf %121 : vector<8x128xf32>
    %123 = math.exp %122 : vector<8x128xf32>
    %cst_39 = arith.constant 1.000000e+00 : f32
    %124 = vector.broadcast %cst_39 : f32 to vector<8x128xf32>
    %125 = arith.addf %124, %123 : vector<8x128xf32>
    %126 = arith.divf %124, %125 : vector<8x128xf32>
    %127 = arith.negf %118 : vector<8x128xf32>
    %128 = math.exp %127 : vector<8x128xf32>
    %cst_40 = arith.constant 1.000000e+00 : f32
    %129 = vector.broadcast %cst_40 : f32 to vector<8x128xf32>
    %130 = arith.addf %129, %128 : vector<8x128xf32>
    %131 = arith.divf %129, %130 : vector<8x128xf32>
    %132 = vector.extract_strided_slice %114 {offsets = [0, 256], sizes = [8, 128], strides = [1, 1]} : vector<8x384xf32> to vector<8x128xf32>
    %133 = vector.extract_strided_slice %115 {offsets = [0, 256], sizes = [8, 128], strides = [1, 1]} : vector<8x384xf32> to vector<8x128xf32>
    %134 = vector.broadcast %13 : vector<1x128xf32> to vector<8x128xf32>
    %135 = arith.addf %133, %134 : vector<8x128xf32>
    %136 = arith.mulf %126, %135 : vector<8x128xf32>
    %137 = arith.addf %132, %136 : vector<8x128xf32>
    %138 = math.tanh %137 : vector<8x128xf32>
    %cst_41 = arith.constant 1.000000e+00 : f32
    %139 = vector.broadcast %cst_41 : f32 to vector<8x128xf32>
    %140 = arith.subf %139, %131 : vector<8x128xf32>
    %141 = arith.mulf %140, %138 : vector<8x128xf32>
    %142 = arith.mulf %131, %111 : vector<8x128xf32>
    %143 = arith.addf %141, %142 : vector<8x128xf32>
    %c4_i32 = arith.constant 4 : i32
    %144 = arith.index_cast %c4_i32 : i32 to index
    %c0_42 = arith.constant 0 : index
    %c0_43 = arith.constant 0 : index
    %145 = vector.load %arg9[%144, %c0_42, %c0_43] : memref<8x8x384xf32, #tpu.memory_space<vmem>>, vector<1x8x384xf32>
    %146 = vector.shape_cast %145 : vector<1x8x384xf32> to vector<8x384xf32>
    %cst_44 = arith.constant dense<0.000000e+00> : vector<8x384xf32>
    %147 = tpu.matmul %143, %12, %cst_44 {dimension_numbers = #tpu.dot_dimension_numbers<[1], [0], [0], [1], [0, 0, 1, 1], [], []>} : vector<8x128xf32>, vector<128x384xf32>, vector<8x384xf32> -> vector<8x384xf32>
    %148 = vector.extract_strided_slice %146 {offsets = [0, 128], sizes = [8, 128], strides = [1, 1]} : vector<8x384xf32> to vector<8x128xf32>
    %149 = vector.extract_strided_slice %147 {offsets = [0, 128], sizes = [8, 128], strides = [1, 1]} : vector<8x384xf32> to vector<8x128xf32>
    %150 = arith.addf %148, %149 : vector<8x128xf32>
    %151 = vector.extract_strided_slice %146 {offsets = [0, 0], sizes = [8, 128], strides = [1, 1]} : vector<8x384xf32> to vector<8x128xf32>
    %152 = vector.extract_strided_slice %147 {offsets = [0, 0], sizes = [8, 128], strides = [1, 1]} : vector<8x384xf32> to vector<8x128xf32>
    %153 = arith.addf %151, %152 : vector<8x128xf32>
    %154 = arith.negf %153 : vector<8x128xf32>
    %155 = math.exp %154 : vector<8x128xf32>
    %cst_45 = arith.constant 1.000000e+00 : f32
    %156 = vector.broadcast %cst_45 : f32 to vector<8x128xf32>
    %157 = arith.addf %156, %155 : vector<8x128xf32>
    %158 = arith.divf %156, %157 : vector<8x128xf32>
    %159 = arith.negf %150 : vector<8x128xf32>
    %160 = math.exp %159 : vector<8x128xf32>
    %cst_46 = arith.constant 1.000000e+00 : f32
    %161 = vector.broadcast %cst_46 : f32 to vector<8x128xf32>
    %162 = arith.addf %161, %160 : vector<8x128xf32>
    %163 = arith.divf %161, %162 : vector<8x128xf32>
    %164 = vector.extract_strided_slice %146 {offsets = [0, 256], sizes = [8, 128], strides = [1, 1]} : vector<8x384xf32> to vector<8x128xf32>
    %165 = vector.extract_strided_slice %147 {offsets = [0, 256], sizes = [8, 128], strides = [1, 1]} : vector<8x384xf32> to vector<8x128xf32>
    %166 = vector.broadcast %13 : vector<1x128xf32> to vector<8x128xf32>
    %167 = arith.addf %165, %166 : vector<8x128xf32>
    %168 = arith.mulf %158, %167 : vector<8x128xf32>
    %169 = arith.addf %164, %168 : vector<8x128xf32>
    %170 = math.tanh %169 : vector<8x128xf32>
    %cst_47 = arith.constant 1.000000e+00 : f32
    %171 = vector.broadcast %cst_47 : f32 to vector<8x128xf32>
    %172 = arith.subf %171, %163 : vector<8x128xf32>
    %173 = arith.mulf %172, %170 : vector<8x128xf32>
    %174 = arith.mulf %163, %143 : vector<8x128xf32>
    %175 = arith.addf %173, %174 : vector<8x128xf32>
    %c5_i32 = arith.constant 5 : i32
    %176 = arith.index_cast %c5_i32 : i32 to index
    %c0_48 = arith.constant 0 : index
    %c0_49 = arith.constant 0 : index
    %177 = vector.load %arg9[%176, %c0_48, %c0_49] : memref<8x8x384xf32, #tpu.memory_space<vmem>>, vector<1x8x384xf32>
    %178 = vector.shape_cast %177 : vector<1x8x384xf32> to vector<8x384xf32>
    %cst_50 = arith.constant dense<0.000000e+00> : vector<8x384xf32>
    %179 = tpu.matmul %175, %12, %cst_50 {dimension_numbers = #tpu.dot_dimension_numbers<[1], [0], [0], [1], [0, 0, 1, 1], [], []>} : vector<8x128xf32>, vector<128x384xf32>, vector<8x384xf32> -> vector<8x384xf32>
    %180 = vector.extract_strided_slice %178 {offsets = [0, 128], sizes = [8, 128], strides = [1, 1]} : vector<8x384xf32> to vector<8x128xf32>
    %181 = vector.extract_strided_slice %179 {offsets = [0, 128], sizes = [8, 128], strides = [1, 1]} : vector<8x384xf32> to vector<8x128xf32>
    %182 = arith.addf %180, %181 : vector<8x128xf32>
    %183 = vector.extract_strided_slice %178 {offsets = [0, 0], sizes = [8, 128], strides = [1, 1]} : vector<8x384xf32> to vector<8x128xf32>
    %184 = vector.extract_strided_slice %179 {offsets = [0, 0], sizes = [8, 128], strides = [1, 1]} : vector<8x384xf32> to vector<8x128xf32>
    %185 = arith.addf %183, %184 : vector<8x128xf32>
    %186 = arith.negf %185 : vector<8x128xf32>
    %187 = math.exp %186 : vector<8x128xf32>
    %cst_51 = arith.constant 1.000000e+00 : f32
    %188 = vector.broadcast %cst_51 : f32 to vector<8x128xf32>
    %189 = arith.addf %188, %187 : vector<8x128xf32>
    %190 = arith.divf %188, %189 : vector<8x128xf32>
    %191 = arith.negf %182 : vector<8x128xf32>
    %192 = math.exp %191 : vector<8x128xf32>
    %cst_52 = arith.constant 1.000000e+00 : f32
    %193 = vector.broadcast %cst_52 : f32 to vector<8x128xf32>
    %194 = arith.addf %193, %192 : vector<8x128xf32>
    %195 = arith.divf %193, %194 : vector<8x128xf32>
    %196 = vector.extract_strided_slice %178 {offsets = [0, 256], sizes = [8, 128], strides = [1, 1]} : vector<8x384xf32> to vector<8x128xf32>
    %197 = vector.extract_strided_slice %179 {offsets = [0, 256], sizes = [8, 128], strides = [1, 1]} : vector<8x384xf32> to vector<8x128xf32>
    %198 = vector.broadcast %13 : vector<1x128xf32> to vector<8x128xf32>
    %199 = arith.addf %197, %198 : vector<8x128xf32>
    %200 = arith.mulf %190, %199 : vector<8x128xf32>
    %201 = arith.addf %196, %200 : vector<8x128xf32>
    %202 = math.tanh %201 : vector<8x128xf32>
    %cst_53 = arith.constant 1.000000e+00 : f32
    %203 = vector.broadcast %cst_53 : f32 to vector<8x128xf32>
    %204 = arith.subf %203, %195 : vector<8x128xf32>
    %205 = arith.mulf %204, %202 : vector<8x128xf32>
    %206 = arith.mulf %195, %175 : vector<8x128xf32>
    %207 = arith.addf %205, %206 : vector<8x128xf32>
    %c6_i32 = arith.constant 6 : i32
    %208 = arith.index_cast %c6_i32 : i32 to index
    %c0_54 = arith.constant 0 : index
    %c0_55 = arith.constant 0 : index
    %209 = vector.load %arg9[%208, %c0_54, %c0_55] : memref<8x8x384xf32, #tpu.memory_space<vmem>>, vector<1x8x384xf32>
    %210 = vector.shape_cast %209 : vector<1x8x384xf32> to vector<8x384xf32>
    %cst_56 = arith.constant dense<0.000000e+00> : vector<8x384xf32>
    %211 = tpu.matmul %207, %12, %cst_56 {dimension_numbers = #tpu.dot_dimension_numbers<[1], [0], [0], [1], [0, 0, 1, 1], [], []>} : vector<8x128xf32>, vector<128x384xf32>, vector<8x384xf32> -> vector<8x384xf32>
    %212 = vector.extract_strided_slice %210 {offsets = [0, 128], sizes = [8, 128], strides = [1, 1]} : vector<8x384xf32> to vector<8x128xf32>
    %213 = vector.extract_strided_slice %211 {offsets = [0, 128], sizes = [8, 128], strides = [1, 1]} : vector<8x384xf32> to vector<8x128xf32>
    %214 = arith.addf %212, %213 : vector<8x128xf32>
    %215 = vector.extract_strided_slice %210 {offsets = [0, 0], sizes = [8, 128], strides = [1, 1]} : vector<8x384xf32> to vector<8x128xf32>
    %216 = vector.extract_strided_slice %211 {offsets = [0, 0], sizes = [8, 128], strides = [1, 1]} : vector<8x384xf32> to vector<8x128xf32>
    %217 = arith.addf %215, %216 : vector<8x128xf32>
    %218 = arith.negf %217 : vector<8x128xf32>
    %219 = math.exp %218 : vector<8x128xf32>
    %cst_57 = arith.constant 1.000000e+00 : f32
    %220 = vector.broadcast %cst_57 : f32 to vector<8x128xf32>
    %221 = arith.addf %220, %219 : vector<8x128xf32>
    %222 = arith.divf %220, %221 : vector<8x128xf32>
    %223 = arith.negf %214 : vector<8x128xf32>
    %224 = math.exp %223 : vector<8x128xf32>
    %cst_58 = arith.constant 1.000000e+00 : f32
    %225 = vector.broadcast %cst_58 : f32 to vector<8x128xf32>
    %226 = arith.addf %225, %224 : vector<8x128xf32>
    %227 = arith.divf %225, %226 : vector<8x128xf32>
    %228 = vector.extract_strided_slice %210 {offsets = [0, 256], sizes = [8, 128], strides = [1, 1]} : vector<8x384xf32> to vector<8x128xf32>
    %229 = vector.extract_strided_slice %211 {offsets = [0, 256], sizes = [8, 128], strides = [1, 1]} : vector<8x384xf32> to vector<8x128xf32>
    %230 = vector.broadcast %13 : vector<1x128xf32> to vector<8x128xf32>
    %231 = arith.addf %229, %230 : vector<8x128xf32>
    %232 = arith.mulf %222, %231 : vector<8x128xf32>
    %233 = arith.addf %228, %232 : vector<8x128xf32>
    %234 = math.tanh %233 : vector<8x128xf32>
    %cst_59 = arith.constant 1.000000e+00 : f32
    %235 = vector.broadcast %cst_59 : f32 to vector<8x128xf32>
    %236 = arith.subf %235, %227 : vector<8x128xf32>
    %237 = arith.mulf %236, %234 : vector<8x128xf32>
    %238 = arith.mulf %227, %207 : vector<8x128xf32>
    %239 = arith.addf %237, %238 : vector<8x128xf32>
    %c7_i32 = arith.constant 7 : i32
    %240 = arith.index_cast %c7_i32 : i32 to index
    %c0_60 = arith.constant 0 : index
    %c0_61 = arith.constant 0 : index
    %241 = vector.load %arg9[%240, %c0_60, %c0_61] : memref<8x8x384xf32, #tpu.memory_space<vmem>>, vector<1x8x384xf32>
    %242 = vector.shape_cast %241 : vector<1x8x384xf32> to vector<8x384xf32>
    %cst_62 = arith.constant dense<0.000000e+00> : vector<8x384xf32>
    %243 = tpu.matmul %239, %12, %cst_62 {dimension_numbers = #tpu.dot_dimension_numbers<[1], [0], [0], [1], [0, 0, 1, 1], [], []>} : vector<8x128xf32>, vector<128x384xf32>, vector<8x384xf32> -> vector<8x384xf32>
    %244 = vector.extract_strided_slice %242 {offsets = [0, 128], sizes = [8, 128], strides = [1, 1]} : vector<8x384xf32> to vector<8x128xf32>
    %245 = vector.extract_strided_slice %243 {offsets = [0, 128], sizes = [8, 128], strides = [1, 1]} : vector<8x384xf32> to vector<8x128xf32>
    %246 = arith.addf %244, %245 : vector<8x128xf32>
    %247 = vector.extract_strided_slice %242 {offsets = [0, 0], sizes = [8, 128], strides = [1, 1]} : vector<8x384xf32> to vector<8x128xf32>
    %248 = vector.extract_strided_slice %243 {offsets = [0, 0], sizes = [8, 128], strides = [1, 1]} : vector<8x384xf32> to vector<8x128xf32>
    %249 = arith.addf %247, %248 : vector<8x128xf32>
    %250 = arith.negf %249 : vector<8x128xf32>
    %251 = math.exp %250 : vector<8x128xf32>
    %cst_63 = arith.constant 1.000000e+00 : f32
    %252 = vector.broadcast %cst_63 : f32 to vector<8x128xf32>
    %253 = arith.addf %252, %251 : vector<8x128xf32>
    %254 = arith.divf %252, %253 : vector<8x128xf32>
    %255 = arith.negf %246 : vector<8x128xf32>
    %256 = math.exp %255 : vector<8x128xf32>
    %cst_64 = arith.constant 1.000000e+00 : f32
    %257 = vector.broadcast %cst_64 : f32 to vector<8x128xf32>
    %258 = arith.addf %257, %256 : vector<8x128xf32>
    %259 = arith.divf %257, %258 : vector<8x128xf32>
    %260 = vector.extract_strided_slice %242 {offsets = [0, 256], sizes = [8, 128], strides = [1, 1]} : vector<8x384xf32> to vector<8x128xf32>
    %261 = vector.extract_strided_slice %243 {offsets = [0, 256], sizes = [8, 128], strides = [1, 1]} : vector<8x384xf32> to vector<8x128xf32>
    %262 = vector.broadcast %13 : vector<1x128xf32> to vector<8x128xf32>
    %263 = arith.addf %261, %262 : vector<8x128xf32>
    %264 = arith.mulf %254, %263 : vector<8x128xf32>
    %265 = arith.addf %260, %264 : vector<8x128xf32>
    %266 = math.tanh %265 : vector<8x128xf32>
    %cst_65 = arith.constant 1.000000e+00 : f32
    %267 = vector.broadcast %cst_65 : f32 to vector<8x128xf32>
    %268 = arith.subf %267, %259 : vector<8x128xf32>
    %269 = arith.mulf %268, %266 : vector<8x128xf32>
    %270 = arith.mulf %259, %239 : vector<8x128xf32>
    %271 = arith.addf %269, %270 : vector<8x128xf32>
    %c8_i32 = arith.constant 8 : i32
    %c0_66 = arith.constant 0 : index
    %c0_67 = arith.constant 0 : index
    %c0_68 = arith.constant 0 : index
    %272 = vector.load %arg8[%c0_66, %c0_67, %c0_68] : memref<1x8x128xf32, #tpu.memory_space<vmem>>, vector<1x8x128xf32>
    %273 = vector.shape_cast %272 : vector<1x8x128xf32> to vector<8x128xf32>
    %274 = vector.shape_cast %271 : vector<8x128xf32> to vector<1x8x128xf32>
    tpu.vector_store %arg8[%c0_66, %c0_67, %c0_68], %274 {strides = array<i32>} : memref<1x8x128xf32, #tpu.memory_space<vmem>>, vector<1x8x128xf32>,
    return
  }
  func.func @transform_0(%arg0: i32, %arg1: i32, %arg2: memref<8xi32, #tpu.memory_space<smem>>) -> (i32, i32, i32) {
    %c0_i32 = arith.constant 0 : i32
    %c0_i32_0 = arith.constant 0 : i32
    return %arg1, %arg0, %c0_i32 : i32, i32, i32
  }
  func.func @transform_1(%arg0: i32, %arg1: i32, %arg2: memref<8xi32, #tpu.memory_space<smem>>) -> (i32, i32) {
    %c0_i32 = arith.constant 0 : i32
    %c0_i32_0 = arith.constant 0 : i32
    %c0_i32_1 = arith.constant 0 : i32
    return %c0_i32, %c0_i32_0 : i32, i32
  }
  func.func @transform_2(%arg0: i32, %arg1: i32, %arg2: memref<8xi32, #tpu.memory_space<smem>>) -> (i32, i32) {
    %c0_i32 = arith.constant 0 : i32
    %c0_i32_0 = arith.constant 0 : i32
    %c0_i32_1 = arith.constant 0 : i32
    return %c0_i32, %c0_i32_0 : i32, i32
  }
  func.func @transform_3(%arg0: i32, %arg1: i32, %arg2: memref<8xi32, #tpu.memory_space<smem>>) -> (i32, i32) {
    %c0_i32 = arith.constant 0 : i32
    %c0_i32_0 = arith.constant 0 : i32
    %c0_i32_1 = arith.constant 0 : i32
    return %c0_i32, %c0_i32_0 : i32, i32
  }
  func.func @transform_4(%arg0: i32, %arg1: i32, %arg2: memref<8xi32, #tpu.memory_space<smem>>) -> (i32, i32) {
    %c0_i32 = arith.constant 0 : i32
    %c0_i32_0 = arith.constant 0 : i32
    %c0_i32_1 = arith.constant 0 : i32
    return %c0_i32, %c0_i32_0 : i32, i32
  }
  func.func @transform_5(%arg0: i32, %arg1: i32, %arg2: memref<8xi32, #tpu.memory_space<smem>>) -> (i32, i32, i32) {
    %c0_i32 = arith.constant 0 : i32
    %c0_i32_0 = arith.constant 0 : i32
    %c0_i32_1 = arith.constant 0 : i32
    return %c0_i32, %arg0, %c0_i32_0 : i32, i32, i32
  }
}

module attributes {stable_mosaic.version = 11 : i64} {
  func.func @_gru_kernel(%arg0: i32, %arg1: i32, %arg2: memref<8xi32, #tpu.memory_space<smem>>, %arg3: memref<8x8x8xf32, #tpu.memory_space<vmem>>, %arg4: memref<8x384xf32, #tpu.memory_space<vmem>>, %arg5: memref<128x384xf32, #tpu.memory_space<vmem>>, %arg6: memref<1x384xf32, #tpu.memory_space<vmem>>, %arg7: memref<1x128xf32, #tpu.memory_space<vmem>>, %arg8: memref<1x8x128xf32, #tpu.memory_space<vmem>>, %arg9: memref<8x8x384xf32, #tpu.memory_space<vmem>>) attributes {dimension_semantics = [#tpu.dimension_semantics<parallel>, #tpu.dimension_semantics<arbitrary>], iteration_bounds = array<i64: 1, 1>, scalar_prefetch = 1 : i64, scratch_operands = 1 : i64, tpu.core_type = #tpu.core_type<tc>, window_params = [{transform_indices = @transform_0, window_bounds = array<i64: 8, 8, 8>}, {pipeline_mode = #tpu.pipeline_mode<synchronous>, transform_indices = @transform_1, window_bounds = array<i64: 8, 384>}, {pipeline_mode = #tpu.pipeline_mode<synchronous>, transform_indices = @transform_2, window_bounds = array<i64: 128, 384>}, {pipeline_mode = #tpu.pipeline_mode<synchronous>, transform_indices = @transform_3, window_bounds = array<i64: 1, 384>}, {pipeline_mode = #tpu.pipeline_mode<synchronous>, transform_indices = @transform_4, window_bounds = array<i64: 1, 128>}, {transform_indices = @transform_5, window_bounds = array<i64: 1, 8, 128>}]} {
    %c0_i32 = arith.constant 0 : i32
    %0 = arith.cmpi eq, %arg1, %c0_i32 : i32
    %1 = arith.extui %0 : i1 to i32
    %c0_i32_0 = arith.constant 0 : i32
    %2 = arith.cmpi ne, %1, %c0_i32_0 : i32
    scf.if %2 {
      %cst_69 = arith.constant 0.000000e+00 : f32
      %275 = vector.broadcast %cst_69 : f32 to vector<1x8x128xf32>
      %c0_70 = arith.constant 0 : index
      %c0_71 = arith.constant 0 : index
      %c0_72 = arith.constant 0 : index
      %276 = vector.load %arg8[%c0_70, %c0_71, %c0_72] : memref<1x8x128xf32, #tpu.memory_space<vmem>>, vector<1x8x128xf32>
      tpu.vector_store %arg8[%c0_70, %c0_71, %c0_72], %275 {strides = array<i32>} : memref<1x8x128xf32, #tpu.memory_space<vmem>>, vector<1x8x128xf32>,
    } else {
    }
    %c0 = arith.constant 0 : index
    %c0_1 = arith.constant 0 : index
    %c0_2 = arith.constant 0 : index
    %3 = vector.load %arg3[%c0, %c0_1, %c0_2] : memref<8x8x8xf32, #tpu.memory_space<vmem>>, vector<8x8x8xf32>
    %4 = vector.shape_cast %3 : vector<8x8x8xf32> to vector<64x8xf32>
    %c0_3 = arith.constant 0 : index
    %c0_4 = arith.constant 0 : index
    %5 = vector.load %arg4[%c0_3, %c0_4] : memref<8x384xf32, #tpu.memory_space<vmem>>, vector<8x384xf32>
    %cst = arith.constant dense<0.000000e+00> : vector<64x384xf32>
    %6 = tpu.matmul %4, %5, %cst {dimension_numbers = #tpu.dot_dimension_numbers<[1], [0], [0], [1], [0, 0, 1, 1], [], []>} : vector<64x8xf32>, vector<8x384xf32>, vector<64x384xf32> -> vector<64x384xf32>
    %c0_5 = arith.constant 0 : index
    %c0_6 = arith.constant 0 : index
    %7 = vector.load %arg6[%c0_5, %c0_6] : memref<1x384xf32, #tpu.memory_space<vmem>>, vector<1x384xf32>
    %8 = vector.broadcast %7 : vector<1x384xf32> to vector<64x384xf32>
    %9 = arith.addf %6, %8 : vector<64x384xf32>
    %10 = vector.shape_cast %9 : vector<64x384xf32> to vector<8x8x384xf32>
    %c0_7 = arith.constant 0 : index
    %c0_8 = arith.constant 0 : index
    %c0_9 = arith.constant 0 : index
    %11 = vector.load %arg9[%c0_7, %c0_8, %c0_9] : memref<8x8x384xf32, #tpu.memory_space<vmem>>, vector<8x8x384xf32>
    tpu.vector_store %arg9[%c0_7, %c0_8, %c0_9], %10 {strides = array<i32>} : memref<8x8x384xf32, #tpu.memory_space<vmem>>, vector<8x8x384xf32>,
    %c0_10 = arith.constant 0 : index
    %c0_11 = arith.constant 0 : index
    %12 = vector.load %arg5[%c0_10, %c0_11] : memref<128x384xf32, #tpu.memory_space<vmem>>, vector<128x384xf32>
    %c0_12 = arith.constant 0 : index
    %c0_13 = arith.constant 0 : index
    %13 = vector.load %arg7[%c0_12, %c0_13] : memref<1x128xf32, #tpu.memory_space<vmem>>, vector<1x128xf32>
    %c0_14 = arith.constant 0 : index
    %c0_15 = arith.constant 0 : index
    %c0_16 = arith.constant 0 : index
    %14 = vector.load %arg8[%c0_14, %c0_15, %c0_16] : memref<1x8x128xf32, #tpu.memory_space<vmem>>, vector<1x8x128xf32>
    %15 = vector.shape_cast %14 : vector<1x8x128xf32> to vector<8x128xf32>
    %c0_i32_17 = arith.constant 0 : i32
    %16 = arith.index_cast %c0_i32_17 : i32 to index
    %c0_18 = arith.constant 0 : index
    %c0_19 = arith.constant 0 : index
    %17 = vector.load %arg9[%16, %c0_18, %c0_19] : memref<8x8x384xf32, #tpu.memory_space<vmem>>, vector<1x8x384xf32>
    %18 = vector.shape_cast %17 : vector<1x8x384xf32> to vector<8x384xf32>
    %cst_20 = arith.constant dense<0.000000e+00> : vector<8x384xf32>
    %19 = tpu.matmul %15, %12, %cst_20 {dimension_numbers = #tpu.dot_dimension_numbers<[1], [0], [0], [1], [0, 0, 1, 1], [], []>} : vector<8x128xf32>, vector<128x384xf32>, vector<8x384xf32> -> vector<8x384xf32>
    %20 = vector.extract_strided_slice %18 {offsets = [0, 128], sizes = [8, 128], strides = [1, 1]} : vector<8x384xf32> to vector<8x128xf32>
    %21 = vector.extract_strided_slice %19 {offsets = [0, 128], sizes = [8, 128], strides = [1, 1]} : vector<8x384xf32> to vector<8x128xf32>
    %22 = arith.addf %20, %21 : vector<8x128xf32>
    %23 = vector.extract_strided_slice %18 {offsets = [0, 0], sizes = [8, 128], strides = [1, 1]} : vector<8x384xf32> to vector<8x128xf32>
    %24 = vector.extract_strided_slice %19 {offsets = [0, 0], sizes = [8, 128], strides = [1, 1]} : vector<8x384xf32> to vector<8x128xf32>
    %25 = arith.addf %23, %24 : vector<8x128xf32>
    %26 = arith.negf %25 : vector<8x128xf32>
    %27 = math.exp %26 : vector<8x128xf32>
    %cst_21 = arith.constant 1.000000e+00 : f32
    %28 = vector.broadcast %cst_21 : f32 to vector<8x128xf32>
    %29 = arith.addf %28, %27 : vector<8x128xf32>
    %30 = arith.divf %28, %29 : vector<8x128xf32>
    %31 = arith.negf %22 : vector<8x128xf32>
    %32 = math.exp %31 : vector<8x128xf32>
    %cst_22 = arith.constant 1.000000e+00 : f32
    %33 = vector.broadcast %cst_22 : f32 to vector<8x128xf32>
    %34 = arith.addf %33, %32 : vector<8x128xf32>
    %35 = arith.divf %33, %34 : vector<8x128xf32>
    %36 = vector.extract_strided_slice %18 {offsets = [0, 256], sizes = [8, 128], strides = [1, 1]} : vector<8x384xf32> to vector<8x128xf32>
    %37 = vector.extract_strided_slice %19 {offsets = [0, 256], sizes = [8, 128], strides = [1, 1]} : vector<8x384xf32> to vector<8x128xf32>
    %38 = vector.broadcast %13 : vector<1x128xf32> to vector<8x128xf32>
    %39 = arith.addf %37, %38 : vector<8x128xf32>
    %40 = arith.mulf %30, %39 : vector<8x128xf32>
    %41 = arith.addf %36, %40 : vector<8x128xf32>
    %42 = math.tanh %41 : vector<8x128xf32>
    %cst_23 = arith.constant 1.000000e+00 : f32
    %43 = vector.broadcast %cst_23 : f32 to vector<8x128xf32>
    %44 = arith.subf %43, %35 : vector<8x128xf32>
    %45 = arith.mulf %44, %42 : vector<8x128xf32>
    %46 = arith.mulf %35, %15 : vector<8x128xf32>
    %47 = arith.addf %45, %46 : vector<8x128xf32>
    %c1_i32 = arith.constant 1 : i32
    %48 = arith.index_cast %c1_i32 : i32 to index
    %c0_24 = arith.constant 0 : index
    %c0_25 = arith.constant 0 : index
    %49 = vector.load %arg9[%48, %c0_24, %c0_25] : memref<8x8x384xf32, #tpu.memory_space<vmem>>, vector<1x8x384xf32>
    %50 = vector.shape_cast %49 : vector<1x8x384xf32> to vector<8x384xf32>
    %cst_26 = arith.constant dense<0.000000e+00> : vector<8x384xf32>
    %51 = tpu.matmul %47, %12, %cst_26 {dimension_numbers = #tpu.dot_dimension_numbers<[1], [0], [0], [1], [0, 0, 1, 1], [], []>} : vector<8x128xf32>, vector<128x384xf32>, vector<8x384xf32> -> vector<8x384xf32>
    %52 = vector.extract_strided_slice %50 {offsets = [0, 128], sizes = [8, 128], strides = [1, 1]} : vector<8x384xf32> to vector<8x128xf32>
    %53 = vector.extract_strided_slice %51 {offsets = [0, 128], sizes = [8, 128], strides = [1, 1]} : vector<8x384xf32> to vector<8x128xf32>
    %54 = arith.addf %52, %53 : vector<8x128xf32>
    %55 = vector.extract_strided_slice %50 {offsets = [0, 0], sizes = [8, 128], strides = [1, 1]} : vector<8x384xf32> to vector<8x128xf32>
    %56 = vector.extract_strided_slice %51 {offsets = [0, 0], sizes = [8, 128], strides = [1, 1]} : vector<8x384xf32> to vector<8x128xf32>
    %57 = arith.addf %55, %56 : vector<8x128xf32>
    %58 = arith.negf %57 : vector<8x128xf32>
    %59 = math.exp %58 : vector<8x128xf32>
    %cst_27 = arith.constant 1.000000e+00 : f32
    %60 = vector.broadcast %cst_27 : f32 to vector<8x128xf32>
    %61 = arith.addf %60, %59 : vector<8x128xf32>
    %62 = arith.divf %60, %61 : vector<8x128xf32>
    %63 = arith.negf %54 : vector<8x128xf32>
    %64 = math.exp %63 : vector<8x128xf32>
    %cst_28 = arith.constant 1.000000e+00 : f32
    %65 = vector.broadcast %cst_28 : f32 to vector<8x128xf32>
    %66 = arith.addf %65, %64 : vector<8x128xf32>
    %67 = arith.divf %65, %66 : vector<8x128xf32>
    %68 = vector.extract_strided_slice %50 {offsets = [0, 256], sizes = [8, 128], strides = [1, 1]} : vector<8x384xf32> to vector<8x128xf32>
    %69 = vector.extract_strided_slice %51 {offsets = [0, 256], sizes = [8, 128], strides = [1, 1]} : vector<8x384xf32> to vector<8x128xf32>
    %70 = vector.broadcast %13 : vector<1x128xf32> to vector<8x128xf32>
    %71 = arith.addf %69, %70 : vector<8x128xf32>
    %72 = arith.mulf %62, %71 : vector<8x128xf32>
    %73 = arith.addf %68, %72 : vector<8x128xf32>
    %74 = math.tanh %73 : vector<8x128xf32>
    %cst_29 = arith.constant 1.000000e+00 : f32
    %75 = vector.broadcast %cst_29 : f32 to vector<8x128xf32>
    %76 = arith.subf %75, %67 : vector<8x128xf32>
    %77 = arith.mulf %76, %74 : vector<8x128xf32>
    %78 = arith.mulf %67, %47 : vector<8x128xf32>
    %79 = arith.addf %77, %78 : vector<8x128xf32>
    %c2_i32 = arith.constant 2 : i32
    %80 = arith.index_cast %c2_i32 : i32 to index
    %c0_30 = arith.constant 0 : index
    %c0_31 = arith.constant 0 : index
    %81 = vector.load %arg9[%80, %c0_30, %c0_31] : memref<8x8x384xf32, #tpu.memory_space<vmem>>, vector<1x8x384xf32>
    %82 = vector.shape_cast %81 : vector<1x8x384xf32> to vector<8x384xf32>
    %cst_32 = arith.constant dense<0.000000e+00> : vector<8x384xf32>
    %83 = tpu.matmul %79, %12, %cst_32 {dimension_numbers = #tpu.dot_dimension_numbers<[1], [0], [0], [1], [0, 0, 1, 1], [], []>} : vector<8x128xf32>, vector<128x384xf32>, vector<8x384xf32> -> vector<8x384xf32>
    %84 = vector.extract_strided_slice %82 {offsets = [0, 128], sizes = [8, 128], strides = [1, 1]} : vector<8x384xf32> to vector<8x128xf32>
    %85 = vector.extract_strided_slice %83 {offsets = [0, 128], sizes = [8, 128], strides = [1, 1]} : vector<8x384xf32> to vector<8x128xf32>
    %86 = arith.addf %84, %85 : vector<8x128xf32>
    %87 = vector.extract_strided_slice %82 {offsets = [0, 0], sizes = [8, 128], strides = [1, 1]} : vector<8x384xf32> to vector<8x128xf32>
    %88 = vector.extract_strided_slice %83 {offsets = [0, 0], sizes = [8, 128], strides = [1, 1]} : vector<8x384xf32> to vector<8x128xf32>
    %89 = arith.addf %87, %88 : vector<8x128xf32>
    %90 = arith.negf %89 : vector<8x128xf32>
    %91 = math.exp %90 : vector<8x128xf32>
    %cst_33 = arith.constant 1.000000e+00 : f32
    %92 = vector.broadcast %cst_33 : f32 to vector<8x128xf32>
    %93 = arith.addf %92, %91 : vector<8x128xf32>
    %94 = arith.divf %92, %93 : vector<8x128xf32>
    %95 = arith.negf %86 : vector<8x128xf32>
    %96 = math.exp %95 : vector<8x128xf32>
    %cst_34 = arith.constant 1.000000e+00 : f32
    %97 = vector.broadcast %cst_34 : f32 to vector<8x128xf32>
    %98 = arith.addf %97, %96 : vector<8x128xf32>
    %99 = arith.divf %97, %98 : vector<8x128xf32>
    %100 = vector.extract_strided_slice %82 {offsets = [0, 256], sizes = [8, 128], strides = [1, 1]} : vector<8x384xf32> to vector<8x128xf32>
    %101 = vector.extract_strided_slice %83 {offsets = [0, 256], sizes = [8, 128], strides = [1, 1]} : vector<8x384xf32> to vector<8x128xf32>
    %102 = vector.broadcast %13 : vector<1x128xf32> to vector<8x128xf32>
    %103 = arith.addf %101, %102 : vector<8x128xf32>
    %104 = arith.mulf %94, %103 : vector<8x128xf32>
    %105 = arith.addf %100, %104 : vector<8x128xf32>
    %106 = math.tanh %105 : vector<8x128xf32>
    %cst_35 = arith.constant 1.000000e+00 : f32
    %107 = vector.broadcast %cst_35 : f32 to vector<8x128xf32>
    %108 = arith.subf %107, %99 : vector<8x128xf32>
    %109 = arith.mulf %108, %106 : vector<8x128xf32>
    %110 = arith.mulf %99, %79 : vector<8x128xf32>
    %111 = arith.addf %109, %110 : vector<8x128xf32>
    %c3_i32 = arith.constant 3 : i32
    %112 = arith.index_cast %c3_i32 : i32 to index
    %c0_36 = arith.constant 0 : index
    %c0_37 = arith.constant 0 : index
    %113 = vector.load %arg9[%112, %c0_36, %c0_37] : memref<8x8x384xf32, #tpu.memory_space<vmem>>, vector<1x8x384xf32>
    %114 = vector.shape_cast %113 : vector<1x8x384xf32> to vector<8x384xf32>
    %cst_38 = arith.constant dense<0.000000e+00> : vector<8x384xf32>
    %115 = tpu.matmul %111, %12, %cst_38 {dimension_numbers = #tpu.dot_dimension_numbers<[1], [0], [0], [1], [0, 0, 1, 1], [], []>} : vector<8x128xf32>, vector<128x384xf32>, vector<8x384xf32> -> vector<8x384xf32>
    %116 = vector.extract_strided_slice %114 {offsets = [0, 128], sizes = [8, 128], strides = [1, 1]} : vector<8x384xf32> to vector<8x128xf32>
    %117 = vector.extract_strided_slice %115 {offsets = [0, 128], sizes = [8, 128], strides = [1, 1]} : vector<8x384xf32> to vector<8x128xf32>
    %118 = arith.addf %116, %117 : vector<8x128xf32>
    %119 = vector.extract_strided_slice %114 {offsets = [0, 0], sizes = [8, 128], strides = [1, 1]} : vector<8x384xf32> to vector<8x128xf32>
    %120 = vector.extract_strided_slice %115 {offsets = [0, 0], sizes = [8, 128], strides = [1, 1]} : vector<8x384xf32> to vector<8x128xf32>
    %121 = arith.addf %119, %120 : vector<8x128xf32>
    %122 = arith.negf %121 : vector<8x128xf32>
    %123 = math.exp %122 : vector<8x128xf32>
    %cst_39 = arith.constant 1.000000e+00 : f32
    %124 = vector.broadcast %cst_39 : f32 to vector<8x128xf32>
    %125 = arith.addf %124, %123 : vector<8x128xf32>
    %126 = arith.divf %124, %125 : vector<8x128xf32>
    %127 = arith.negf %118 : vector<8x128xf32>
    %128 = math.exp %127 : vector<8x128xf32>
    %cst_40 = arith.constant 1.000000e+00 : f32
    %129 = vector.broadcast %cst_40 : f32 to vector<8x128xf32>
    %130 = arith.addf %129, %128 : vector<8x128xf32>
    %131 = arith.divf %129, %130 : vector<8x128xf32>
    %132 = vector.extract_strided_slice %114 {offsets = [0, 256], sizes = [8, 128], strides = [1, 1]} : vector<8x384xf32> to vector<8x128xf32>
    %133 = vector.extract_strided_slice %115 {offsets = [0, 256], sizes = [8, 128], strides = [1, 1]} : vector<8x384xf32> to vector<8x128xf32>
    %134 = vector.broadcast %13 : vector<1x128xf32> to vector<8x128xf32>
    %135 = arith.addf %133, %134 : vector<8x128xf32>
    %136 = arith.mulf %126, %135 : vector<8x128xf32>
    %137 = arith.addf %132, %136 : vector<8x128xf32>
    %138 = math.tanh %137 : vector<8x128xf32>
    %cst_41 = arith.constant 1.000000e+00 : f32
    %139 = vector.broadcast %cst_41 : f32 to vector<8x128xf32>
    %140 = arith.subf %139, %131 : vector<8x128xf32>
    %141 = arith.mulf %140, %138 : vector<8x128xf32>
    %142 = arith.mulf %131, %111 : vector<8x128xf32>
    %143 = arith.addf %141, %142 : vector<8x128xf32>
    %c4_i32 = arith.constant 4 : i32
    %144 = arith.index_cast %c4_i32 : i32 to index
    %c0_42 = arith.constant 0 : index
    %c0_43 = arith.constant 0 : index
    %145 = vector.load %arg9[%144, %c0_42, %c0_43] : memref<8x8x384xf32, #tpu.memory_space<vmem>>, vector<1x8x384xf32>
    %146 = vector.shape_cast %145 : vector<1x8x384xf32> to vector<8x384xf32>
    %cst_44 = arith.constant dense<0.000000e+00> : vector<8x384xf32>
    %147 = tpu.matmul %143, %12, %cst_44 {dimension_numbers = #tpu.dot_dimension_numbers<[1], [0], [0], [1], [0, 0, 1, 1], [], []>} : vector<8x128xf32>, vector<128x384xf32>, vector<8x384xf32> -> vector<8x384xf32>
    %148 = vector.extract_strided_slice %146 {offsets = [0, 128], sizes = [8, 128], strides = [1, 1]} : vector<8x384xf32> to vector<8x128xf32>
    %149 = vector.extract_strided_slice %147 {offsets = [0, 128], sizes = [8, 128], strides = [1, 1]} : vector<8x384xf32> to vector<8x128xf32>
    %150 = arith.addf %148, %149 : vector<8x128xf32>
    %151 = vector.extract_strided_slice %146 {offsets = [0, 0], sizes = [8, 128], strides = [1, 1]} : vector<8x384xf32> to vector<8x128xf32>
    %152 = vector.extract_strided_slice %147 {offsets = [0, 0], sizes = [8, 128], strides = [1, 1]} : vector<8x384xf32> to vector<8x128xf32>
    %153 = arith.addf %151, %152 : vector<8x128xf32>
    %154 = arith.negf %153 : vector<8x128xf32>
    %155 = math.exp %154 : vector<8x128xf32>
    %cst_45 = arith.constant 1.000000e+00 : f32
    %156 = vector.broadcast %cst_45 : f32 to vector<8x128xf32>
    %157 = arith.addf %156, %155 : vector<8x128xf32>
    %158 = arith.divf %156, %157 : vector<8x128xf32>
    %159 = arith.negf %150 : vector<8x128xf32>
    %160 = math.exp %159 : vector<8x128xf32>
    %cst_46 = arith.constant 1.000000e+00 : f32
    %161 = vector.broadcast %cst_46 : f32 to vector<8x128xf32>
    %162 = arith.addf %161, %160 : vector<8x128xf32>
    %163 = arith.divf %161, %162 : vector<8x128xf32>
    %164 = vector.extract_strided_slice %146 {offsets = [0, 256], sizes = [8, 128], strides = [1, 1]} : vector<8x384xf32> to vector<8x128xf32>
    %165 = vector.extract_strided_slice %147 {offsets = [0, 256], sizes = [8, 128], strides = [1, 1]} : vector<8x384xf32> to vector<8x128xf32>
    %166 = vector.broadcast %13 : vector<1x128xf32> to vector<8x128xf32>
    %167 = arith.addf %165, %166 : vector<8x128xf32>
    %168 = arith.mulf %158, %167 : vector<8x128xf32>
    %169 = arith.addf %164, %168 : vector<8x128xf32>
    %170 = math.tanh %169 : vector<8x128xf32>
    %cst_47 = arith.constant 1.000000e+00 : f32
    %171 = vector.broadcast %cst_47 : f32 to vector<8x128xf32>
    %172 = arith.subf %171, %163 : vector<8x128xf32>
    %173 = arith.mulf %172, %170 : vector<8x128xf32>
    %174 = arith.mulf %163, %143 : vector<8x128xf32>
    %175 = arith.addf %173, %174 : vector<8x128xf32>
    %c5_i32 = arith.constant 5 : i32
    %176 = arith.index_cast %c5_i32 : i32 to index
    %c0_48 = arith.constant 0 : index
    %c0_49 = arith.constant 0 : index
    %177 = vector.load %arg9[%176, %c0_48, %c0_49] : memref<8x8x384xf32, #tpu.memory_space<vmem>>, vector<1x8x384xf32>
    %178 = vector.shape_cast %177 : vector<1x8x384xf32> to vector<8x384xf32>
    %cst_50 = arith.constant dense<0.000000e+00> : vector<8x384xf32>
    %179 = tpu.matmul %175, %12, %cst_50 {dimension_numbers = #tpu.dot_dimension_numbers<[1], [0], [0], [1], [0, 0, 1, 1], [], []>} : vector<8x128xf32>, vector<128x384xf32>, vector<8x384xf32> -> vector<8x384xf32>
    %180 = vector.extract_strided_slice %178 {offsets = [0, 128], sizes = [8, 128], strides = [1, 1]} : vector<8x384xf32> to vector<8x128xf32>
    %181 = vector.extract_strided_slice %179 {offsets = [0, 128], sizes = [8, 128], strides = [1, 1]} : vector<8x384xf32> to vector<8x128xf32>
    %182 = arith.addf %180, %181 : vector<8x128xf32>
    %183 = vector.extract_strided_slice %178 {offsets = [0, 0], sizes = [8, 128], strides = [1, 1]} : vector<8x384xf32> to vector<8x128xf32>
    %184 = vector.extract_strided_slice %179 {offsets = [0, 0], sizes = [8, 128], strides = [1, 1]} : vector<8x384xf32> to vector<8x128xf32>
    %185 = arith.addf %183, %184 : vector<8x128xf32>
    %186 = arith.negf %185 : vector<8x128xf32>
    %187 = math.exp %186 : vector<8x128xf32>
    %cst_51 = arith.constant 1.000000e+00 : f32
    %188 = vector.broadcast %cst_51 : f32 to vector<8x128xf32>
    %189 = arith.addf %188, %187 : vector<8x128xf32>
    %190 = arith.divf %188, %189 : vector<8x128xf32>
    %191 = arith.negf %182 : vector<8x128xf32>
    %192 = math.exp %191 : vector<8x128xf32>
    %cst_52 = arith.constant 1.000000e+00 : f32
    %193 = vector.broadcast %cst_52 : f32 to vector<8x128xf32>
    %194 = arith.addf %193, %192 : vector<8x128xf32>
    %195 = arith.divf %193, %194 : vector<8x128xf32>
    %196 = vector.extract_strided_slice %178 {offsets = [0, 256], sizes = [8, 128], strides = [1, 1]} : vector<8x384xf32> to vector<8x128xf32>
    %197 = vector.extract_strided_slice %179 {offsets = [0, 256], sizes = [8, 128], strides = [1, 1]} : vector<8x384xf32> to vector<8x128xf32>
    %198 = vector.broadcast %13 : vector<1x128xf32> to vector<8x128xf32>
    %199 = arith.addf %197, %198 : vector<8x128xf32>
    %200 = arith.mulf %190, %199 : vector<8x128xf32>
    %201 = arith.addf %196, %200 : vector<8x128xf32>
    %202 = math.tanh %201 : vector<8x128xf32>
    %cst_53 = arith.constant 1.000000e+00 : f32
    %203 = vector.broadcast %cst_53 : f32 to vector<8x128xf32>
    %204 = arith.subf %203, %195 : vector<8x128xf32>
    %205 = arith.mulf %204, %202 : vector<8x128xf32>
    %206 = arith.mulf %195, %175 : vector<8x128xf32>
    %207 = arith.addf %205, %206 : vector<8x128xf32>
    %c6_i32 = arith.constant 6 : i32
    %208 = arith.index_cast %c6_i32 : i32 to index
    %c0_54 = arith.constant 0 : index
    %c0_55 = arith.constant 0 : index
    %209 = vector.load %arg9[%208, %c0_54, %c0_55] : memref<8x8x384xf32, #tpu.memory_space<vmem>>, vector<1x8x384xf32>
    %210 = vector.shape_cast %209 : vector<1x8x384xf32> to vector<8x384xf32>
    %cst_56 = arith.constant dense<0.000000e+00> : vector<8x384xf32>
    %211 = tpu.matmul %207, %12, %cst_56 {dimension_numbers = #tpu.dot_dimension_numbers<[1], [0], [0], [1], [0, 0, 1, 1], [], []>} : vector<8x128xf32>, vector<128x384xf32>, vector<8x384xf32> -> vector<8x384xf32>
    %212 = vector.extract_strided_slice %210 {offsets = [0, 128], sizes = [8, 128], strides = [1, 1]} : vector<8x384xf32> to vector<8x128xf32>
    %213 = vector.extract_strided_slice %211 {offsets = [0, 128], sizes = [8, 128], strides = [1, 1]} : vector<8x384xf32> to vector<8x128xf32>
    %214 = arith.addf %212, %213 : vector<8x128xf32>
    %215 = vector.extract_strided_slice %210 {offsets = [0, 0], sizes = [8, 128], strides = [1, 1]} : vector<8x384xf32> to vector<8x128xf32>
    %216 = vector.extract_strided_slice %211 {offsets = [0, 0], sizes = [8, 128], strides = [1, 1]} : vector<8x384xf32> to vector<8x128xf32>
    %217 = arith.addf %215, %216 : vector<8x128xf32>
    %218 = arith.negf %217 : vector<8x128xf32>
    %219 = math.exp %218 : vector<8x128xf32>
    %cst_57 = arith.constant 1.000000e+00 : f32
    %220 = vector.broadcast %cst_57 : f32 to vector<8x128xf32>
    %221 = arith.addf %220, %219 : vector<8x128xf32>
    %222 = arith.divf %220, %221 : vector<8x128xf32>
    %223 = arith.negf %214 : vector<8x128xf32>
    %224 = math.exp %223 : vector<8x128xf32>
    %cst_58 = arith.constant 1.000000e+00 : f32
    %225 = vector.broadcast %cst_58 : f32 to vector<8x128xf32>
    %226 = arith.addf %225, %224 : vector<8x128xf32>
    %227 = arith.divf %225, %226 : vector<8x128xf32>
    %228 = vector.extract_strided_slice %210 {offsets = [0, 256], sizes = [8, 128], strides = [1, 1]} : vector<8x384xf32> to vector<8x128xf32>
    %229 = vector.extract_strided_slice %211 {offsets = [0, 256], sizes = [8, 128], strides = [1, 1]} : vector<8x384xf32> to vector<8x128xf32>
    %230 = vector.broadcast %13 : vector<1x128xf32> to vector<8x128xf32>
    %231 = arith.addf %229, %230 : vector<8x128xf32>
    %232 = arith.mulf %222, %231 : vector<8x128xf32>
    %233 = arith.addf %228, %232 : vector<8x128xf32>
    %234 = math.tanh %233 : vector<8x128xf32>
    %cst_59 = arith.constant 1.000000e+00 : f32
    %235 = vector.broadcast %cst_59 : f32 to vector<8x128xf32>
    %236 = arith.subf %235, %227 : vector<8x128xf32>
    %237 = arith.mulf %236, %234 : vector<8x128xf32>
    %238 = arith.mulf %227, %207 : vector<8x128xf32>
    %239 = arith.addf %237, %238 : vector<8x128xf32>
    %c7_i32 = arith.constant 7 : i32
    %240 = arith.index_cast %c7_i32 : i32 to index
    %c0_60 = arith.constant 0 : index
    %c0_61 = arith.constant 0 : index
    %241 = vector.load %arg9[%240, %c0_60, %c0_61] : memref<8x8x384xf32, #tpu.memory_space<vmem>>, vector<1x8x384xf32>
    %242 = vector.shape_cast %241 : vector<1x8x384xf32> to vector<8x384xf32>
    %cst_62 = arith.constant dense<0.000000e+00> : vector<8x384xf32>
    %243 = tpu.matmul %239, %12, %cst_62 {dimension_numbers = #tpu.dot_dimension_numbers<[1], [0], [0], [1], [0, 0, 1, 1], [], []>} : vector<8x128xf32>, vector<128x384xf32>, vector<8x384xf32> -> vector<8x384xf32>
    %244 = vector.extract_strided_slice %242 {offsets = [0, 128], sizes = [8, 128], strides = [1, 1]} : vector<8x384xf32> to vector<8x128xf32>
    %245 = vector.extract_strided_slice %243 {offsets = [0, 128], sizes = [8, 128], strides = [1, 1]} : vector<8x384xf32> to vector<8x128xf32>
    %246 = arith.addf %244, %245 : vector<8x128xf32>
    %247 = vector.extract_strided_slice %242 {offsets = [0, 0], sizes = [8, 128], strides = [1, 1]} : vector<8x384xf32> to vector<8x128xf32>
    %248 = vector.extract_strided_slice %243 {offsets = [0, 0], sizes = [8, 128], strides = [1, 1]} : vector<8x384xf32> to vector<8x128xf32>
    %249 = arith.addf %247, %248 : vector<8x128xf32>
    %250 = arith.negf %249 : vector<8x128xf32>
    %251 = math.exp %250 : vector<8x128xf32>
    %cst_63 = arith.constant 1.000000e+00 : f32
    %252 = vector.broadcast %cst_63 : f32 to vector<8x128xf32>
    %253 = arith.addf %252, %251 : vector<8x128xf32>
    %254 = arith.divf %252, %253 : vector<8x128xf32>
    %255 = arith.negf %246 : vector<8x128xf32>
    %256 = math.exp %255 : vector<8x128xf32>
    %cst_64 = arith.constant 1.000000e+00 : f32
    %257 = vector.broadcast %cst_64 : f32 to vector<8x128xf32>
    %258 = arith.addf %257, %256 : vector<8x128xf32>
    %259 = arith.divf %257, %258 : vector<8x128xf32>
    %260 = vector.extract_strided_slice %242 {offsets = [0, 256], sizes = [8, 128], strides = [1, 1]} : vector<8x384xf32> to vector<8x128xf32>
    %261 = vector.extract_strided_slice %243 {offsets = [0, 256], sizes = [8, 128], strides = [1, 1]} : vector<8x384xf32> to vector<8x128xf32>
    %262 = vector.broadcast %13 : vector<1x128xf32> to vector<8x128xf32>
    %263 = arith.addf %261, %262 : vector<8x128xf32>
    %264 = arith.mulf %254, %263 : vector<8x128xf32>
    %265 = arith.addf %260, %264 : vector<8x128xf32>
    %266 = math.tanh %265 : vector<8x128xf32>
    %cst_65 = arith.constant 1.000000e+00 : f32
    %267 = vector.broadcast %cst_65 : f32 to vector<8x128xf32>
    %268 = arith.subf %267, %259 : vector<8x128xf32>
    %269 = arith.mulf %268, %266 : vector<8x128xf32>
    %270 = arith.mulf %259, %239 : vector<8x128xf32>
    %271 = arith.addf %269, %270 : vector<8x128xf32>
    %c8_i32 = arith.constant 8 : i32
    %c0_66 = arith.constant 0 : index
    %c0_67 = arith.constant 0 : index
    %c0_68 = arith.constant 0 : index
    %272 = vector.load %arg8[%c0_66, %c0_67, %c0_68] : memref<1x8x128xf32, #tpu.memory_space<vmem>>, vector<1x8x128xf32>
    %273 = vector.shape_cast %272 : vector<1x8x128xf32> to vector<8x128xf32>
    %274 = vector.shape_cast %271 : vector<8x128xf32> to vector<1x8x128xf32>
    tpu.vector_store %arg8[%c0_66, %c0_67, %c0_68], %274 {strides = array<i32>} : memref<1x8x128xf32, #tpu.memory_space<vmem>>, vector<1x8x128xf32>,
    return
  }
  func.func @transform_0(%arg0: i32, %arg1: i32, %arg2: memref<8xi32, #tpu.memory_space<smem>>) -> (i32, i32, i32) {
    %c0_i32 = arith.constant 0 : i32
    %c0_i32_0 = arith.constant 0 : i32
    return %arg1, %arg0, %c0_i32 : i32, i32, i32
  }
  func.func @transform_1(%arg0: i32, %arg1: i32, %arg2: memref<8xi32, #tpu.memory_space<smem>>) -> (i32, i32) {
    %c0_i32 = arith.constant 0 : i32
    %c0_i32_0 = arith.constant 0 : i32
    %c0_i32_1 = arith.constant 0 : i32
    return %c0_i32, %c0_i32_0 : i32, i32
  }
  func.func @transform_2(%arg0: i32, %arg1: i32, %arg2: memref<8xi32, #tpu.memory_space<smem>>) -> (i32, i32) {
    %c0_i32 = arith.constant 0 : i32
    %c0_i32_0 = arith.constant 0 : i32
    %c0_i32_1 = arith.constant 0 : i32
    return %c0_i32, %c0_i32_0 : i32, i32
  }
  func.func @transform_3(%arg0: i32, %arg1: i32, %arg2: memref<8xi32, #tpu.memory_space<smem>>) -> (i32, i32) {
    %c0_i32 = arith.constant 0 : i32
    %c0_i32_0 = arith.constant 0 : i32
    %c0_i32_1 = arith.constant 0 : i32
    return %c0_i32, %c0_i32_0 : i32, i32
  }
  func.func @transform_4(%arg0: i32, %arg1: i32, %arg2: memref<8xi32, #tpu.memory_space<smem>>) -> (i32, i32) {
    %c0_i32 = arith.constant 0 : i32
    %c0_i32_0 = arith.constant 0 : i32
    %c0_i32_1 = arith.constant 0 : i32
    return %c0_i32, %c0_i32_0 : i32, i32
  }
  func.func @transform_5(%arg0: i32, %arg1: i32, %arg2: memref<8xi32, #tpu.memory_space<smem>>) -> (i32, i32, i32) {
    %c0_i32 = arith.constant 0 : i32
    %c0_i32_0 = arith.constant 0 : i32
    %c0_i32_1 = arith.constant 0 : i32
    return %c0_i32, %arg0, %c0_i32_0 : i32, i32, i32
  }
}

</mosaic_0001>

<llo_original>
// kernel: tpu_custom_call.1
$region0: #{tpu_custom_call.1}
  #allocation0 [shape = 'u32[]', space=smem, size = 0x4, offset = 0x4, fixed_abs, tag = 'smem constant byte address 0x4 - core index']
  #allocation1 [shape = 'u32[72,128]{1,0:T(1,128)}', space=vmem, size = 0x9000, scoped, tag = 'internal scratch']
  #allocation2 [shape = 'f32[8,8,384]{2,1,0:T(8,128)}', space=vmem, size = 0x18000, scoped, tag = 'scratch operand']
  #allocation3 [shape = 's32[1]{0}', space=sflag, size = 0x4, scoped, tag = 'scoped memory for tpu_custom_call.1']
  #allocation4 [shape = 'u8[512]{0}', space=smem, size = 0x200, scoped, tag = 'prefetched SMEM operand 0']
  %s0 = inlined_call_operand.hbm [shape: s32[8], index: 0, kind: input, shape index: {}]
  %s1 = inlined_call_operand.hbm [shape: f32[8,8,8], index: 1, kind: input, shape index: {}]
  %s2 = inlined_call_operand.hbm [shape: f32[8,384], index: 2, kind: input, shape index: {}]
  %s3 = inlined_call_operand.hbm [shape: f32[128,384], index: 3, kind: input, shape index: {}]
  %s4 = inlined_call_operand.vmem [shape: f32[1,384], index: 4, kind: input, shape index: {}]
  %s5 = inlined_call_operand.vmem [shape: f32[1,128], index: 5, kind: input, shape index: {}]
  %s6 = inlined_call_operand.hbm [shape: f32[1,8,128], index: 6, kind: output, shape index: {}]
  %s7 = sld [smem:[#allocation0]]
  $region46: #{tpu_custom_call.1} parent=0
    _
  %s9 = ssub.s32 1, %s7
  %s10 = scalar_select 0, %s9, %s7
  %s12 = sshll.u32 %s0, 4
  %s13 = int_to_ptr.hbm [resolvable:$true] %s12
  %15 = dma.hbm_to_smem %s13, 16, [#allocation4], [#allocation3]
  %17 = dma.done [#allocation3], 16
  %18 = sfence
  $region1: #{tpu_custom_call.1} parent=0
    #allocation5 [shape = 'u8[32768]{0}', space=vmem, size = 0x8000, scoped, tag = 'input window, operand 1, single buffered']
    #allocation6 [shape = 's32[1]{0}', space=sflag, size = 0x4, scoped, tag = 'scoped memory for tpu_custom_call.1']
    #allocation7 [shape = 's32[1]{0}', space=sflag, size = 0x4, scoped, tag = 'scoped memory for tpu_custom_call.1']
    #allocation8 [shape = 'u8[12288]{0}', space=vmem, size = 0x3000, scoped, tag = 'input window, operand 2, single buffered']
    #allocation9 [shape = 's32[1]{0}', space=sflag, size = 0x4, scoped, tag = 'scoped memory for tpu_custom_call.1']
    #allocation10 [shape = 'u8[196608]{0}', space=vmem, size = 0x30000, scoped, tag = 'input window, operand 3, single buffered']
    #allocation11 [shape = 'u8[4096]{0}', space=vmem, size = 0x1000, scoped, tag = 'output window, operand 0, single buffered']
    %19 = vsyncpa [#allocation6], 0
    %20 = vsyncpa [#allocation9], 0
    %21 = vsyncpa [#allocation7], 0
    // Predicated region
    $region2: #{tpu_custom_call.1} parent=1 // pred_check
      _
    $region3: #{tpu_custom_call.1} parent=1 // pred_check_branch
      %23 = sbr.rel (0) target = $region5
    $region4: #{tpu_custom_call.1} parent=1 // pred_region
      %25 = vsyncadd [#allocation6], 0
      %s26 = sshll.u32 %s1, 4
      %s27 = int_to_ptr.hbm [resolvable:$true] %s26
      %s28 = sshll.u32 [#allocation5], 4
      %s29 = int_to_ptr.vmem [resolvable:$true] %s28
      %34 = dma.hbm_to_vmem [thread:$0]  %s27, 1024, %s29, [#allocation6], 128, 128, 8
    $region5: #{tpu_custom_call.1} parent=1 // pred_fallthru
      _
    // Predicated region
    $region6: #{tpu_custom_call.1} parent=1 // pred_check
      _
    $region7: #{tpu_custom_call.1} parent=1 // pred_check_branch
      %36 = sbr.rel (0) target = $region9
    $region8: #{tpu_custom_call.1} parent=1 // pred_region
      %38 = vsyncadd [#allocation9], 0
      %s40 = sshll.u32 %s2, 4
      %s41 = int_to_ptr.hbm [resolvable:$true] %s40
      %s42 = sshll.u32 [#allocation8], 4
      %s43 = int_to_ptr.vmem [resolvable:$true] %s42
      %45 = dma.hbm_to_vmem [thread:$0]  %s41, 384, %s43, [#allocation9]
    $region9: #{tpu_custom_call.1} parent=1 // pred_fallthru
      _
    // Predicated region
    $region10: #{tpu_custom_call.1} parent=1 // pred_check
      _
    $region11: #{tpu_custom_call.1} parent=1 // pred_check_branch
      %47 = sbr.rel (0) target = $region13
    $region12: #{tpu_custom_call.1} parent=1 // pred_region
      %49 = vsyncadd [#allocation9], 0
      %s50 = sshll.u32 %s3, 4
      %s51 = int_to_ptr.hbm [resolvable:$true] %s50
      %s52 = sshll.u32 [#allocation10], 4
      %s53 = int_to_ptr.vmem [resolvable:$true] %s52
      %58 = dma.hbm_to_vmem [thread:$0]  %s51, 6144, %s53, [#allocation9], 384, 384, 24
    $region13: #{tpu_custom_call.1} parent=1 // pred_fallthru
      _
    // Predicated region
    $region14: #{tpu_custom_call.1} parent=1 // pred_check
      _
    $region15: #{tpu_custom_call.1} parent=1 // pred_check_branch
      %60 = sbr.rel (0) target = $region17
    $region16: #{tpu_custom_call.1} parent=1 // pred_region
      _
    $region17: #{tpu_custom_call.1} parent=1 // pred_fallthru
      _
    // Predicated region
    $region18: #{tpu_custom_call.1} parent=1 // pred_check
      _
    $region19: #{tpu_custom_call.1} parent=1 // pred_check_branch
      %62 = sbr.rel (0) target = $region21
    $region20: #{tpu_custom_call.1} parent=1 // pred_region
      _
    $region21: #{tpu_custom_call.1} parent=1 // pred_fallthru
      _
    // Predicated region
    $region22: #{tpu_custom_call.1} parent=1 // pred_check
      _
    $region23: #{tpu_custom_call.1} parent=1 // pred_check_branch
      %64 = sbr.rel (0) target = $region25
    $region24: #{tpu_custom_call.1} parent=1 // pred_region
      %66 = dma.done [#allocation6], 1024
    $region25: #{tpu_custom_call.1} parent=1 // pred_fallthru
      _
    // Predicated region
    $region26: #{tpu_custom_call.1} parent=1 // pred_check
      _
    $region27: #{tpu_custom_call.1} parent=1 // pred_check_branch
      %68 = sbr.rel (0) target = $region29
    $region28: #{tpu_custom_call.1} parent=1 // pred_region
      %70 = dma.done [#allocation9], 384
    $region29: #{tpu_custom_call.1} parent=1 // pred_fallthru
      _
    // Predicated region
    $region30: #{tpu_custom_call.1} parent=1 // pred_check
      _
    $region31: #{tpu_custom_call.1} parent=1 // pred_check_branch
      %72 = sbr.rel (0) target = $region33
    $region32: #{tpu_custom_call.1} parent=1 // pred_region
      %74 = dma.done [#allocation9], 6144
    $region33: #{tpu_custom_call.1} parent=1 // pred_fallthru
      _
    %p75 = scmp.eq.s32.totalorder 0, 0
    // Predicated region
    $region34: #{tpu_custom_call.1} parent=1 // pred_check
      %p76 = pneg %p75
    $region35: #{tpu_custom_call.1} parent=1 // pred_check_branch
      %78 = sbr.rel (%p76) target = $region37
    $region36: #{tpu_custom_call.1} parent=1 // pred_region
      %79 = vst [vmem:[#allocation11] sm:$0xff] 0.0
    $region37: #{tpu_custom_call.1} parent=1 // pred_fallthru
      _
    %v80 = vld [vmem:[#allocation5] sm:$0xff]
    %v81 = vld [vmem:[#allocation5 + $0x8] sm:$0xff]
    %v82 = vld [vmem:[#allocation5 + $0x10] sm:$0xff]
    %v83 = vld [vmem:[#allocation5 + $0x18] sm:$0xff]
    %v84 = vld [vmem:[#allocation5 + $0x20] sm:$0xff]
    %v85 = vld [vmem:[#allocation5 + $0x28] sm:$0xff]
    %v86 = vld [vmem:[#allocation5 + $0x30] sm:$0xff]
    %v87 = vld [vmem:[#allocation5 + $0x38] sm:$0xff]
    %v88 = vld [vmem:[#allocation8] sm:$0xff]
    %v89 = vld [vmem:[#allocation8 + $0x8] sm:$0xff]
    %v90 = vld [vmem:[#allocation8 + $0x10] sm:$0xff]
    %v91 = vld [vmem:[%s4] sm:$0x7]
    %v93 = vperm.slane %v91, 0
    %v94 = vperm.slane %v91, 1
    %v95 = vperm.slane %v91, 2
    %vm99 = vcmask 64512
    %v101 = vsel %vm99, %v80, 0
    %v104 = vsel %vm99, %v81, 0
    %v107 = vsel %vm99, %v82, 0
    %v110 = vsel %vm99, %v83, 0
    %v113 = vsel %vm99, %v84, 0
    %v116 = vsel %vm99, %v85, 0
    %v119 = vsel %vm99, %v86, 0
    %v122 = vsel %vm99, %v87, 0
    %124 = vmatpush.msra.mxu0 0.0
    %125 = vmatpush.msra.mxu0 0.0
    %126 = vmatpush.msra.mxu0 0.0
    %127 = vmatpush.msra.mxu0 0.0
    %128 = vmatpush.msra.mxu0 0.0
    %129 = vmatpush.msra.mxu0 0.0
    %130 = vmatpush.msra.mxu0 0.0
    %131 = vmatpush.msra.mxu0 0.0
    %132 = vmatpush.msra.mxu0 0.0
    %133 = vmatpush.msra.mxu0 0.0
    %134 = vmatpush.msra.mxu0 0.0
    %135 = vmatpush.msra.mxu0 0.0
    %136 = vmatpush.msra.mxu0 0.0
    %137 = vmatpush.msra.mxu0 0.0
    %138 = vmatpush.msra.mxu0 0.0
    %139 = vmatpush.msra.mxu0 %v88
    %140 = vmatmul.f32.gmra.mxu0 %v101
    %v141 = vpop.f32.mrf.mxu0
    %v142 = vadd.f32 %v93, %v141
    %143 = vmatmul.f32.gmra.mxu0 %v104
    %v144 = vpop.f32.mrf.mxu0
    %v145 = vadd.f32 %v93, %v144
    %146 = vmatmul.f32.gmra.mxu0 %v107
    %v147 = vpop.f32.mrf.mxu0
    %v148 = vadd.f32 %v93, %v147
    %149 = vmatmul.f32.gmra.mxu0 %v110
    %v150 = vpop.f32.mrf.mxu0
    %v151 = vadd.f32 %v93, %v150
    %152 = vmatmul.f32.gmra.mxu0 %v113
    %v153 = vpop.f32.mrf.mxu0
    %v154 = vadd.f32 %v93, %v153
    %155 = vmatmul.f32.gmra.mxu0 %v116
    %v156 = vpop.f32.mrf.mxu0
    %v157 = vadd.f32 %v93, %v156
    %158 = vmatmul.f32.gmra.mxu0 %v119
    %v159 = vpop.f32.mrf.mxu0
    %v160 = vadd.f32 %v93, %v159
    %161 = vmatmul.f32.gmra.mxu0 %v122
    %v162 = vpop.f32.mrf.mxu0
    %v163 = vadd.f32 %v93, %v162
    %164 = vdwg.mxu0
    %165 = vmatpush.msra.mxu0 0.0
    %166 = vmatpush.msra.mxu0 0.0
    %167 = vmatpush.msra.mxu0 0.0
    %168 = vmatpush.msra.mxu0 0.0
    %169 = vmatpush.msra.mxu0 0.0
    %170 = vmatpush.msra.mxu0 0.0
    %171 = vmatpush.msra.mxu0 0.0
    %172 = vmatpush.msra.mxu0 0.0
    %173 = vmatpush.msra.mxu0 0.0
    %174 = vmatpush.msra.mxu0 0.0
    %175 = vmatpush.msra.mxu0 0.0
    %176 = vmatpush.msra.mxu0 0.0
    %177 = vmatpush.msra.mxu0 0.0
    %178 = vmatpush.msra.mxu0 0.0
    %179 = vmatpush.msra.mxu0 0.0
    %180 = vmatpush.msra.mxu0 %v89
    %181 = vmatmul.f32.gmra.mxu0 %v101
    %v182 = vpop.f32.mrf.mxu0
    %v183 = vadd.f32 %v94, %v182
    %184 = vmatmul.f32.gmra.mxu0 %v104
    %v185 = vpop.f32.mrf.mxu0
    %v186 = vadd.f32 %v94, %v185
    %187 = vmatmul.f32.gmra.mxu0 %v107
    %v188 = vpop.f32.mrf.mxu0
    %v189 = vadd.f32 %v94, %v188
    %190 = vmatmul.f32.gmra.mxu0 %v110
    %v191 = vpop.f32.mrf.mxu0
    %v192 = vadd.f32 %v94, %v191
    %193 = vmatmul.f32.gmra.mxu0 %v113
    %v194 = vpop.f32.mrf.mxu0
    %v195 = vadd.f32 %v94, %v194
    %196 = vmatmul.f32.gmra.mxu0 %v116
    %v197 = vpop.f32.mrf.mxu0
    %v198 = vadd.f32 %v94, %v197
    %199 = vmatmul.f32.gmra.mxu0 %v119
    %v200 = vpop.f32.mrf.mxu0
    %v201 = vadd.f32 %v94, %v200
    %202 = vmatmul.f32.gmra.mxu0 %v122
    %v203 = vpop.f32.mrf.mxu0
    %v204 = vadd.f32 %v94, %v203
    %205 = vdwg.mxu0
    %206 = vmatpush.msra.mxu0 0.0
    %207 = vmatpush.msra.mxu0 0.0
    %208 = vmatpush.msra.mxu0 0.0
    %209 = vmatpush.msra.mxu0 0.0
    %210 = vmatpush.msra.mxu0 0.0
    %211 = vmatpush.msra.mxu0 0.0
    %212 = vmatpush.msra.mxu0 0.0
    %213 = vmatpush.msra.mxu0 0.0
    %214 = vmatpush.msra.mxu0 0.0
    %215 = vmatpush.msra.mxu0 0.0
    %216 = vmatpush.msra.mxu0 0.0
    %217 = vmatpush.msra.mxu0 0.0
    %218 = vmatpush.msra.mxu0 0.0
    %219 = vmatpush.msra.mxu0 0.0
    %220 = vmatpush.msra.mxu0 0.0
    %221 = vmatpush.msra.mxu0 %v90
    %222 = vmatmul.f32.gmra.mxu0 %v101
    %v223 = vpop.f32.mrf.mxu0
    %v224 = vadd.f32 %v95, %v223
    %225 = vmatmul.f32.gmra.mxu0 %v104
    %v226 = vpop.f32.mrf.mxu0
    %v227 = vadd.f32 %v95, %v226
    %228 = vmatmul.f32.gmra.mxu0 %v107
    %v229 = vpop.f32.mrf.mxu0
    %v230 = vadd.f32 %v95, %v229
    %231 = vmatmul.f32.gmra.mxu0 %v110
    %v232 = vpop.f32.mrf.mxu0
    %v233 = vadd.f32 %v95, %v232
    %234 = vmatmul.f32.gmra.mxu0 %v113
    %v235 = vpop.f32.mrf.mxu0
    %v236 = vadd.f32 %v95, %v235
    %237 = vmatmul.f32.gmra.mxu0 %v116
    %v238 = vpop.f32.mrf.mxu0
    %v239 = vadd.f32 %v95, %v238
    %240 = vmatmul.f32.gmra.mxu0 %v119
    %v241 = vpop.f32.mrf.mxu0
    %v242 = vadd.f32 %v95, %v241
    %243 = vmatmul.f32.gmra.mxu0 %v122
    %v244 = vpop.f32.mrf.mxu0
    %v245 = vadd.f32 %v95, %v244
    %246 = vdwg.mxu0
    %247 = vst [vmem:[#allocation2] sm:$0xff] %v142
    %248 = vst [vmem:[#allocation2 + $0x8] sm:$0xff] %v183
    %249 = vst [vmem:[#allocation2 + $0x10] sm:$0xff] %v224
    %250 = vst [vmem:[#allocation2 + $0x18] sm:$0xff] %v145
    %251 = vst [vmem:[#allocation2 + $0x20] sm:$0xff] %v186
    %252 = vst [vmem:[#allocation2 + $0x28] sm:$0xff] %v227
    %253 = vst [vmem:[#allocation2 + $0x30] sm:$0xff] %v148
    %254 = vst [vmem:[#allocation2 + $0x38] sm:$0xff] %v189
    %255 = vst [vmem:[#allocation2 + $0x40] sm:$0xff] %v230
    %256 = vst [vmem:[#allocation2 + $0x48] sm:$0xff] %v151
    %257 = vst [vmem:[#allocation2 + $0x50] sm:$0xff] %v192
    %258 = vst [vmem:[#allocation2 + $0x58] sm:$0xff] %v233
    %259 = vst [vmem:[#allocation2 + $0x60] sm:$0xff] %v154
    %260 = vst [vmem:[#allocation2 + $0x68] sm:$0xff] %v195
    %261 = vst [vmem:[#allocation2 + $0x70] sm:$0xff] %v236
    %262 = vst [vmem:[#allocation2 + $0x78] sm:$0xff] %v157
    %263 = vst [vmem:[#allocation2 + $0x80] sm:$0xff] %v198
    %264 = vst [vmem:[#allocation2 + $0x88] sm:$0xff] %v239
    %265 = vst [vmem:[#allocation2 + $0x90] sm:$0xff] %v160
    %266 = vst [vmem:[#allocation2 + $0x98] sm:$0xff] %v201
    %267 = vst [vmem:[#allocation2 + $0xa0] sm:$0xff] %v242
    %268 = vst [vmem:[#allocation2 + $0xa8] sm:$0xff] %v163
    %269 = vst [vmem:[#allocation2 + $0xb0] sm:$0xff] %v204
    %270 = vst [vmem:[#allocation2 + $0xb8] sm:$0xff] %v245
    %v271 = vld [vmem:[#allocation10] sm:$0xff]
    %v272 = vld [vmem:[#allocation10 + $0x8] sm:$0xff]
    %v273 = vld [vmem:[#allocation10 + $0x10] sm:$0xff]
    %v274 = vld [vmem:[#allocation10 + $0x18] sm:$0xff]
    %v275 = vld [vmem:[#allocation10 + $0x20] sm:$0xff]
    %v276 = vld [vmem:[#allocation10 + $0x28] sm:$0xff]
    %v277 = vld [vmem:[#allocation10 + $0x30] sm:$0xff]
    %v278 = vld [vmem:[#allocation10 + $0x38] sm:$0xff]
    %v279 = vld [vmem:[#allocation10 + $0x40] sm:$0xff]
    %v280 = vld [vmem:[#allocation10 + $0x48] sm:$0xff]
    %v281 = vld [vmem:[#allocation10 + $0x50] sm:$0xff]
    %v282 = vld [vmem:[#allocation10 + $0x58] sm:$0xff]
    %v283 = vld [vmem:[#allocation10 + $0x60] sm:$0xff]
    %v284 = vld [vmem:[#allocation10 + $0x68] sm:$0xff]
    %v285 = vld [vmem:[#allocation10 + $0x70] sm:$0xff]
    %v286 = vld [vmem:[#allocation10 + $0x78] sm:$0xff]
    %v287 = vld [vmem:[#allocation10 + $0x80] sm:$0xff]
    %v288 = vld [vmem:[#allocation10 + $0x88] sm:$0xff]
    %v289 = vld [vmem:[#allocation10 + $0x90] sm:$0xff]
    %v290 = vld [vmem:[#allocation10 + $0x98] sm:$0xff]
    %v291 = vld [vmem:[#allocation10 + $0xa0] sm:$0xff]
    %v292 = vld [vmem:[#allocation10 + $0xa8] sm:$0xff]
    %v293 = vld [vmem:[#allocation10 + $0xb0] sm:$0xff]
    %v294 = vld [vmem:[#allocation10 + $0xb8] sm:$0xff]
    %v295 = vld [vmem:[#allocation10 + $0xc0] sm:$0xff]
    %v296 = vld [vmem:[#allocation10 + $0xc8] sm:$0xff]
    %v297 = vld [vmem:[#allocation10 + $0xd0] sm:$0xff]
    %v298 = vld [vmem:[#allocation10 + $0xd8] sm:$0xff]
    %v299 = vld [vmem:[#allocation10 + $0xe0] sm:$0xff]
    %v300 = vld [vmem:[#allocation10 + $0xe8] sm:$0xff]
    %v301 = vld [vmem:[#allocation10 + $0xf0] sm:$0xff]
    %v302 = vld [vmem:[#allocation10 + $0xf8] sm:$0xff]
    %v303 = vld [vmem:[#allocation10 + $0x100] sm:$0xff]
    %v304 = vld [vmem:[#allocation10 + $0x108] sm:$0xff]
    %v305 = vld [vmem:[#allocation10 + $0x110] sm:$0xff]
    %v306 = vld [vmem:[#allocation10 + $0x118] sm:$0xff]
    %v307 = vld [vmem:[#allocation10 + $0x120] sm:$0xff]
    %v308 = vld [vmem:[#allocation10 + $0x128] sm:$0xff]
    %v309 = vld [vmem:[#allocation10 + $0x130] sm:$0xff]
    %v310 = vld [vmem:[#allocation10 + $0x138] sm:$0xff]
    %v311 = vld [vmem:[#allocation10 + $0x140] sm:$0xff]
    %v312 = vld [vmem:[#allocation10 + $0x148] sm:$0xff]
    %v313 = vld [vmem:[#allocation10 + $0x150] sm:$0xff]
    %v314 = vld [vmem:[#allocation10 + $0x158] sm:$0xff]
    %v315 = vld [vmem:[#allocation10 + $0x160] sm:$0xff]
    %v316 = vld [vmem:[#allocation10 + $0x168] sm:$0xff]
    %v317 = vld [vmem:[#allocation10 + $0x170] sm:$0xff]
    %v318 = vld [vmem:[#allocation10 + $0x178] sm:$0xff]
    %v319 = vld [vmem:[%s5] sm:$0x1]
    %v320 = vld [vmem:[#allocation11] sm:$0xff]
    %v321 = vld [vmem:[#allocation2] sm:$0xff]
    %v322 = vld [vmem:[#allocation2 + $0x8] sm:$0xff]
    %v323 = vld [vmem:[#allocation2 + $0x10] sm:$0xff]
    %324 = vmatpush.msra.mxu0 %v316
    %325 = vmatpush.msra.mxu0 %v313
    %326 = vmatpush.msra.mxu0 %v310
    %327 = vmatpush.msra.mxu0 %v307
    %328 = vmatpush.msra.mxu0 %v304
    %329 = vmatpush.msra.mxu0 %v301
    %330 = vmatpush.msra.mxu0 %v298
    %331 = vmatpush.msra.mxu0 %v295
    %332 = vmatpush.msra.mxu0 %v292
    %333 = vmatpush.msra.mxu0 %v289
    %334 = vmatpush.msra.mxu0 %v286
    %335 = vmatpush.msra.mxu0 %v283
    %336 = vmatpush.msra.mxu0 %v280
    %337 = vmatpush.msra.mxu0 %v277
    %338 = vmatpush.msra.mxu0 %v274
    %339 = vmatpush.msra.mxu0 %v271
    %340 = vmatmul.f32.gmra.mxu0 %v320
    %v341 = vpop.f32.mrf.mxu0
    %v342 = vadd.f32 0.0, %v341
    %343 = vdwg.mxu0
    %344 = vmatpush.msra.mxu0 %v317
    %345 = vmatpush.msra.mxu0 %v314
    %346 = vmatpush.msra.mxu0 %v311
    %347 = vmatpush.msra.mxu0 %v308
    %348 = vmatpush.msra.mxu0 %v305
    %349 = vmatpush.msra.mxu0 %v302
    %350 = vmatpush.msra.mxu0 %v299
    %351 = vmatpush.msra.mxu0 %v296
    %352 = vmatpush.msra.mxu0 %v293
    %353 = vmatpush.msra.mxu0 %v290
    %354 = vmatpush.msra.mxu0 %v287
    %355 = vmatpush.msra.mxu0 %v284
    %356 = vmatpush.msra.mxu0 %v281
    %357 = vmatpush.msra.mxu0 %v278
    %358 = vmatpush.msra.mxu0 %v275
    %359 = vmatpush.msra.mxu0 %v272
    %360 = vmatmul.f32.gmra.mxu0 %v320
    %v361 = vpop.f32.mrf.mxu0
    %v362 = vadd.f32 0.0, %v361
    %363 = vdwg.mxu0
    %364 = vmatpush.msra.mxu0 %v318
    %365 = vmatpush.msra.mxu0 %v315
    %366 = vmatpush.msra.mxu0 %v312
    %367 = vmatpush.msra.mxu0 %v309
    %368 = vmatpush.msra.mxu0 %v306
    %369 = vmatpush.msra.mxu0 %v303
    %370 = vmatpush.msra.mxu0 %v300
    %371 = vmatpush.msra.mxu0 %v297
    %372 = vmatpush.msra.mxu0 %v294
    %373 = vmatpush.msra.mxu0 %v291
    %374 = vmatpush.msra.mxu0 %v288
    %375 = vmatpush.msra.mxu0 %v285
    %376 = vmatpush.msra.mxu0 %v282
    %377 = vmatpush.msra.mxu0 %v279
    %378 = vmatpush.msra.mxu0 %v276
    %379 = vmatpush.msra.mxu0 %v273
    %380 = vmatmul.f32.gmra.mxu0 %v320
    %v381 = vpop.f32.mrf.mxu0
    %v382 = vadd.f32 0.0, %v381
    %383 = vdwg.mxu0
    %v384 = vadd.f32 %v322, %v362
    %v385 = vadd.f32 %v321, %v342
    %v386 = vxor.u32 %v385, 2147483648
    %v387 = vmul.f32 %v386, 1.442695
    %v388 = vpow.pop %v387
    %v389 = vadd.f32 %v388, 1.0
    %v390 = vrcp.pop %v389
    %v391 = vmul.f32 %v389, %v390
    %v392 = vsub.f32 1.0, %v391
    %v393 = vmul.f32 %v390, %v392
    %v394 = vadd.f32 %v390, %v393
    %vm395 = vweird.f32 %v389
    %vm396 = vweird.f32 %v390
    %vm397 = vmor %vm395, %vm396
    %v398 = vsel %vm397, %v390, %v394
    %v399 = vand.u32 2147483647, %v389
    %vm400 = vcmp.eq.f32.partialorder %v399, 8.507059e+37
    %v401 = vand.u32 %v389, 2147483648
    %v402 = vor.u32 1.1754944e-38, %v401
    %v403 = vsel %vm400, %v402, %v398
    %v404 = vmul.f32 1.0, %v403
    %v405 = vxor.u32 %v384, 2147483648
    %v406 = vmul.f32 %v405, 1.442695
    %v407 = vpow.pop %v406
    %v408 = vadd.f32 %v407, 1.0
    %v409 = vrcp.pop %v408
    %v410 = vmul.f32 %v408, %v409
    %v411 = vsub.f32 1.0, %v410
    %v412 = vmul.f32 %v409, %v411
    %v413 = vadd.f32 %v409, %v412
    %vm414 = vweird.f32 %v408
    %vm415 = vweird.f32 %v409
    %vm416 = vmor %vm414, %vm415
    %v417 = vsel %vm416, %v409, %v413
    %v418 = vand.u32 2147483647, %v408
    %vm419 = vcmp.eq.f32.partialorder %v418, 8.507059e+37
    %v420 = vand.u32 %v408, 2147483648
    %v421 = vor.u32 1.1754944e-38, %v420
    %v422 = vsel %vm419, %v421, %v417
    %v423 = vmul.f32 1.0, %v422
    %v425 = vperm.slane %v319, 0
    %v427 = vadd.f32 %v382, %v425
    %v428 = vmul.f32 %v404, %v427
    %v429 = vadd.f32 %v323, %v428
    %v430 = vtanh.pop %v429
    %v431 = vsub.f32 1.0, %v423
    %v432 = vmul.f32 %v431, %v430
    %v433 = vmul.f32 %v423, %v320
    %v434 = vadd.f32 %v432, %v433
    %s435 = scalar_lea.vmem [#allocation2], 24
    %v436 = vld [vmem:[%s435] sm:$0xff]
    %v437 = vld [vmem:[%s435 + $0x8] sm:$0xff]
    %v438 = vld [vmem:[%s435 + $0x10] sm:$0xff]
    %439 = vmatpush.msra.mxu0 %v316
    %440 = vmatpush.msra.mxu0 %v313
    %441 = vmatpush.msra.mxu0 %v310
    %442 = vmatpush.msra.mxu0 %v307
    %443 = vmatpush.msra.mxu0 %v304
    %444 = vmatpush.msra.mxu0 %v301
    %445 = vmatpush.msra.mxu0 %v298
    %446 = vmatpush.msra.mxu0 %v295
    %447 = vmatpush.msra.mxu0 %v292
    %448 = vmatpush.msra.mxu0 %v289
    %449 = vmatpush.msra.mxu0 %v286
    %450 = vmatpush.msra.mxu0 %v283
    %451 = vmatpush.msra.mxu0 %v280
    %452 = vmatpush.msra.mxu0 %v277
    %453 = vmatpush.msra.mxu0 %v274
    %454 = vmatpush.msra.mxu0 %v271
    %455 = vmatmul.f32.gmra.mxu0 %v434
    %v456 = vpop.f32.mrf.mxu0
    %v457 = vadd.f32 0.0, %v456
    %458 = vdwg.mxu0
    %459 = vmatpush.msra.mxu0 %v317
    %460 = vmatpush.msra.mxu0 %v314
    %461 = vmatpush.msra.mxu0 %v311
    %462 = vmatpush.msra.mxu0 %v308
    %463 = vmatpush.msra.mxu0 %v305
    %464 = vmatpush.msra.mxu0 %v302
    %465 = vmatpush.msra.mxu0 %v299
    %466 = vmatpush.msra.mxu0 %v296
    %467 = vmatpush.msra.mxu0 %v293
    %468 = vmatpush.msra.mxu0 %v290
    %469 = vmatpush.msra.mxu0 %v287
    %470 = vmatpush.msra.mxu0 %v284
    %471 = vmatpush.msra.mxu0 %v281
    %472 = vmatpush.msra.mxu0 %v278
    %473 = vmatpush.msra.mxu0 %v275
    %474 = vmatpush.msra.mxu0 %v272
    %475 = vmatmul.f32.gmra.mxu0 %v434
    %v476 = vpop.f32.mrf.mxu0
    %v477 = vadd.f32 0.0, %v476
    %478 = vdwg.mxu0
    %479 = vmatpush.msra.mxu0 %v318
    %480 = vmatpush.msra.mxu0 %v315
    %481 = vmatpush.msra.mxu0 %v312
    %482 = vmatpush.msra.mxu0 %v309
    %483 = vmatpush.msra.mxu0 %v306
    %484 = vmatpush.msra.mxu0 %v303
    %485 = vmatpush.msra.mxu0 %v300
    %486 = vmatpush.msra.mxu0 %v297
    %487 = vmatpush.msra.mxu0 %v294
    %488 = vmatpush.msra.mxu0 %v291
    %489 = vmatpush.msra.mxu0 %v288
    %490 = vmatpush.msra.mxu0 %v285
    %491 = vmatpush.msra.mxu0 %v282
    %492 = vmatpush.msra.mxu0 %v279
    %493 = vmatpush.msra.mxu0 %v276
    %494 = vmatpush.msra.mxu0 %v273
    %495 = vmatmul.f32.gmra.mxu0 %v434
    %v496 = vpop.f32.mrf.mxu0
    %v497 = vadd.f32 0.0, %v496
    %498 = vdwg.mxu0
    %v499 = vadd.f32 %v437, %v477
    %v500 = vadd.f32 %v436, %v457
    %v501 = vxor.u32 %v500, 2147483648
    %v502 = vmul.f32 %v501, 1.442695
    %v503 = vpow.pop %v502
    %v504 = vadd.f32 %v503, 1.0
    %v505 = vrcp.pop %v504
    %v506 = vmul.f32 %v504, %v505
    %v507 = vsub.f32 1.0, %v506
    %v508 = vmul.f32 %v505, %v507
    %v509 = vadd.f32 %v505, %v508
    %vm510 = vweird.f32 %v504
    %vm511 = vweird.f32 %v505
    %vm512 = vmor %vm510, %vm511
    %v513 = vsel %vm512, %v505, %v509
    %v514 = vand.u32 2147483647, %v504
    %vm515 = vcmp.eq.f32.partialorder %v514, 8.507059e+37
    %v516 = vand.u32 %v504, 2147483648
    %v517 = vor.u32 1.1754944e-38, %v516
    %v518 = vsel %vm515, %v517, %v513
    %v519 = vmul.f32 1.0, %v518
    %v520 = vxor.u32 %v499, 2147483648
    %v521 = vmul.f32 %v520, 1.442695
    %v522 = vpow.pop %v521
    %v523 = vadd.f32 %v522, 1.0
    %v524 = vrcp.pop %v523
    %v525 = vmul.f32 %v523, %v524
    %v526 = vsub.f32 1.0, %v525
    %v527 = vmul.f32 %v524, %v526
    %v528 = vadd.f32 %v524, %v527
    %vm529 = vweird.f32 %v523
    %vm530 = vweird.f32 %v524
    %vm531 = vmor %vm529, %vm530
    %v532 = vsel %vm531, %v524, %v528
    %v533 = vand.u32 2147483647, %v523
    %vm534 = vcmp.eq.f32.partialorder %v533, 8.507059e+37
    %v535 = vand.u32 %v523, 2147483648
    %v536 = vor.u32 1.1754944e-38, %v535
    %v537 = vsel %vm534, %v536, %v532
    %v538 = vmul.f32 1.0, %v537
    %v539 = vadd.f32 %v497, %v425
    %v540 = vmul.f32 %v519, %v539
    %v541 = vadd.f32 %v438, %v540
    %v542 = vtanh.pop %v541
    %v543 = vsub.f32 1.0, %v538
    %v544 = vmul.f32 %v543, %v542
    %v545 = vmul.f32 %v538, %v434
    %v546 = vadd.f32 %v544, %v545
    %s547 = scalar_lea.vmem [#allocation2], 48
    %v548 = vld [vmem:[%s547] sm:$0xff]
    %v549 = vld [vmem:[%s547 + $0x8] sm:$0xff]
    %v550 = vld [vmem:[%s547 + $0x10] sm:$0xff]
    %551 = vmatpush.msra.mxu0 %v316
    %552 = vmatpush.msra.mxu0 %v313
    %553 = vmatpush.msra.mxu0 %v310
    %554 = vmatpush.msra.mxu0 %v307
    %555 = vmatpush.msra.mxu0 %v304
    %556 = vmatpush.msra.mxu0 %v301
    %557 = vmatpush.msra.mxu0 %v298
    %558 = vmatpush.msra.mxu0 %v295
    %559 = vmatpush.msra.mxu0 %v292
    %560 = vmatpush.msra.mxu0 %v289
    %561 = vmatpush.msra.mxu0 %v286
    %562 = vmatpush.msra.mxu0 %v283
    %563 = vmatpush.msra.mxu0 %v280
    %564 = vmatpush.msra.mxu0 %v277
    %565 = vmatpush.msra.mxu0 %v274
    %566 = vmatpush.msra.mxu0 %v271
    %567 = vmatmul.f32.gmra.mxu0 %v546
    %v568 = vpop.f32.mrf.mxu0
    %v569 = vadd.f32 0.0, %v568
    %570 = vdwg.mxu0
    %571 = vmatpush.msra.mxu0 %v317
    %572 = vmatpush.msra.mxu0 %v314
    %573 = vmatpush.msra.mxu0 %v311
    %574 = vmatpush.msra.mxu0 %v308
    %575 = vmatpush.msra.mxu0 %v305
    %576 = vmatpush.msra.mxu0 %v302
    %577 = vmatpush.msra.mxu0 %v299
    %578 = vmatpush.msra.mxu0 %v296
    %579 = vmatpush.msra.mxu0 %v293
    %580 = vmatpush.msra.mxu0 %v290
    %581 = vmatpush.msra.mxu0 %v287
    %582 = vmatpush.msra.mxu0 %v284
    %583 = vmatpush.msra.mxu0 %v281
    %584 = vmatpush.msra.mxu0 %v278
    %585 = vmatpush.msra.mxu0 %v275
    %586 = vmatpush.msra.mxu0 %v272
    %587 = vmatmul.f32.gmra.mxu0 %v546
    %v588 = vpop.f32.mrf.mxu0
    %v589 = vadd.f32 0.0, %v588
    %590 = vdwg.mxu0
    %591 = vmatpush.msra.mxu0 %v318
    %592 = vmatpush.msra.mxu0 %v315
    %593 = vmatpush.msra.mxu0 %v312
    %594 = vmatpush.msra.mxu0 %v309
    %595 = vmatpush.msra.mxu0 %v306
    %596 = vmatpush.msra.mxu0 %v303
    %597 = vmatpush.msra.mxu0 %v300
    %598 = vmatpush.msra.mxu0 %v297
    %599 = vmatpush.msra.mxu0 %v294
    %600 = vmatpush.msra.mxu0 %v291
    %601 = vmatpush.msra.mxu0 %v288
    %602 = vmatpush.msra.mxu0 %v285
    %603 = vmatpush.msra.mxu0 %v282
    %604 = vmatpush.msra.mxu0 %v279
    %605 = vmatpush.msra.mxu0 %v276
    %606 = vmatpush.msra.mxu0 %v273
    %607 = vmatmul.f32.gmra.mxu0 %v546
    %v608 = vpop.f32.mrf.mxu0
    %v609 = vadd.f32 0.0, %v608
    %610 = vdwg.mxu0
    %v611 = vadd.f32 %v549, %v589
    %v612 = vadd.f32 %v548, %v569
    %v613 = vxor.u32 %v612, 2147483648
    %v614 = vmul.f32 %v613, 1.442695
    %v615 = vpow.pop %v614
    %v616 = vadd.f32 %v615, 1.0
    %v617 = vrcp.pop %v616
    %v618 = vmul.f32 %v616, %v617
    %v619 = vsub.f32 1.0, %v618
    %v620 = vmul.f32 %v617, %v619
    %v621 = vadd.f32 %v617, %v620
    %vm622 = vweird.f32 %v616
    %vm623 = vweird.f32 %v617
    %vm624 = vmor %vm622, %vm623
    %v625 = vsel %vm624, %v617, %v621
    %v626 = vand.u32 2147483647, %v616
    %vm627 = vcmp.eq.f32.partialorder %v626, 8.507059e+37
    %v628 = vand.u32 %v616, 2147483648
    %v629 = vor.u32 1.1754944e-38, %v628
    %v630 = vsel %vm627, %v629, %v625
    %v631 = vmul.f32 1.0, %v630
    %v632 = vxor.u32 %v611, 2147483648
    %v633 = vmul.f32 %v632, 1.442695
    %v634 = vpow.pop %v633
    %v635 = vadd.f32 %v634, 1.0
    %v636 = vrcp.pop %v635
    %v637 = vmul.f32 %v635, %v636
    %v638 = vsub.f32 1.0, %v637
    %v639 = vmul.f32 %v636, %v638
    %v640 = vadd.f32 %v636, %v639
    %vm641 = vweird.f32 %v635
    %vm642 = vweird.f32 %v636
    %vm643 = vmor %vm641, %vm642
    %v644 = vsel %vm643, %v636, %v640
    %v645 = vand.u32 2147483647, %v635
    %vm646 = vcmp.eq.f32.partialorder %v645, 8.507059e+37
    %v647 = vand.u32 %v635, 2147483648
    %v648 = vor.u32 1.1754944e-38, %v647
    %v649 = vsel %vm646, %v648, %v644
    %v650 = vmul.f32 1.0, %v649
    %v651 = vadd.f32 %v609, %v425
    %v652 = vmul.f32 %v631, %v651
    %v653 = vadd.f32 %v550, %v652
    %v654 = vtanh.pop %v653
    %v655 = vsub.f32 1.0, %v650
    %v656 = vmul.f32 %v655, %v654
    %v657 = vmul.f32 %v650, %v546
    %v658 = vadd.f32 %v656, %v657
    %s659 = scalar_lea.vmem [#allocation2], 72
    %v660 = vld [vmem:[%s659] sm:$0xff]
    %v661 = vld [vmem:[%s659 + $0x8] sm:$0xff]
    %v662 = vld [vmem:[%s659 + $0x10] sm:$0xff]
    %663 = vmatpush.msra.mxu0 %v316
    %664 = vmatpush.msra.mxu0 %v313
    %665 = vmatpush.msra.mxu0 %v310
    %666 = vmatpush.msra.mxu0 %v307
    %667 = vmatpush.msra.mxu0 %v304
    %668 = vmatpush.msra.mxu0 %v301
    %669 = vmatpush.msra.mxu0 %v298
    %670 = vmatpush.msra.mxu0 %v295
    %671 = vmatpush.msra.mxu0 %v292
    %672 = vmatpush.msra.mxu0 %v289
    %673 = vmatpush.msra.mxu0 %v286
    %674 = vmatpush.msra.mxu0 %v283
    %675 = vmatpush.msra.mxu0 %v280
    %676 = vmatpush.msra.mxu0 %v277
    %677 = vmatpush.msra.mxu0 %v274
    %678 = vmatpush.msra.mxu0 %v271
    %679 = vmatmul.f32.gmra.mxu0 %v658
    %v680 = vpop.f32.mrf.mxu0
    %v681 = vadd.f32 0.0, %v680
    %682 = vdwg.mxu0
    %683 = vmatpush.msra.mxu0 %v317
    %684 = vmatpush.msra.mxu0 %v314
    %685 = vmatpush.msra.mxu0 %v311
    %686 = vmatpush.msra.mxu0 %v308
    %687 = vmatpush.msra.mxu0 %v305
    %688 = vmatpush.msra.mxu0 %v302
    %689 = vmatpush.msra.mxu0 %v299
    %690 = vmatpush.msra.mxu0 %v296
    %691 = vmatpush.msra.mxu0 %v293
    %692 = vmatpush.msra.mxu0 %v290
    %693 = vmatpush.msra.mxu0 %v287
    %694 = vmatpush.msra.mxu0 %v284
    %695 = vmatpush.msra.mxu0 %v281
    %696 = vmatpush.msra.mxu0 %v278
    %697 = vmatpush.msra.mxu0 %v275
    %698 = vmatpush.msra.mxu0 %v272
    %699 = vmatmul.f32.gmra.mxu0 %v658
    %v700 = vpop.f32.mrf.mxu0
    %v701 = vadd.f32 0.0, %v700
    %702 = vdwg.mxu0
    %703 = vmatpush.msra.mxu0 %v318
    %704 = vmatpush.msra.mxu0 %v315
    %705 = vmatpush.msra.mxu0 %v312
    %706 = vmatpush.msra.mxu0 %v309
    %707 = vmatpush.msra.mxu0 %v306
    %708 = vmatpush.msra.mxu0 %v303
    %709 = vmatpush.msra.mxu0 %v300
    %710 = vmatpush.msra.mxu0 %v297
    %711 = vmatpush.msra.mxu0 %v294
    %712 = vmatpush.msra.mxu0 %v291
    %713 = vmatpush.msra.mxu0 %v288
    %714 = vmatpush.msra.mxu0 %v285
    %715 = vmatpush.msra.mxu0 %v282
    %716 = vmatpush.msra.mxu0 %v279
    %717 = vmatpush.msra.mxu0 %v276
    %718 = vmatpush.msra.mxu0 %v273
    %719 = vmatmul.f32.gmra.mxu0 %v658
    %v720 = vpop.f32.mrf.mxu0
    %v721 = vadd.f32 0.0, %v720
    %722 = vdwg.mxu0
    %v723 = vadd.f32 %v661, %v701
    %v724 = vadd.f32 %v660, %v681
    %v725 = vxor.u32 %v724, 2147483648
    %v726 = vmul.f32 %v725, 1.442695
    %v727 = vpow.pop %v726
    %v728 = vadd.f32 %v727, 1.0
    %v729 = vrcp.pop %v728
    %v730 = vmul.f32 %v728, %v729
    %v731 = vsub.f32 1.0, %v730
    %v732 = vmul.f32 %v729, %v731
    %v733 = vadd.f32 %v729, %v732
    %vm734 = vweird.f32 %v728
    %vm735 = vweird.f32 %v729
    %vm736 = vmor %vm734, %vm735
    %v737 = vsel %vm736, %v729, %v733
    %v738 = vand.u32 2147483647, %v728
    %vm739 = vcmp.eq.f32.partialorder %v738, 8.507059e+37
    %v740 = vand.u32 %v728, 2147483648
    %v741 = vor.u32 1.1754944e-38, %v740
    %v742 = vsel %vm739, %v741, %v737
    %v743 = vmul.f32 1.0, %v742
    %v744 = vxor.u32 %v723, 2147483648
    %v745 = vmul.f32 %v744, 1.442695
    %v746 = vpow.pop %v745
    %v747 = vadd.f32 %v746, 1.0
    %v748 = vrcp.pop %v747
    %v749 = vmul.f32 %v747, %v748
    %v750 = vsub.f32 1.0, %v749
    %v751 = vmul.f32 %v748, %v750
    %v752 = vadd.f32 %v748, %v751
    %vm753 = vweird.f32 %v747
    %vm754 = vweird.f32 %v748
    %vm755 = vmor %vm753, %vm754
    %v756 = vsel %vm755, %v748, %v752
    %v757 = vand.u32 2147483647, %v747
    %vm758 = vcmp.eq.f32.partialorder %v757, 8.507059e+37
    %v759 = vand.u32 %v747, 2147483648
    %v760 = vor.u32 1.1754944e-38, %v759
    %v761 = vsel %vm758, %v760, %v756
    %v762 = vmul.f32 1.0, %v761
    %v763 = vadd.f32 %v721, %v425
    %v764 = vmul.f32 %v743, %v763
    %v765 = vadd.f32 %v662, %v764
    %v766 = vtanh.pop %v765
    %v767 = vsub.f32 1.0, %v762
    %v768 = vmul.f32 %v767, %v766
    %v769 = vmul.f32 %v762, %v658
    %v770 = vadd.f32 %v768, %v769
    %s771 = scalar_lea.vmem [#allocation2], 96
    %v772 = vld [vmem:[%s771] sm:$0xff]
    %v773 = vld [vmem:[%s771 + $0x8] sm:$0xff]
    %v774 = vld [vmem:[%s771 + $0x10] sm:$0xff]
    %775 = vmatpush.msra.mxu0 %v316
    %776 = vmatpush.msra.mxu0 %v313
    %777 = vmatpush.msra.mxu0 %v310
    %778 = vmatpush.msra.mxu0 %v307
    %779 = vmatpush.msra.mxu0 %v304
    %780 = vmatpush.msra.mxu0 %v301
    %781 = vmatpush.msra.mxu0 %v298
    %782 = vmatpush.msra.mxu0 %v295
    %783 = vmatpush.msra.mxu0 %v292
    %784 = vmatpush.msra.mxu0 %v289
    %785 = vmatpush.msra.mxu0 %v286
    %786 = vmatpush.msra.mxu0 %v283
    %787 = vmatpush.msra.mxu0 %v280
    %788 = vmatpush.msra.mxu0 %v277
    %789 = vmatpush.msra.mxu0 %v274
    %790 = vmatpush.msra.mxu0 %v271
    %791 = vmatmul.f32.gmra.mxu0 %v770
    %v792 = vpop.f32.mrf.mxu0
    %v793 = vadd.f32 0.0, %v792
    %794 = vdwg.mxu0
    %795 = vmatpush.msra.mxu0 %v317
    %796 = vmatpush.msra.mxu0 %v314
    %797 = vmatpush.msra.mxu0 %v311
    %798 = vmatpush.msra.mxu0 %v308
    %799 = vmatpush.msra.mxu0 %v305
    %800 = vmatpush.msra.mxu0 %v302
    %801 = vmatpush.msra.mxu0 %v299
    %802 = vmatpush.msra.mxu0 %v296
    %803 = vmatpush.msra.mxu0 %v293
    %804 = vmatpush.msra.mxu0 %v290
    %805 = vmatpush.msra.mxu0 %v287
    %806 = vmatpush.msra.mxu0 %v284
    %807 = vmatpush.msra.mxu0 %v281
    %808 = vmatpush.msra.mxu0 %v278
    %809 = vmatpush.msra.mxu0 %v275
    %810 = vmatpush.msra.mxu0 %v272
    %811 = vmatmul.f32.gmra.mxu0 %v770
    %v812 = vpop.f32.mrf.mxu0
    %v813 = vadd.f32 0.0, %v812
    %814 = vdwg.mxu0
    %815 = vmatpush.msra.mxu0 %v318
    %816 = vmatpush.msra.mxu0 %v315
    %817 = vmatpush.msra.mxu0 %v312
    %818 = vmatpush.msra.mxu0 %v309
    %819 = vmatpush.msra.mxu0 %v306
    %820 = vmatpush.msra.mxu0 %v303
    %821 = vmatpush.msra.mxu0 %v300
    %822 = vmatpush.msra.mxu0 %v297
    %823 = vmatpush.msra.mxu0 %v294
    %824 = vmatpush.msra.mxu0 %v291
    %825 = vmatpush.msra.mxu0 %v288
    %826 = vmatpush.msra.mxu0 %v285
    %827 = vmatpush.msra.mxu0 %v282
    %828 = vmatpush.msra.mxu0 %v279
    %829 = vmatpush.msra.mxu0 %v276
    %830 = vmatpush.msra.mxu0 %v273
    %831 = vmatmul.f32.gmra.mxu0 %v770
    %v832 = vpop.f32.mrf.mxu0
    %v833 = vadd.f32 0.0, %v832
    %834 = vdwg.mxu0
    %v835 = vadd.f32 %v773, %v813
    %v836 = vadd.f32 %v772, %v793
    %v837 = vxor.u32 %v836, 2147483648
    %v838 = vmul.f32 %v837, 1.442695
    %v839 = vpow.pop %v838
    %v840 = vadd.f32 %v839, 1.0
    %v841 = vrcp.pop %v840
    %v842 = vmul.f32 %v840, %v841
    %v843 = vsub.f32 1.0, %v842
    %v844 = vmul.f32 %v841, %v843
    %v845 = vadd.f32 %v841, %v844
    %vm846 = vweird.f32 %v840
    %vm847 = vweird.f32 %v841
    %vm848 = vmor %vm846, %vm847
    %v849 = vsel %vm848, %v841, %v845
    %v850 = vand.u32 2147483647, %v840
    %vm851 = vcmp.eq.f32.partialorder %v850, 8.507059e+37
    %v852 = vand.u32 %v840, 2147483648
    %v853 = vor.u32 1.1754944e-38, %v852
    %v854 = vsel %vm851, %v853, %v849
    %v855 = vmul.f32 1.0, %v854
    %v856 = vxor.u32 %v835, 2147483648
    %v857 = vmul.f32 %v856, 1.442695
    %v858 = vpow.pop %v857
    %v859 = vadd.f32 %v858, 1.0
    %v860 = vrcp.pop %v859
    %v861 = vmul.f32 %v859, %v860
    %v862 = vsub.f32 1.0, %v861
    %v863 = vmul.f32 %v860, %v862
    %v864 = vadd.f32 %v860, %v863
    %vm865 = vweird.f32 %v859
    %vm866 = vweird.f32 %v860
    %vm867 = vmor %vm865, %vm866
    %v868 = vsel %vm867, %v860, %v864
    %v869 = vand.u32 2147483647, %v859
    %vm870 = vcmp.eq.f32.partialorder %v869, 8.507059e+37
    %v871 = vand.u32 %v859, 2147483648
    %v872 = vor.u32 1.1754944e-38, %v871
    %v873 = vsel %vm870, %v872, %v868
    %v874 = vmul.f32 1.0, %v873
    %v875 = vadd.f32 %v833, %v425
    %v876 = vmul.f32 %v855, %v875
    %v877 = vadd.f32 %v774, %v876
    %v878 = vtanh.pop %v877
    %v879 = vsub.f32 1.0, %v874
    %v880 = vmul.f32 %v879, %v878
    %v881 = vmul.f32 %v874, %v770
    %v882 = vadd.f32 %v880, %v881
    %s883 = scalar_lea.vmem [#allocation2], 120
    %v884 = vld [vmem:[%s883] sm:$0xff]
    %v885 = vld [vmem:[%s883 + $0x8] sm:$0xff]
    %v886 = vld [vmem:[%s883 + $0x10] sm:$0xff]
    %887 = vmatpush.msra.mxu0 %v316
    %888 = vmatpush.msra.mxu0 %v313
    %889 = vmatpush.msra.mxu0 %v310
    %890 = vmatpush.msra.mxu0 %v307
    %891 = vmatpush.msra.mxu0 %v304
    %892 = vmatpush.msra.mxu0 %v301
    %893 = vmatpush.msra.mxu0 %v298
    %894 = vmatpush.msra.mxu0 %v295
    %895 = vmatpush.msra.mxu0 %v292
    %896 = vmatpush.msra.mxu0 %v289
    %897 = vmatpush.msra.mxu0 %v286
    %898 = vmatpush.msra.mxu0 %v283
    %899 = vmatpush.msra.mxu0 %v280
    %900 = vmatpush.msra.mxu0 %v277
    %901 = vmatpush.msra.mxu0 %v274
    %902 = vmatpush.msra.mxu0 %v271
    %903 = vmatmul.f32.gmra.mxu0 %v882
    %v904 = vpop.f32.mrf.mxu0
    %v905 = vadd.f32 0.0, %v904
    %906 = vdwg.mxu0
    %907 = vmatpush.msra.mxu0 %v317
    %908 = vmatpush.msra.mxu0 %v314
    %909 = vmatpush.msra.mxu0 %v311
    %910 = vmatpush.msra.mxu0 %v308
    %911 = vmatpush.msra.mxu0 %v305
    %912 = vmatpush.msra.mxu0 %v302
    %913 = vmatpush.msra.mxu0 %v299
    %914 = vmatpush.msra.mxu0 %v296
    %915 = vmatpush.msra.mxu0 %v293
    %916 = vmatpush.msra.mxu0 %v290
    %917 = vmatpush.msra.mxu0 %v287
    %918 = vmatpush.msra.mxu0 %v284
    %919 = vmatpush.msra.mxu0 %v281
    %920 = vmatpush.msra.mxu0 %v278
    %921 = vmatpush.msra.mxu0 %v275
    %922 = vmatpush.msra.mxu0 %v272
    %923 = vmatmul.f32.gmra.mxu0 %v882
    %v924 = vpop.f32.mrf.mxu0
    %v925 = vadd.f32 0.0, %v924
    %926 = vdwg.mxu0
    %927 = vmatpush.msra.mxu0 %v318
    %928 = vmatpush.msra.mxu0 %v315
    %929 = vmatpush.msra.mxu0 %v312
    %930 = vmatpush.msra.mxu0 %v309
    %931 = vmatpush.msra.mxu0 %v306
    %932 = vmatpush.msra.mxu0 %v303
    %933 = vmatpush.msra.mxu0 %v300
    %934 = vmatpush.msra.mxu0 %v297
    %935 = vmatpush.msra.mxu0 %v294
    %936 = vmatpush.msra.mxu0 %v291
    %937 = vmatpush.msra.mxu0 %v288
    %938 = vmatpush.msra.mxu0 %v285
    %939 = vmatpush.msra.mxu0 %v282
    %940 = vmatpush.msra.mxu0 %v279
    %941 = vmatpush.msra.mxu0 %v276
    %942 = vmatpush.msra.mxu0 %v273
    %943 = vmatmul.f32.gmra.mxu0 %v882
    %v944 = vpop.f32.mrf.mxu0
    %v945 = vadd.f32 0.0, %v944
    %946 = vdwg.mxu0
    %v947 = vadd.f32 %v885, %v925
    %v948 = vadd.f32 %v884, %v905
    %v949 = vxor.u32 %v948, 2147483648
    %v950 = vmul.f32 %v949, 1.442695
    %v951 = vpow.pop %v950
    %v952 = vadd.f32 %v951, 1.0
    %v953 = vrcp.pop %v952
    %v954 = vmul.f32 %v952, %v953
    %v955 = vsub.f32 1.0, %v954
    %v956 = vmul.f32 %v953, %v955
    %v957 = vadd.f32 %v953, %v956
    %vm958 = vweird.f32 %v952
    %vm959 = vweird.f32 %v953
    %vm960 = vmor %vm958, %vm959
    %v961 = vsel %vm960, %v953, %v957
    %v962 = vand.u32 2147483647, %v952
    %vm963 = vcmp.eq.f32.partialorder %v962, 8.507059e+37
    %v964 = vand.u32 %v952, 2147483648
    %v965 = vor.u32 1.1754944e-38, %v964
    %v966 = vsel %vm963, %v965, %v961
    %v967 = vmul.f32 1.0, %v966
    %v968 = vxor.u32 %v947, 2147483648
    %v969 = vmul.f32 %v968, 1.442695
    %v970 = vpow.pop %v969
    %v971 = vadd.f32 %v970, 1.0
    %v972 = vrcp.pop %v971
    %v973 = vmul.f32 %v971, %v972
    %v974 = vsub.f32 1.0, %v973
    %v975 = vmul.f32 %v972, %v974
    %v976 = vadd.f32 %v972, %v975
    %vm977 = vweird.f32 %v971
    %vm978 = vweird.f32 %v972
    %vm979 = vmor %vm977, %vm978
    %v980 = vsel %vm979, %v972, %v976
    %v981 = vand.u32 2147483647, %v971
    %vm982 = vcmp.eq.f32.partialorder %v981, 8.507059e+37
    %v983 = vand.u32 %v971, 2147483648
    %v984 = vor.u32 1.1754944e-38, %v983
    %v985 = vsel %vm982, %v984, %v980
    %v986 = vmul.f32 1.0, %v985
    %v987 = vadd.f32 %v945, %v425
    %v988 = vmul.f32 %v967, %v987
    %v989 = vadd.f32 %v886, %v988
    %v990 = vtanh.pop %v989
    %v991 = vsub.f32 1.0, %v986
    %v992 = vmul.f32 %v991, %v990
    %v993 = vmul.f32 %v986, %v882
    %v994 = vadd.f32 %v992, %v993
    %s995 = scalar_lea.vmem [#allocation2], 144
    %v996 = vld [vmem:[%s995] sm:$0xff]
    %v997 = vld [vmem:[%s995 + $0x8] sm:$0xff]
    %v998 = vld [vmem:[%s995 + $0x10] sm:$0xff]
    %999 = vmatpush.msra.mxu0 %v316
    %1000 = vmatpush.msra.mxu0 %v313
    %1001 = vmatpush.msra.mxu0 %v310
    %1002 = vmatpush.msra.mxu0 %v307
    %1003 = vmatpush.msra.mxu0 %v304
    %1004 = vmatpush.msra.mxu0 %v301
    %1005 = vmatpush.msra.mxu0 %v298
    %1006 = vmatpush.msra.mxu0 %v295
    %1007 = vmatpush.msra.mxu0 %v292
    %1008 = vmatpush.msra.mxu0 %v289
    %1009 = vmatpush.msra.mxu0 %v286
    %1010 = vmatpush.msra.mxu0 %v283
    %1011 = vmatpush.msra.mxu0 %v280
    %1012 = vmatpush.msra.mxu0 %v277
    %1013 = vmatpush.msra.mxu0 %v274
    %1014 = vmatpush.msra.mxu0 %v271
    %1015 = vmatmul.f32.gmra.mxu0 %v994
    %v1016 = vpop.f32.mrf.mxu0
    %v1017 = vadd.f32 0.0, %v1016
    %1018 = vdwg.mxu0
    %1019 = vmatpush.msra.mxu0 %v317
    %1020 = vmatpush.msra.mxu0 %v314
    %1021 = vmatpush.msra.mxu0 %v311
    %1022 = vmatpush.msra.mxu0 %v308
    %1023 = vmatpush.msra.mxu0 %v305
    %1024 = vmatpush.msra.mxu0 %v302
    %1025 = vmatpush.msra.mxu0 %v299
    %1026 = vmatpush.msra.mxu0 %v296
    %1027 = vmatpush.msra.mxu0 %v293
    %1028 = vmatpush.msra.mxu0 %v290
    %1029 = vmatpush.msra.mxu0 %v287
    %1030 = vmatpush.msra.mxu0 %v284
    %1031 = vmatpush.msra.mxu0 %v281
    %1032 = vmatpush.msra.mxu0 %v278
    %1033 = vmatpush.msra.mxu0 %v275
    %1034 = vmatpush.msra.mxu0 %v272
    %1035 = vmatmul.f32.gmra.mxu0 %v994
    %v1036 = vpop.f32.mrf.mxu0
    %v1037 = vadd.f32 0.0, %v1036
    %1038 = vdwg.mxu0
    %1039 = vmatpush.msra.mxu0 %v318
    %1040 = vmatpush.msra.mxu0 %v315
    %1041 = vmatpush.msra.mxu0 %v312
    %1042 = vmatpush.msra.mxu0 %v309
    %1043 = vmatpush.msra.mxu0 %v306
    %1044 = vmatpush.msra.mxu0 %v303
    %1045 = vmatpush.msra.mxu0 %v300
    %1046 = vmatpush.msra.mxu0 %v297
    %1047 = vmatpush.msra.mxu0 %v294
    %1048 = vmatpush.msra.mxu0 %v291
    %1049 = vmatpush.msra.mxu0 %v288
    %1050 = vmatpush.msra.mxu0 %v285
    %1051 = vmatpush.msra.mxu0 %v282
    %1052 = vmatpush.msra.mxu0 %v279
    %1053 = vmatpush.msra.mxu0 %v276
    %1054 = vmatpush.msra.mxu0 %v273
    %1055 = vmatmul.f32.gmra.mxu0 %v994
    %v1056 = vpop.f32.mrf.mxu0
    %v1057 = vadd.f32 0.0, %v1056
    %1058 = vdwg.mxu0
    %v1059 = vadd.f32 %v997, %v1037
    %v1060 = vadd.f32 %v996, %v1017
    %v1061 = vxor.u32 %v1060, 2147483648
    %v1062 = vmul.f32 %v1061, 1.442695
    %v1063 = vpow.pop %v1062
    %v1064 = vadd.f32 %v1063, 1.0
    %v1065 = vrcp.pop %v1064
    %v1066 = vmul.f32 %v1064, %v1065
    %v1067 = vsub.f32 1.0, %v1066
    %v1068 = vmul.f32 %v1065, %v1067
    %v1069 = vadd.f32 %v1065, %v1068
    %vm1070 = vweird.f32 %v1064
    %vm1071 = vweird.f32 %v1065
    %vm1072 = vmor %vm1070, %vm1071
    %v1073 = vsel %vm1072, %v1065, %v1069
    %v1074 = vand.u32 2147483647, %v1064
    %vm1075 = vcmp.eq.f32.partialorder %v1074, 8.507059e+37
    %v1076 = vand.u32 %v1064, 2147483648
    %v1077 = vor.u32 1.1754944e-38, %v1076
    %v1078 = vsel %vm1075, %v1077, %v1073
    %v1079 = vmul.f32 1.0, %v1078
    %v1080 = vxor.u32 %v1059, 2147483648
    %v1081 = vmul.f32 %v1080, 1.442695
    %v1082 = vpow.pop %v1081
    %v1083 = vadd.f32 %v1082, 1.0
    %v1084 = vrcp.pop %v1083
    %v1085 = vmul.f32 %v1083, %v1084
    %v1086 = vsub.f32 1.0, %v1085
    %v1087 = vmul.f32 %v1084, %v1086
    %v1088 = vadd.f32 %v1084, %v1087
    %vm1089 = vweird.f32 %v1083
    %vm1090 = vweird.f32 %v1084
    %vm1091 = vmor %vm1089, %vm1090
    %v1092 = vsel %vm1091, %v1084, %v1088
    %v1093 = vand.u32 2147483647, %v1083
    %vm1094 = vcmp.eq.f32.partialorder %v1093, 8.507059e+37
    %v1095 = vand.u32 %v1083, 2147483648
    %v1096 = vor.u32 1.1754944e-38, %v1095
    %v1097 = vsel %vm1094, %v1096, %v1092
    %v1098 = vmul.f32 1.0, %v1097
    %v1099 = vadd.f32 %v1057, %v425
    %v1100 = vmul.f32 %v1079, %v1099
    %v1101 = vadd.f32 %v998, %v1100
    %v1102 = vtanh.pop %v1101
    %v1103 = vsub.f32 1.0, %v1098
    %v1104 = vmul.f32 %v1103, %v1102
    %v1105 = vmul.f32 %v1098, %v994
    %v1106 = vadd.f32 %v1104, %v1105
    %s1107 = scalar_lea.vmem [#allocation2], 168
    %v1108 = vld [vmem:[%s1107] sm:$0xff]
    %v1109 = vld [vmem:[%s1107 + $0x8] sm:$0xff]
    %v1110 = vld [vmem:[%s1107 + $0x10] sm:$0xff]
    %1111 = vmatpush.msra.mxu0 %v316
    %1112 = vmatpush.msra.mxu0 %v313
    %1113 = vmatpush.msra.mxu0 %v310
    %1114 = vmatpush.msra.mxu0 %v307
    %1115 = vmatpush.msra.mxu0 %v304
    %1116 = vmatpush.msra.mxu0 %v301
    %1117 = vmatpush.msra.mxu0 %v298
    %1118 = vmatpush.msra.mxu0 %v295
    %1119 = vmatpush.msra.mxu0 %v292
    %1120 = vmatpush.msra.mxu0 %v289
    %1121 = vmatpush.msra.mxu0 %v286
    %1122 = vmatpush.msra.mxu0 %v283
    %1123 = vmatpush.msra.mxu0 %v280
    %1124 = vmatpush.msra.mxu0 %v277
    %1125 = vmatpush.msra.mxu0 %v274
    %1126 = vmatpush.msra.mxu0 %v271
    %1127 = vmatmul.f32.gmra.mxu0 %v1106
    %v1128 = vpop.f32.mrf.mxu0
    %v1129 = vadd.f32 0.0, %v1128
    %1130 = vdwg.mxu0
    %1131 = vmatpush.msra.mxu0 %v317
    %1132 = vmatpush.msra.mxu0 %v314
    %1133 = vmatpush.msra.mxu0 %v311
    %1134 = vmatpush.msra.mxu0 %v308
    %1135 = vmatpush.msra.mxu0 %v305
    %1136 = vmatpush.msra.mxu0 %v302
    %1137 = vmatpush.msra.mxu0 %v299
    %1138 = vmatpush.msra.mxu0 %v296
    %1139 = vmatpush.msra.mxu0 %v293
    %1140 = vmatpush.msra.mxu0 %v290
    %1141 = vmatpush.msra.mxu0 %v287
    %1142 = vmatpush.msra.mxu0 %v284
    %1143 = vmatpush.msra.mxu0 %v281
    %1144 = vmatpush.msra.mxu0 %v278
    %1145 = vmatpush.msra.mxu0 %v275
    %1146 = vmatpush.msra.mxu0 %v272
    %1147 = vmatmul.f32.gmra.mxu0 %v1106
    %v1148 = vpop.f32.mrf.mxu0
    %v1149 = vadd.f32 0.0, %v1148
    %1150 = vdwg.mxu0
    %1151 = vmatpush.msra.mxu0 %v318
    %1152 = vmatpush.msra.mxu0 %v315
    %1153 = vmatpush.msra.mxu0 %v312
    %1154 = vmatpush.msra.mxu0 %v309
    %1155 = vmatpush.msra.mxu0 %v306
    %1156 = vmatpush.msra.mxu0 %v303
    %1157 = vmatpush.msra.mxu0 %v300
    %1158 = vmatpush.msra.mxu0 %v297
    %1159 = vmatpush.msra.mxu0 %v294
    %1160 = vmatpush.msra.mxu0 %v291
    %1161 = vmatpush.msra.mxu0 %v288
    %1162 = vmatpush.msra.mxu0 %v285
    %1163 = vmatpush.msra.mxu0 %v282
    %1164 = vmatpush.msra.mxu0 %v279
    %1165 = vmatpush.msra.mxu0 %v276
    %1166 = vmatpush.msra.mxu0 %v273
    %1167 = vmatmul.f32.gmra.mxu0 %v1106
    %v1168 = vpop.f32.mrf.mxu0
    %v1169 = vadd.f32 0.0, %v1168
    %1170 = vdwg.mxu0
    %v1171 = vadd.f32 %v1109, %v1149
    %v1172 = vadd.f32 %v1108, %v1129
    %v1173 = vxor.u32 %v1172, 2147483648
    %v1174 = vmul.f32 %v1173, 1.442695
    %v1175 = vpow.pop %v1174
    %v1176 = vadd.f32 %v1175, 1.0
    %v1177 = vrcp.pop %v1176
    %v1178 = vmul.f32 %v1176, %v1177
    %v1179 = vsub.f32 1.0, %v1178
    %v1180 = vmul.f32 %v1177, %v1179
    %v1181 = vadd.f32 %v1177, %v1180
    %vm1182 = vweird.f32 %v1176
    %vm1183 = vweird.f32 %v1177
    %vm1184 = vmor %vm1182, %vm1183
    %v1185 = vsel %vm1184, %v1177, %v1181
    %v1186 = vand.u32 2147483647, %v1176
    %vm1187 = vcmp.eq.f32.partialorder %v1186, 8.507059e+37
    %v1188 = vand.u32 %v1176, 2147483648
    %v1189 = vor.u32 1.1754944e-38, %v1188
    %v1190 = vsel %vm1187, %v1189, %v1185
    %v1191 = vmul.f32 1.0, %v1190
    %v1192 = vxor.u32 %v1171, 2147483648
    %v1193 = vmul.f32 %v1192, 1.442695
    %v1194 = vpow.pop %v1193
    %v1195 = vadd.f32 %v1194, 1.0
    %v1196 = vrcp.pop %v1195
    %v1197 = vmul.f32 %v1195, %v1196
    %v1198 = vsub.f32 1.0, %v1197
    %v1199 = vmul.f32 %v1196, %v1198
    %v1200 = vadd.f32 %v1196, %v1199
    %vm1201 = vweird.f32 %v1195
    %vm1202 = vweird.f32 %v1196
    %vm1203 = vmor %vm1201, %vm1202
    %v1204 = vsel %vm1203, %v1196, %v1200
    %v1205 = vand.u32 2147483647, %v1195
    %vm1206 = vcmp.eq.f32.partialorder %v1205, 8.507059e+37
    %v1207 = vand.u32 %v1195, 2147483648
    %v1208 = vor.u32 1.1754944e-38, %v1207
    %v1209 = vsel %vm1206, %v1208, %v1204
    %v1210 = vmul.f32 1.0, %v1209
    %v1211 = vadd.f32 %v1169, %v425
    %v1212 = vmul.f32 %v1191, %v1211
    %v1213 = vadd.f32 %v1110, %v1212
    %v1214 = vtanh.pop %v1213
    %v1215 = vsub.f32 1.0, %v1210
    %v1216 = vmul.f32 %v1215, %v1214
    %v1217 = vmul.f32 %v1210, %v1106
    %v1218 = vadd.f32 %v1216, %v1217
    %1219 = vst [vmem:[#allocation11] sm:$0xff] %v1218
    // Predicated region
    $region38: #{tpu_custom_call.1} parent=1 // pred_check
      _
    $region39: #{tpu_custom_call.1} parent=1 // pred_check_branch
      %1221 = sbr.rel (0) target = $region41
    $region40: #{tpu_custom_call.1} parent=1 // pred_region
      %1223 = vsyncadd [#allocation7], 0
      %s1225 = sshll.u32 [#allocation11], 4
      %s1226 = int_to_ptr.vmem [resolvable:$true] %s1225
      %s1227 = sshll.u32 %s6, 4
      %s1228 = int_to_ptr.hbm [resolvable:$true] %s1227
      %1230 = dma.vmem_to_hbm [thread:$0]  %s1226, 128, %s1228, [#allocation7]
    $region41: #{tpu_custom_call.1} parent=1 // pred_fallthru
      _
    // Predicated region
    $region42: #{tpu_custom_call.1} parent=1 // pred_check
      _
    $region43: #{tpu_custom_call.1} parent=1 // pred_check_branch
      %1232 = sbr.rel (0) target = $region45
    $region44: #{tpu_custom_call.1} parent=1 // pred_region
      %1234 = dma.done [#allocation7], 128
    $region45: #{tpu_custom_call.1} parent=1 // pred_fallthru
      _
    %1235 = vsyncpa [#allocation6], 1
    %1236 = vsyncpa [#allocation9], 1
    %1237 = vsyncpa [#allocation7], 1

// kernel: tpu_custom_call.1
$region0: #{tpu_custom_call.1}
  #allocation0 [shape = 'u32[]', space=smem, size = 0x4, offset = 0x4, fixed_abs, tag = 'smem constant byte address 0x4 - core index']
  #allocation1 [shape = 'u32[72,128]{1,0:T(1,128)}', space=vmem, size = 0x9000, scoped, tag = 'internal scratch']
  #allocation2 [shape = 'f32[8,8,384]{2,1,0:T(8,128)}', space=vmem, size = 0x18000, scoped, tag = 'scratch operand']
  #allocation3 [shape = 's32[1]{0}', space=sflag, size = 0x4, scoped, tag = 'scoped memory for tpu_custom_call.1']
  #allocation4 [shape = 'u8[512]{0}', space=smem, size = 0x200, scoped, tag = 'prefetched SMEM operand 0']
  %s0 = inlined_call_operand.hbm [shape: s32[8], index: 0, kind: input, shape index: {}]
  %s1 = inlined_call_operand.hbm [shape: f32[8,8,8], index: 1, kind: input, shape index: {}]
  %s2 = inlined_call_operand.hbm [shape: f32[8,384], index: 2, kind: input, shape index: {}]
  %s3 = inlined_call_operand.hbm [shape: f32[128,384], index: 3, kind: input, shape index: {}]
  %s4 = inlined_call_operand.vmem [shape: f32[1,384], index: 4, kind: input, shape index: {}]
  %s5 = inlined_call_operand.vmem [shape: f32[1,128], index: 5, kind: input, shape index: {}]
  %s6 = inlined_call_operand.hbm [shape: f32[1,8,128], index: 6, kind: output, shape index: {}]
  %s7 = sld [smem:[#allocation0]]
  $region46: #{tpu_custom_call.1} parent=0
    _
  %s9 = ssub.s32 1, %s7
  %s10 = scalar_select 0, %s9, %s7
  %s12 = sshll.u32 %s0, 4
  %s13 = int_to_ptr.hbm [resolvable:$true] %s12
  %15 = dma.hbm_to_smem %s13, 16, [#allocation4], [#allocation3]
  %17 = dma.done [#allocation3], 16
  %18 = sfence
  $region1: #{tpu_custom_call.1} parent=0
    #allocation5 [shape = 'u8[32768]{0}', space=vmem, size = 0x8000, scoped, tag = 'input window, operand 1, single buffered']
    #allocation6 [shape = 's32[1]{0}', space=sflag, size = 0x4, scoped, tag = 'scoped memory for tpu_custom_call.1']
    #allocation7 [shape = 's32[1]{0}', space=sflag, size = 0x4, scoped, tag = 'scoped memory for tpu_custom_call.1']
    #allocation8 [shape = 'u8[12288]{0}', space=vmem, size = 0x3000, scoped, tag = 'input window, operand 2, single buffered']
    #allocation9 [shape = 's32[1]{0}', space=sflag, size = 0x4, scoped, tag = 'scoped memory for tpu_custom_call.1']
    #allocation10 [shape = 'u8[196608]{0}', space=vmem, size = 0x30000, scoped, tag = 'input window, operand 3, single buffered']
    #allocation11 [shape = 'u8[4096]{0}', space=vmem, size = 0x1000, scoped, tag = 'output window, operand 0, single buffered']
    %19 = vsyncpa [#allocation6], 0
    %20 = vsyncpa [#allocation9], 0
    %21 = vsyncpa [#allocation7], 0
    // Predicated region
    $region2: #{tpu_custom_call.1} parent=1 // pred_check
      _
    $region3: #{tpu_custom_call.1} parent=1 // pred_check_branch
      %23 = sbr.rel (0) target = $region5
    $region4: #{tpu_custom_call.1} parent=1 // pred_region
      %25 = vsyncadd [#allocation6], 0
      %s26 = sshll.u32 %s1, 4
      %s27 = int_to_ptr.hbm [resolvable:$true] %s26
      %s28 = sshll.u32 [#allocation5], 4
      %s29 = int_to_ptr.vmem [resolvable:$true] %s28
      %34 = dma.hbm_to_vmem [thread:$0]  %s27, 1024, %s29, [#allocation6], 128, 128, 8
    $region5: #{tpu_custom_call.1} parent=1 // pred_fallthru
      _
    // Predicated region
    $region6: #{tpu_custom_call.1} parent=1 // pred_check
      _
    $region7: #{tpu_custom_call.1} parent=1 // pred_check_branch
      %36 = sbr.rel (0) target = $region9
    $region8: #{tpu_custom_call.1} parent=1 // pred_region
      %38 = vsyncadd [#allocation9], 0
      %s40 = sshll.u32 %s2, 4
      %s41 = int_to_ptr.hbm [resolvable:$true] %s40
      %s42 = sshll.u32 [#allocation8], 4
      %s43 = int_to_ptr.vmem [resolvable:$true] %s42
      %45 = dma.hbm_to_vmem [thread:$0]  %s41, 384, %s43, [#allocation9]
    $region9: #{tpu_custom_call.1} parent=1 // pred_fallthru
      _
    // Predicated region
    $region10: #{tpu_custom_call.1} parent=1 // pred_check
      _
    $region11: #{tpu_custom_call.1} parent=1 // pred_check_branch
      %47 = sbr.rel (0) target = $region13
    $region12: #{tpu_custom_call.1} parent=1 // pred_region
      %49 = vsyncadd [#allocation9], 0
      %s50 = sshll.u32 %s3, 4
      %s51 = int_to_ptr.hbm [resolvable:$true] %s50
      %s52 = sshll.u32 [#allocation10], 4
      %s53 = int_to_ptr.vmem [resolvable:$true] %s52
      %58 = dma.hbm_to_vmem [thread:$0]  %s51, 6144, %s53, [#allocation9], 384, 384, 24
    $region13: #{tpu_custom_call.1} parent=1 // pred_fallthru
      _
    // Predicated region
    $region14: #{tpu_custom_call.1} parent=1 // pred_check
      _
    $region15: #{tpu_custom_call.1} parent=1 // pred_check_branch
      %60 = sbr.rel (0) target = $region17
    $region16: #{tpu_custom_call.1} parent=1 // pred_region
      _
    $region17: #{tpu_custom_call.1} parent=1 // pred_fallthru
      _
    // Predicated region
    $region18: #{tpu_custom_call.1} parent=1 // pred_check
      _
    $region19: #{tpu_custom_call.1} parent=1 // pred_check_branch
      %62 = sbr.rel (0) target = $region21
    $region20: #{tpu_custom_call.1} parent=1 // pred_region
      _
    $region21: #{tpu_custom_call.1} parent=1 // pred_fallthru
      _
    // Predicated region
    $region22: #{tpu_custom_call.1} parent=1 // pred_check
      _
    $region23: #{tpu_custom_call.1} parent=1 // pred_check_branch
      %64 = sbr.rel (0) target = $region25
    $region24: #{tpu_custom_call.1} parent=1 // pred_region
      %66 = dma.done [#allocation6], 1024
    $region25: #{tpu_custom_call.1} parent=1 // pred_fallthru
      _
    // Predicated region
    $region26: #{tpu_custom_call.1} parent=1 // pred_check
      _
    $region27: #{tpu_custom_call.1} parent=1 // pred_check_branch
      %68 = sbr.rel (0) target = $region29
    $region28: #{tpu_custom_call.1} parent=1 // pred_region
      %70 = dma.done [#allocation9], 384
    $region29: #{tpu_custom_call.1} parent=1 // pred_fallthru
      _
    // Predicated region
    $region30: #{tpu_custom_call.1} parent=1 // pred_check
      _
    $region31: #{tpu_custom_call.1} parent=1 // pred_check_branch
      %72 = sbr.rel (0) target = $region33
    $region32: #{tpu_custom_call.1} parent=1 // pred_region
      %74 = dma.done [#allocation9], 6144
    $region33: #{tpu_custom_call.1} parent=1 // pred_fallthru
      _
    %p75 = scmp.eq.s32.totalorder 0, 0
    // Predicated region
    $region34: #{tpu_custom_call.1} parent=1 // pred_check
      %p76 = pneg %p75
    $region35: #{tpu_custom_call.1} parent=1 // pred_check_branch
      %78 = sbr.rel (%p76) target = $region37
    $region36: #{tpu_custom_call.1} parent=1 // pred_region
      %79 = vst [vmem:[#allocation11] sm:$0xff] 0.0
    $region37: #{tpu_custom_call.1} parent=1 // pred_fallthru
      _
    %v80 = vld [vmem:[#allocation5] sm:$0xff]
    %v81 = vld [vmem:[#allocation5 + $0x8] sm:$0xff]
    %v82 = vld [vmem:[#allocation5 + $0x10] sm:$0xff]
    %v83 = vld [vmem:[#allocation5 + $0x18] sm:$0xff]
    %v84 = vld [vmem:[#allocation5 + $0x20] sm:$0xff]
    %v85 = vld [vmem:[#allocation5 + $0x28] sm:$0xff]
    %v86 = vld [vmem:[#allocation5 + $0x30] sm:$0xff]
    %v87 = vld [vmem:[#allocation5 + $0x38] sm:$0xff]
    %v88 = vld [vmem:[#allocation8] sm:$0xff]
    %v89 = vld [vmem:[#allocation8 + $0x8] sm:$0xff]
    %v90 = vld [vmem:[#allocation8 + $0x10] sm:$0xff]
    %v91 = vld [vmem:[%s4] sm:$0x7]
    %v93 = vperm.slane %v91, 0
    %v94 = vperm.slane %v91, 1
    %v95 = vperm.slane %v91, 2
    %vm99 = vcmask 64512
    %v101 = vsel %vm99, %v80, 0
    %v104 = vsel %vm99, %v81, 0
    %v107 = vsel %vm99, %v82, 0
    %v110 = vsel %vm99, %v83, 0
    %v113 = vsel %vm99, %v84, 0
    %v116 = vsel %vm99, %v85, 0
    %v119 = vsel %vm99, %v86, 0
    %v122 = vsel %vm99, %v87, 0
    %124 = vmatpush.msra.mxu0 0.0
    %125 = vmatpush.msra.mxu0 0.0
    %126 = vmatpush.msra.mxu0 0.0
    %127 = vmatpush.msra.mxu0 0.0
    %128 = vmatpush.msra.mxu0 0.0
    %129 = vmatpush.msra.mxu0 0.0
    %130 = vmatpush.msra.mxu0 0.0
    %131 = vmatpush.msra.mxu0 0.0
    %132 = vmatpush.msra.mxu0 0.0
    %133 = vmatpush.msra.mxu0 0.0
    %134 = vmatpush.msra.mxu0 0.0
    %135 = vmatpush.msra.mxu0 0.0
    %136 = vmatpush.msra.mxu0 0.0
    %137 = vmatpush.msra.mxu0 0.0
    %138 = vmatpush.msra.mxu0 0.0
    %139 = vmatpush.msra.mxu0 %v88
    %140 = vmatmul.f32.gmra.mxu0 %v101
    %v141 = vpop.f32.mrf.mxu0
    %v142 = vadd.f32 %v93, %v141
    %143 = vmatmul.f32.gmra.mxu0 %v104
    %v144 = vpop.f32.mrf.mxu0
    %v145 = vadd.f32 %v93, %v144
    %146 = vmatmul.f32.gmra.mxu0 %v107
    %v147 = vpop.f32.mrf.mxu0
    %v148 = vadd.f32 %v93, %v147
    %149 = vmatmul.f32.gmra.mxu0 %v110
    %v150 = vpop.f32.mrf.mxu0
    %v151 = vadd.f32 %v93, %v150
    %152 = vmatmul.f32.gmra.mxu0 %v113
    %v153 = vpop.f32.mrf.mxu0
    %v154 = vadd.f32 %v93, %v153
    %155 = vmatmul.f32.gmra.mxu0 %v116
    %v156 = vpop.f32.mrf.mxu0
    %v157 = vadd.f32 %v93, %v156
    %158 = vmatmul.f32.gmra.mxu0 %v119
    %v159 = vpop.f32.mrf.mxu0
    %v160 = vadd.f32 %v93, %v159
    %161 = vmatmul.f32.gmra.mxu0 %v122
    %v162 = vpop.f32.mrf.mxu0
    %v163 = vadd.f32 %v93, %v162
    %164 = vdwg.mxu0
    %165 = vmatpush.msra.mxu0 0.0
    %166 = vmatpush.msra.mxu0 0.0
    %167 = vmatpush.msra.mxu0 0.0
    %168 = vmatpush.msra.mxu0 0.0
    %169 = vmatpush.msra.mxu0 0.0
    %170 = vmatpush.msra.mxu0 0.0
    %171 = vmatpush.msra.mxu0 0.0
    %172 = vmatpush.msra.mxu0 0.0
    %173 = vmatpush.msra.mxu0 0.0
    %174 = vmatpush.msra.mxu0 0.0
    %175 = vmatpush.msra.mxu0 0.0
    %176 = vmatpush.msra.mxu0 0.0
    %177 = vmatpush.msra.mxu0 0.0
    %178 = vmatpush.msra.mxu0 0.0
    %179 = vmatpush.msra.mxu0 0.0
    %180 = vmatpush.msra.mxu0 %v89
    %181 = vmatmul.f32.gmra.mxu0 %v101
    %v182 = vpop.f32.mrf.mxu0
    %v183 = vadd.f32 %v94, %v182
    %184 = vmatmul.f32.gmra.mxu0 %v104
    %v185 = vpop.f32.mrf.mxu0
    %v186 = vadd.f32 %v94, %v185
    %187 = vmatmul.f32.gmra.mxu0 %v107
    %v188 = vpop.f32.mrf.mxu0
    %v189 = vadd.f32 %v94, %v188
    %190 = vmatmul.f32.gmra.mxu0 %v110
    %v191 = vpop.f32.mrf.mxu0
    %v192 = vadd.f32 %v94, %v191
    %193 = vmatmul.f32.gmra.mxu0 %v113
    %v194 = vpop.f32.mrf.mxu0
    %v195 = vadd.f32 %v94, %v194
    %196 = vmatmul.f32.gmra.mxu0 %v116
    %v197 = vpop.f32.mrf.mxu0
    %v198 = vadd.f32 %v94, %v197
    %199 = vmatmul.f32.gmra.mxu0 %v119
    %v200 = vpop.f32.mrf.mxu0
    %v201 = vadd.f32 %v94, %v200
    %202 = vmatmul.f32.gmra.mxu0 %v122
    %v203 = vpop.f32.mrf.mxu0
    %v204 = vadd.f32 %v94, %v203
    %205 = vdwg.mxu0
    %206 = vmatpush.msra.mxu0 0.0
    %207 = vmatpush.msra.mxu0 0.0
    %208 = vmatpush.msra.mxu0 0.0
    %209 = vmatpush.msra.mxu0 0.0
    %210 = vmatpush.msra.mxu0 0.0
    %211 = vmatpush.msra.mxu0 0.0
    %212 = vmatpush.msra.mxu0 0.0
    %213 = vmatpush.msra.mxu0 0.0
    %214 = vmatpush.msra.mxu0 0.0
    %215 = vmatpush.msra.mxu0 0.0
    %216 = vmatpush.msra.mxu0 0.0
    %217 = vmatpush.msra.mxu0 0.0
    %218 = vmatpush.msra.mxu0 0.0
    %219 = vmatpush.msra.mxu0 0.0
    %220 = vmatpush.msra.mxu0 0.0
    %221 = vmatpush.msra.mxu0 %v90
    %222 = vmatmul.f32.gmra.mxu0 %v101
    %v223 = vpop.f32.mrf.mxu0
    %v224 = vadd.f32 %v95, %v223
    %225 = vmatmul.f32.gmra.mxu0 %v104
    %v226 = vpop.f32.mrf.mxu0
    %v227 = vadd.f32 %v95, %v226
    %228 = vmatmul.f32.gmra.mxu0 %v107
    %v229 = vpop.f32.mrf.mxu0
    %v230 = vadd.f32 %v95, %v229
    %231 = vmatmul.f32.gmra.mxu0 %v110
    %v232 = vpop.f32.mrf.mxu0
    %v233 = vadd.f32 %v95, %v232
    %234 = vmatmul.f32.gmra.mxu0 %v113
    %v235 = vpop.f32.mrf.mxu0
    %v236 = vadd.f32 %v95, %v235
    %237 = vmatmul.f32.gmra.mxu0 %v116
    %v238 = vpop.f32.mrf.mxu0
    %v239 = vadd.f32 %v95, %v238
    %240 = vmatmul.f32.gmra.mxu0 %v119
    %v241 = vpop.f32.mrf.mxu0
    %v242 = vadd.f32 %v95, %v241
    %243 = vmatmul.f32.gmra.mxu0 %v122
    %v244 = vpop.f32.mrf.mxu0
    %v245 = vadd.f32 %v95, %v244
    %246 = vdwg.mxu0
    %247 = vst [vmem:[#allocation2] sm:$0xff] %v142
    %248 = vst [vmem:[#allocation2 + $0x8] sm:$0xff] %v183
    %249 = vst [vmem:[#allocation2 + $0x10] sm:$0xff] %v224
    %250 = vst [vmem:[#allocation2 + $0x18] sm:$0xff] %v145
    %251 = vst [vmem:[#allocation2 + $0x20] sm:$0xff] %v186
    %252 = vst [vmem:[#allocation2 + $0x28] sm:$0xff] %v227
    %253 = vst [vmem:[#allocation2 + $0x30] sm:$0xff] %v148
    %254 = vst [vmem:[#allocation2 + $0x38] sm:$0xff] %v189
    %255 = vst [vmem:[#allocation2 + $0x40] sm:$0xff] %v230
    %256 = vst [vmem:[#allocation2 + $0x48] sm:$0xff] %v151
    %257 = vst [vmem:[#allocation2 + $0x50] sm:$0xff] %v192
    %258 = vst [vmem:[#allocation2 + $0x58] sm:$0xff] %v233
    %259 = vst [vmem:[#allocation2 + $0x60] sm:$0xff] %v154
    %260 = vst [vmem:[#allocation2 + $0x68] sm:$0xff] %v195
    %261 = vst [vmem:[#allocation2 + $0x70] sm:$0xff] %v236
    %262 = vst [vmem:[#allocation2 + $0x78] sm:$0xff] %v157
    %263 = vst [vmem:[#allocation2 + $0x80] sm:$0xff] %v198
    %264 = vst [vmem:[#allocation2 + $0x88] sm:$0xff] %v239
    %265 = vst [vmem:[#allocation2 + $0x90] sm:$0xff] %v160
    %266 = vst [vmem:[#allocation2 + $0x98] sm:$0xff] %v201
    %267 = vst [vmem:[#allocation2 + $0xa0] sm:$0xff] %v242
    %268 = vst [vmem:[#allocation2 + $0xa8] sm:$0xff] %v163
    %269 = vst [vmem:[#allocation2 + $0xb0] sm:$0xff] %v204
    %270 = vst [vmem:[#allocation2 + $0xb8] sm:$0xff] %v245
    %v271 = vld [vmem:[#allocation10] sm:$0xff]
    %v272 = vld [vmem:[#allocation10 + $0x8] sm:$0xff]
    %v273 = vld [vmem:[#allocation10 + $0x10] sm:$0xff]
    %v274 = vld [vmem:[#allocation10 + $0x18] sm:$0xff]
    %v275 = vld [vmem:[#allocation10 + $0x20] sm:$0xff]
    %v276 = vld [vmem:[#allocation10 + $0x28] sm:$0xff]
    %v277 = vld [vmem:[#allocation10 + $0x30] sm:$0xff]
    %v278 = vld [vmem:[#allocation10 + $0x38] sm:$0xff]
    %v279 = vld [vmem:[#allocation10 + $0x40] sm:$0xff]
    %v280 = vld [vmem:[#allocation10 + $0x48] sm:$0xff]
    %v281 = vld [vmem:[#allocation10 + $0x50] sm:$0xff]
    %v282 = vld [vmem:[#allocation10 + $0x58] sm:$0xff]
    %v283 = vld [vmem:[#allocation10 + $0x60] sm:$0xff]
    %v284 = vld [vmem:[#allocation10 + $0x68] sm:$0xff]
    %v285 = vld [vmem:[#allocation10 + $0x70] sm:$0xff]
    %v286 = vld [vmem:[#allocation10 + $0x78] sm:$0xff]
    %v287 = vld [vmem:[#allocation10 + $0x80] sm:$0xff]
    %v288 = vld [vmem:[#allocation10 + $0x88] sm:$0xff]
    %v289 = vld [vmem:[#allocation10 + $0x90] sm:$0xff]
    %v290 = vld [vmem:[#allocation10 + $0x98] sm:$0xff]
    %v291 = vld [vmem:[#allocation10 + $0xa0] sm:$0xff]
    %v292 = vld [vmem:[#allocation10 + $0xa8] sm:$0xff]
    %v293 = vld [vmem:[#allocation10 + $0xb0] sm:$0xff]
    %v294 = vld [vmem:[#allocation10 + $0xb8] sm:$0xff]
    %v295 = vld [vmem:[#allocation10 + $0xc0] sm:$0xff]
    %v296 = vld [vmem:[#allocation10 + $0xc8] sm:$0xff]
    %v297 = vld [vmem:[#allocation10 + $0xd0] sm:$0xff]
    %v298 = vld [vmem:[#allocation10 + $0xd8] sm:$0xff]
    %v299 = vld [vmem:[#allocation10 + $0xe0] sm:$0xff]
    %v300 = vld [vmem:[#allocation10 + $0xe8] sm:$0xff]
    %v301 = vld [vmem:[#allocation10 + $0xf0] sm:$0xff]
    %v302 = vld [vmem:[#allocation10 + $0xf8] sm:$0xff]
    %v303 = vld [vmem:[#allocation10 + $0x100] sm:$0xff]
    %v304 = vld [vmem:[#allocation10 + $0x108] sm:$0xff]
    %v305 = vld [vmem:[#allocation10 + $0x110] sm:$0xff]
    %v306 = vld [vmem:[#allocation10 + $0x118] sm:$0xff]
    %v307 = vld [vmem:[#allocation10 + $0x120] sm:$0xff]
    %v308 = vld [vmem:[#allocation10 + $0x128] sm:$0xff]
    %v309 = vld [vmem:[#allocation10 + $0x130] sm:$0xff]
    %v310 = vld [vmem:[#allocation10 + $0x138] sm:$0xff]
    %v311 = vld [vmem:[#allocation10 + $0x140] sm:$0xff]
    %v312 = vld [vmem:[#allocation10 + $0x148] sm:$0xff]
    %v313 = vld [vmem:[#allocation10 + $0x150] sm:$0xff]
    %v314 = vld [vmem:[#allocation10 + $0x158] sm:$0xff]
    %v315 = vld [vmem:[#allocation10 + $0x160] sm:$0xff]
    %v316 = vld [vmem:[#allocation10 + $0x168] sm:$0xff]
    %v317 = vld [vmem:[#allocation10 + $0x170] sm:$0xff]
    %v318 = vld [vmem:[#allocation10 + $0x178] sm:$0xff]
    %v319 = vld [vmem:[%s5] sm:$0x1]
    %v320 = vld [vmem:[#allocation11] sm:$0xff]
    %v321 = vld [vmem:[#allocation2] sm:$0xff]
    %v322 = vld [vmem:[#allocation2 + $0x8] sm:$0xff]
    %v323 = vld [vmem:[#allocation2 + $0x10] sm:$0xff]
    %324 = vmatpush.msra.mxu0 %v316
    %325 = vmatpush.msra.mxu0 %v313
    %326 = vmatpush.msra.mxu0 %v310
    %327 = vmatpush.msra.mxu0 %v307
    %328 = vmatpush.msra.mxu0 %v304
    %329 = vmatpush.msra.mxu0 %v301
    %330 = vmatpush.msra.mxu0 %v298
    %331 = vmatpush.msra.mxu0 %v295
    %332 = vmatpush.msra.mxu0 %v292
    %333 = vmatpush.msra.mxu0 %v289
    %334 = vmatpush.msra.mxu0 %v286
    %335 = vmatpush.msra.mxu0 %v283
    %336 = vmatpush.msra.mxu0 %v280
    %337 = vmatpush.msra.mxu0 %v277
    %338 = vmatpush.msra.mxu0 %v274
    %339 = vmatpush.msra.mxu0 %v271
    %340 = vmatmul.f32.gmra.mxu0 %v320
    %v341 = vpop.f32.mrf.mxu0
    %v342 = vadd.f32 0.0, %v341
    %343 = vdwg.mxu0
    %344 = vmatpush.msra.mxu0 %v317
    %345 = vmatpush.msra.mxu0 %v314
    %346 = vmatpush.msra.mxu0 %v311
    %347 = vmatpush.msra.mxu0 %v308
    %348 = vmatpush.msra.mxu0 %v305
    %349 = vmatpush.msra.mxu0 %v302
    %350 = vmatpush.msra.mxu0 %v299
    %351 = vmatpush.msra.mxu0 %v296
    %352 = vmatpush.msra.mxu0 %v293
    %353 = vmatpush.msra.mxu0 %v290
    %354 = vmatpush.msra.mxu0 %v287
    %355 = vmatpush.msra.mxu0 %v284
    %356 = vmatpush.msra.mxu0 %v281
    %357 = vmatpush.msra.mxu0 %v278
    %358 = vmatpush.msra.mxu0 %v275
    %359 = vmatpush.msra.mxu0 %v272
    %360 = vmatmul.f32.gmra.mxu0 %v320
    %v361 = vpop.f32.mrf.mxu0
    %v362 = vadd.f32 0.0, %v361
    %363 = vdwg.mxu0
    %364 = vmatpush.msra.mxu0 %v318
    %365 = vmatpush.msra.mxu0 %v315
    %366 = vmatpush.msra.mxu0 %v312
    %367 = vmatpush.msra.mxu0 %v309
    %368 = vmatpush.msra.mxu0 %v306
    %369 = vmatpush.msra.mxu0 %v303
    %370 = vmatpush.msra.mxu0 %v300
    %371 = vmatpush.msra.mxu0 %v297
    %372 = vmatpush.msra.mxu0 %v294
    %373 = vmatpush.msra.mxu0 %v291
    %374 = vmatpush.msra.mxu0 %v288
    %375 = vmatpush.msra.mxu0 %v285
    %376 = vmatpush.msra.mxu0 %v282
    %377 = vmatpush.msra.mxu0 %v279
    %378 = vmatpush.msra.mxu0 %v276
    %379 = vmatpush.msra.mxu0 %v273
    %380 = vmatmul.f32.gmra.mxu0 %v320
    %v381 = vpop.f32.mrf.mxu0
    %v382 = vadd.f32 0.0, %v381
    %383 = vdwg.mxu0
    %v384 = vadd.f32 %v322, %v362
    %v385 = vadd.f32 %v321, %v342
    %v386 = vxor.u32 %v385, 2147483648
    %v387 = vmul.f32 %v386, 1.442695
    %v388 = vpow.pop %v387
    %v389 = vadd.f32 %v388, 1.0
    %v390 = vrcp.pop %v389
    %v391 = vmul.f32 %v389, %v390
    %v392 = vsub.f32 1.0, %v391
    %v393 = vmul.f32 %v390, %v392
    %v394 = vadd.f32 %v390, %v393
    %vm395 = vweird.f32 %v389
    %vm396 = vweird.f32 %v390
    %vm397 = vmor %vm395, %vm396
    %v398 = vsel %vm397, %v390, %v394
    %v399 = vand.u32 2147483647, %v389
    %vm400 = vcmp.eq.f32.partialorder %v399, 8.507059e+37
    %v401 = vand.u32 %v389, 2147483648
    %v402 = vor.u32 1.1754944e-38, %v401
    %v403 = vsel %vm400, %v402, %v398
    %v404 = vmul.f32 1.0, %v403
    %v405 = vxor.u32 %v384, 2147483648
    %v406 = vmul.f32 %v405, 1.442695
    %v407 = vpow.pop %v406
    %v408 = vadd.f32 %v407, 1.0
    %v409 = vrcp.pop %v408
    %v410 = vmul.f32 %v408, %v409
    %v411 = vsub.f32 1.0, %v410
    %v412 = vmul.f32 %v409, %v411
    %v413 = vadd.f32 %v409, %v412
    %vm414 = vweird.f32 %v408
    %vm415 = vweird.f32 %v409
    %vm416 = vmor %vm414, %vm415
    %v417 = vsel %vm416, %v409, %v413
    %v418 = vand.u32 2147483647, %v408
    %vm419 = vcmp.eq.f32.partialorder %v418, 8.507059e+37
    %v420 = vand.u32 %v408, 2147483648
    %v421 = vor.u32 1.1754944e-38, %v420
    %v422 = vsel %vm419, %v421, %v417
    %v423 = vmul.f32 1.0, %v422
    %v425 = vperm.slane %v319, 0
    %v427 = vadd.f32 %v382, %v425
    %v428 = vmul.f32 %v404, %v427
    %v429 = vadd.f32 %v323, %v428
    %v430 = vtanh.pop %v429
    %v431 = vsub.f32 1.0, %v423
    %v432 = vmul.f32 %v431, %v430
    %v433 = vmul.f32 %v423, %v320
    %v434 = vadd.f32 %v432, %v433
    %s435 = scalar_lea.vmem [#allocation2], 24
    %v436 = vld [vmem:[%s435] sm:$0xff]
    %v437 = vld [vmem:[%s435 + $0x8] sm:$0xff]
    %v438 = vld [vmem:[%s435 + $0x10] sm:$0xff]
    %439 = vmatpush.msra.mxu0 %v316
    %440 = vmatpush.msra.mxu0 %v313
    %441 = vmatpush.msra.mxu0 %v310
    %442 = vmatpush.msra.mxu0 %v307
    %443 = vmatpush.msra.mxu0 %v304
    %444 = vmatpush.msra.mxu0 %v301
    %445 = vmatpush.msra.mxu0 %v298
    %446 = vmatpush.msra.mxu0 %v295
    %447 = vmatpush.msra.mxu0 %v292
    %448 = vmatpush.msra.mxu0 %v289
    %449 = vmatpush.msra.mxu0 %v286
    %450 = vmatpush.msra.mxu0 %v283
    %451 = vmatpush.msra.mxu0 %v280
    %452 = vmatpush.msra.mxu0 %v277
    %453 = vmatpush.msra.mxu0 %v274
    %454 = vmatpush.msra.mxu0 %v271
    %455 = vmatmul.f32.gmra.mxu0 %v434
    %v456 = vpop.f32.mrf.mxu0
    %v457 = vadd.f32 0.0, %v456
    %458 = vdwg.mxu0
    %459 = vmatpush.msra.mxu0 %v317
    %460 = vmatpush.msra.mxu0 %v314
    %461 = vmatpush.msra.mxu0 %v311
    %462 = vmatpush.msra.mxu0 %v308
    %463 = vmatpush.msra.mxu0 %v305
    %464 = vmatpush.msra.mxu0 %v302
    %465 = vmatpush.msra.mxu0 %v299
    %466 = vmatpush.msra.mxu0 %v296
    %467 = vmatpush.msra.mxu0 %v293
    %468 = vmatpush.msra.mxu0 %v290
    %469 = vmatpush.msra.mxu0 %v287
    %470 = vmatpush.msra.mxu0 %v284
    %471 = vmatpush.msra.mxu0 %v281
    %472 = vmatpush.msra.mxu0 %v278
    %473 = vmatpush.msra.mxu0 %v275
    %474 = vmatpush.msra.mxu0 %v272
    %475 = vmatmul.f32.gmra.mxu0 %v434
    %v476 = vpop.f32.mrf.mxu0
    %v477 = vadd.f32 0.0, %v476
    %478 = vdwg.mxu0
    %479 = vmatpush.msra.mxu0 %v318
    %480 = vmatpush.msra.mxu0 %v315
    %481 = vmatpush.msra.mxu0 %v312
    %482 = vmatpush.msra.mxu0 %v309
    %483 = vmatpush.msra.mxu0 %v306
    %484 = vmatpush.msra.mxu0 %v303
    %485 = vmatpush.msra.mxu0 %v300
    %486 = vmatpush.msra.mxu0 %v297
    %487 = vmatpush.msra.mxu0 %v294
    %488 = vmatpush.msra.mxu0 %v291
    %489 = vmatpush.msra.mxu0 %v288
    %490 = vmatpush.msra.mxu0 %v285
    %491 = vmatpush.msra.mxu0 %v282
    %492 = vmatpush.msra.mxu0 %v279
    %493 = vmatpush.msra.mxu0 %v276
    %494 = vmatpush.msra.mxu0 %v273
    %495 = vmatmul.f32.gmra.mxu0 %v434
    %v496 = vpop.f32.mrf.mxu0
    %v497 = vadd.f32 0.0, %v496
    %498 = vdwg.mxu0
    %v499 = vadd.f32 %v437, %v477
    %v500 = vadd.f32 %v436, %v457
    %v501 = vxor.u32 %v500, 2147483648
    %v502 = vmul.f32 %v501, 1.442695
    %v503 = vpow.pop %v502
    %v504 = vadd.f32 %v503, 1.0
    %v505 = vrcp.pop %v504
    %v506 = vmul.f32 %v504, %v505
    %v507 = vsub.f32 1.0, %v506
    %v508 = vmul.f32 %v505, %v507
    %v509 = vadd.f32 %v505, %v508
    %vm510 = vweird.f32 %v504
    %vm511 = vweird.f32 %v505
    %vm512 = vmor %vm510, %vm511
    %v513 = vsel %vm512, %v505, %v509
    %v514 = vand.u32 2147483647, %v504
    %vm515 = vcmp.eq.f32.partialorder %v514, 8.507059e+37
    %v516 = vand.u32 %v504, 2147483648
    %v517 = vor.u32 1.1754944e-38, %v516
    %v518 = vsel %vm515, %v517, %v513
    %v519 = vmul.f32 1.0, %v518
    %v520 = vxor.u32 %v499, 2147483648
    %v521 = vmul.f32 %v520, 1.442695
    %v522 = vpow.pop %v521
    %v523 = vadd.f32 %v522, 1.0
    %v524 = vrcp.pop %v523
    %v525 = vmul.f32 %v523, %v524
    %v526 = vsub.f32 1.0, %v525
    %v527 = vmul.f32 %v524, %v526
    %v528 = vadd.f32 %v524, %v527
    %vm529 = vweird.f32 %v523
    %vm530 = vweird.f32 %v524
    %vm531 = vmor %vm529, %vm530
    %v532 = vsel %vm531, %v524, %v528
    %v533 = vand.u32 2147483647, %v523
    %vm534 = vcmp.eq.f32.partialorder %v533, 8.507059e+37
    %v535 = vand.u32 %v523, 2147483648
    %v536 = vor.u32 1.1754944e-38, %v535
    %v537 = vsel %vm534, %v536, %v532
    %v538 = vmul.f32 1.0, %v537
    %v539 = vadd.f32 %v497, %v425
    %v540 = vmul.f32 %v519, %v539
    %v541 = vadd.f32 %v438, %v540
    %v542 = vtanh.pop %v541
    %v543 = vsub.f32 1.0, %v538
    %v544 = vmul.f32 %v543, %v542
    %v545 = vmul.f32 %v538, %v434
    %v546 = vadd.f32 %v544, %v545
    %s547 = scalar_lea.vmem [#allocation2], 48
    %v548 = vld [vmem:[%s547] sm:$0xff]
    %v549 = vld [vmem:[%s547 + $0x8] sm:$0xff]
    %v550 = vld [vmem:[%s547 + $0x10] sm:$0xff]
    %551 = vmatpush.msra.mxu0 %v316
    %552 = vmatpush.msra.mxu0 %v313
    %553 = vmatpush.msra.mxu0 %v310
    %554 = vmatpush.msra.mxu0 %v307
    %555 = vmatpush.msra.mxu0 %v304
    %556 = vmatpush.msra.mxu0 %v301
    %557 = vmatpush.msra.mxu0 %v298
    %558 = vmatpush.msra.mxu0 %v295
    %559 = vmatpush.msra.mxu0 %v292
    %560 = vmatpush.msra.mxu0 %v289
    %561 = vmatpush.msra.mxu0 %v286
    %562 = vmatpush.msra.mxu0 %v283
    %563 = vmatpush.msra.mxu0 %v280
    %564 = vmatpush.msra.mxu0 %v277
    %565 = vmatpush.msra.mxu0 %v274
    %566 = vmatpush.msra.mxu0 %v271
    %567 = vmatmul.f32.gmra.mxu0 %v546
    %v568 = vpop.f32.mrf.mxu0
    %v569 = vadd.f32 0.0, %v568
    %570 = vdwg.mxu0
    %571 = vmatpush.msra.mxu0 %v317
    %572 = vmatpush.msra.mxu0 %v314
    %573 = vmatpush.msra.mxu0 %v311
    %574 = vmatpush.msra.mxu0 %v308
    %575 = vmatpush.msra.mxu0 %v305
    %576 = vmatpush.msra.mxu0 %v302
    %577 = vmatpush.msra.mxu0 %v299
    %578 = vmatpush.msra.mxu0 %v296
    %579 = vmatpush.msra.mxu0 %v293
    %580 = vmatpush.msra.mxu0 %v290
    %581 = vmatpush.msra.mxu0 %v287
    %582 = vmatpush.msra.mxu0 %v284
    %583 = vmatpush.msra.mxu0 %v281
    %584 = vmatpush.msra.mxu0 %v278
    %585 = vmatpush.msra.mxu0 %v275
    %586 = vmatpush.msra.mxu0 %v272
    %587 = vmatmul.f32.gmra.mxu0 %v546
    %v588 = vpop.f32.mrf.mxu0
    %v589 = vadd.f32 0.0, %v588
    %590 = vdwg.mxu0
    %591 = vmatpush.msra.mxu0 %v318
    %592 = vmatpush.msra.mxu0 %v315
    %593 = vmatpush.msra.mxu0 %v312
    %594 = vmatpush.msra.mxu0 %v309
    %595 = vmatpush.msra.mxu0 %v306
    %596 = vmatpush.msra.mxu0 %v303
    %597 = vmatpush.msra.mxu0 %v300
    %598 = vmatpush.msra.mxu0 %v297
    %599 = vmatpush.msra.mxu0 %v294
    %600 = vmatpush.msra.mxu0 %v291
    %601 = vmatpush.msra.mxu0 %v288
    %602 = vmatpush.msra.mxu0 %v285
    %603 = vmatpush.msra.mxu0 %v282
    %604 = vmatpush.msra.mxu0 %v279
    %605 = vmatpush.msra.mxu0 %v276
    %606 = vmatpush.msra.mxu0 %v273
    %607 = vmatmul.f32.gmra.mxu0 %v546
    %v608 = vpop.f32.mrf.mxu0
    %v609 = vadd.f32 0.0, %v608
    %610 = vdwg.mxu0
    %v611 = vadd.f32 %v549, %v589
    %v612 = vadd.f32 %v548, %v569
    %v613 = vxor.u32 %v612, 2147483648
    %v614 = vmul.f32 %v613, 1.442695
    %v615 = vpow.pop %v614
    %v616 = vadd.f32 %v615, 1.0
    %v617 = vrcp.pop %v616
    %v618 = vmul.f32 %v616, %v617
    %v619 = vsub.f32 1.0, %v618
    %v620 = vmul.f32 %v617, %v619
    %v621 = vadd.f32 %v617, %v620
    %vm622 = vweird.f32 %v616
    %vm623 = vweird.f32 %v617
    %vm624 = vmor %vm622, %vm623
    %v625 = vsel %vm624, %v617, %v621
    %v626 = vand.u32 2147483647, %v616
    %vm627 = vcmp.eq.f32.partialorder %v626, 8.507059e+37
    %v628 = vand.u32 %v616, 2147483648
    %v629 = vor.u32 1.1754944e-38, %v628
    %v630 = vsel %vm627, %v629, %v625
    %v631 = vmul.f32 1.0, %v630
    %v632 = vxor.u32 %v611, 2147483648
    %v633 = vmul.f32 %v632, 1.442695
    %v634 = vpow.pop %v633
    %v635 = vadd.f32 %v634, 1.0
    %v636 = vrcp.pop %v635
    %v637 = vmul.f32 %v635, %v636
    %v638 = vsub.f32 1.0, %v637
    %v639 = vmul.f32 %v636, %v638
    %v640 = vadd.f32 %v636, %v639
    %vm641 = vweird.f32 %v635
    %vm642 = vweird.f32 %v636
    %vm643 = vmor %vm641, %vm642
    %v644 = vsel %vm643, %v636, %v640
    %v645 = vand.u32 2147483647, %v635
    %vm646 = vcmp.eq.f32.partialorder %v645, 8.507059e+37
    %v647 = vand.u32 %v635, 2147483648
    %v648 = vor.u32 1.1754944e-38, %v647
    %v649 = vsel %vm646, %v648, %v644
    %v650 = vmul.f32 1.0, %v649
    %v651 = vadd.f32 %v609, %v425
    %v652 = vmul.f32 %v631, %v651
    %v653 = vadd.f32 %v550, %v652
    %v654 = vtanh.pop %v653
    %v655 = vsub.f32 1.0, %v650
    %v656 = vmul.f32 %v655, %v654
    %v657 = vmul.f32 %v650, %v546
    %v658 = vadd.f32 %v656, %v657
    %s659 = scalar_lea.vmem [#allocation2], 72
    %v660 = vld [vmem:[%s659] sm:$0xff]
    %v661 = vld [vmem:[%s659 + $0x8] sm:$0xff]
    %v662 = vld [vmem:[%s659 + $0x10] sm:$0xff]
    %663 = vmatpush.msra.mxu0 %v316
    %664 = vmatpush.msra.mxu0 %v313
    %665 = vmatpush.msra.mxu0 %v310
    %666 = vmatpush.msra.mxu0 %v307
    %667 = vmatpush.msra.mxu0 %v304
    %668 = vmatpush.msra.mxu0 %v301
    %669 = vmatpush.msra.mxu0 %v298
    %670 = vmatpush.msra.mxu0 %v295
    %671 = vmatpush.msra.mxu0 %v292
    %672 = vmatpush.msra.mxu0 %v289
    %673 = vmatpush.msra.mxu0 %v286
    %674 = vmatpush.msra.mxu0 %v283
    %675 = vmatpush.msra.mxu0 %v280
    %676 = vmatpush.msra.mxu0 %v277
    %677 = vmatpush.msra.mxu0 %v274
    %678 = vmatpush.msra.mxu0 %v271
    %679 = vmatmul.f32.gmra.mxu0 %v658
    %v680 = vpop.f32.mrf.mxu0
    %v681 = vadd.f32 0.0, %v680
    %682 = vdwg.mxu0
    %683 = vmatpush.msra.mxu0 %v317
    %684 = vmatpush.msra.mxu0 %v314
    %685 = vmatpush.msra.mxu0 %v311
    %686 = vmatpush.msra.mxu0 %v308
    %687 = vmatpush.msra.mxu0 %v305
    %688 = vmatpush.msra.mxu0 %v302
    %689 = vmatpush.msra.mxu0 %v299
    %690 = vmatpush.msra.mxu0 %v296
    %691 = vmatpush.msra.mxu0 %v293
    %692 = vmatpush.msra.mxu0 %v290
    %693 = vmatpush.msra.mxu0 %v287
    %694 = vmatpush.msra.mxu0 %v284
    %695 = vmatpush.msra.mxu0 %v281
    %696 = vmatpush.msra.mxu0 %v278
    %697 = vmatpush.msra.mxu0 %v275
    %698 = vmatpush.msra.mxu0 %v272
    %699 = vmatmul.f32.gmra.mxu0 %v658
    %v700 = vpop.f32.mrf.mxu0
    %v701 = vadd.f32 0.0, %v700
    %702 = vdwg.mxu0
    %703 = vmatpush.msra.mxu0 %v318
    %704 = vmatpush.msra.mxu0 %v315
    %705 = vmatpush.msra.mxu0 %v312
    %706 = vmatpush.msra.mxu0 %v309
    %707 = vmatpush.msra.mxu0 %v306
    %708 = vmatpush.msra.mxu0 %v303
    %709 = vmatpush.msra.mxu0 %v300
    %710 = vmatpush.msra.mxu0 %v297
    %711 = vmatpush.msra.mxu0 %v294
    %712 = vmatpush.msra.mxu0 %v291
    %713 = vmatpush.msra.mxu0 %v288
    %714 = vmatpush.msra.mxu0 %v285
    %715 = vmatpush.msra.mxu0 %v282
    %716 = vmatpush.msra.mxu0 %v279
    %717 = vmatpush.msra.mxu0 %v276
    %718 = vmatpush.msra.mxu0 %v273
    %719 = vmatmul.f32.gmra.mxu0 %v658
    %v720 = vpop.f32.mrf.mxu0
    %v721 = vadd.f32 0.0, %v720
    %722 = vdwg.mxu0
    %v723 = vadd.f32 %v661, %v701
    %v724 = vadd.f32 %v660, %v681
    %v725 = vxor.u32 %v724, 2147483648
    %v726 = vmul.f32 %v725, 1.442695
    %v727 = vpow.pop %v726
    %v728 = vadd.f32 %v727, 1.0
    %v729 = vrcp.pop %v728
    %v730 = vmul.f32 %v728, %v729
    %v731 = vsub.f32 1.0, %v730
    %v732 = vmul.f32 %v729, %v731
    %v733 = vadd.f32 %v729, %v732
    %vm734 = vweird.f32 %v728
    %vm735 = vweird.f32 %v729
    %vm736 = vmor %vm734, %vm735
    %v737 = vsel %vm736, %v729, %v733
    %v738 = vand.u32 2147483647, %v728
    %vm739 = vcmp.eq.f32.partialorder %v738, 8.507059e+37
    %v740 = vand.u32 %v728, 2147483648
    %v741 = vor.u32 1.1754944e-38, %v740
    %v742 = vsel %vm739, %v741, %v737
    %v743 = vmul.f32 1.0, %v742
    %v744 = vxor.u32 %v723, 2147483648
    %v745 = vmul.f32 %v744, 1.442695
    %v746 = vpow.pop %v745
    %v747 = vadd.f32 %v746, 1.0
    %v748 = vrcp.pop %v747
    %v749 = vmul.f32 %v747, %v748
    %v750 = vsub.f32 1.0, %v749
    %v751 = vmul.f32 %v748, %v750
    %v752 = vadd.f32 %v748, %v751
    %vm753 = vweird.f32 %v747
    %vm754 = vweird.f32 %v748
    %vm755 = vmor %vm753, %vm754
    %v756 = vsel %vm755, %v748, %v752
    %v757 = vand.u32 2147483647, %v747
    %vm758 = vcmp.eq.f32.partialorder %v757, 8.507059e+37
    %v759 = vand.u32 %v747, 2147483648
    %v760 = vor.u32 1.1754944e-38, %v759
    %v761 = vsel %vm758, %v760, %v756
    %v762 = vmul.f32 1.0, %v761
    %v763 = vadd.f32 %v721, %v425
    %v764 = vmul.f32 %v743, %v763
    %v765 = vadd.f32 %v662, %v764
    %v766 = vtanh.pop %v765
    %v767 = vsub.f32 1.0, %v762
    %v768 = vmul.f32 %v767, %v766
    %v769 = vmul.f32 %v762, %v658
    %v770 = vadd.f32 %v768, %v769
    %s771 = scalar_lea.vmem [#allocation2], 96
    %v772 = vld [vmem:[%s771] sm:$0xff]
    %v773 = vld [vmem:[%s771 + $0x8] sm:$0xff]
    %v774 = vld [vmem:[%s771 + $0x10] sm:$0xff]
    %775 = vmatpush.msra.mxu0 %v316
    %776 = vmatpush.msra.mxu0 %v313
    %777 = vmatpush.msra.mxu0 %v310
    %778 = vmatpush.msra.mxu0 %v307
    %779 = vmatpush.msra.mxu0 %v304
    %780 = vmatpush.msra.mxu0 %v301
    %781 = vmatpush.msra.mxu0 %v298
    %782 = vmatpush.msra.mxu0 %v295
    %783 = vmatpush.msra.mxu0 %v292
    %784 = vmatpush.msra.mxu0 %v289
    %785 = vmatpush.msra.mxu0 %v286
    %786 = vmatpush.msra.mxu0 %v283
    %787 = vmatpush.msra.mxu0 %v280
    %788 = vmatpush.msra.mxu0 %v277
    %789 = vmatpush.msra.mxu0 %v274
    %790 = vmatpush.msra.mxu0 %v271
    %791 = vmatmul.f32.gmra.mxu0 %v770
    %v792 = vpop.f32.mrf.mxu0
    %v793 = vadd.f32 0.0, %v792
    %794 = vdwg.mxu0
    %795 = vmatpush.msra.mxu0 %v317
    %796 = vmatpush.msra.mxu0 %v314
    %797 = vmatpush.msra.mxu0 %v311
    %798 = vmatpush.msra.mxu0 %v308
    %799 = vmatpush.msra.mxu0 %v305
    %800 = vmatpush.msra.mxu0 %v302
    %801 = vmatpush.msra.mxu0 %v299
    %802 = vmatpush.msra.mxu0 %v296
    %803 = vmatpush.msra.mxu0 %v293
    %804 = vmatpush.msra.mxu0 %v290
    %805 = vmatpush.msra.mxu0 %v287
    %806 = vmatpush.msra.mxu0 %v284
    %807 = vmatpush.msra.mxu0 %v281
    %808 = vmatpush.msra.mxu0 %v278
    %809 = vmatpush.msra.mxu0 %v275
    %810 = vmatpush.msra.mxu0 %v272
    %811 = vmatmul.f32.gmra.mxu0 %v770
    %v812 = vpop.f32.mrf.mxu0
    %v813 = vadd.f32 0.0, %v812
    %814 = vdwg.mxu0
    %815 = vmatpush.msra.mxu0 %v318
    %816 = vmatpush.msra.mxu0 %v315
    %817 = vmatpush.msra.mxu0 %v312
    %818 = vmatpush.msra.mxu0 %v309
    %819 = vmatpush.msra.mxu0 %v306
    %820 = vmatpush.msra.mxu0 %v303
    %821 = vmatpush.msra.mxu0 %v300
    %822 = vmatpush.msra.mxu0 %v297
    %823 = vmatpush.msra.mxu0 %v294
    %824 = vmatpush.msra.mxu0 %v291
    %825 = vmatpush.msra.mxu0 %v288
    %826 = vmatpush.msra.mxu0 %v285
    %827 = vmatpush.msra.mxu0 %v282
    %828 = vmatpush.msra.mxu0 %v279
    %829 = vmatpush.msra.mxu0 %v276
    %830 = vmatpush.msra.mxu0 %v273
    %831 = vmatmul.f32.gmra.mxu0 %v770
    %v832 = vpop.f32.mrf.mxu0
    %v833 = vadd.f32 0.0, %v832
    %834 = vdwg.mxu0
    %v835 = vadd.f32 %v773, %v813
    %v836 = vadd.f32 %v772, %v793
    %v837 = vxor.u32 %v836, 2147483648
    %v838 = vmul.f32 %v837, 1.442695
    %v839 = vpow.pop %v838
    %v840 = vadd.f32 %v839, 1.0
    %v841 = vrcp.pop %v840
    %v842 = vmul.f32 %v840, %v841
    %v843 = vsub.f32 1.0, %v842
    %v844 = vmul.f32 %v841, %v843
    %v845 = vadd.f32 %v841, %v844
    %vm846 = vweird.f32 %v840
    %vm847 = vweird.f32 %v841
    %vm848 = vmor %vm846, %vm847
    %v849 = vsel %vm848, %v841, %v845
    %v850 = vand.u32 2147483647, %v840
    %vm851 = vcmp.eq.f32.partialorder %v850, 8.507059e+37
    %v852 = vand.u32 %v840, 2147483648
    %v853 = vor.u32 1.1754944e-38, %v852
    %v854 = vsel %vm851, %v853, %v849
    %v855 = vmul.f32 1.0, %v854
    %v856 = vxor.u32 %v835, 2147483648
    %v857 = vmul.f32 %v856, 1.442695
    %v858 = vpow.pop %v857
    %v859 = vadd.f32 %v858, 1.0
    %v860 = vrcp.pop %v859
    %v861 = vmul.f32 %v859, %v860
    %v862 = vsub.f32 1.0, %v861
    %v863 = vmul.f32 %v860, %v862
    %v864 = vadd.f32 %v860, %v863
    %vm865 = vweird.f32 %v859
    %vm866 = vweird.f32 %v860
    %vm867 = vmor %vm865, %vm866
    %v868 = vsel %vm867, %v860, %v864
    %v869 = vand.u32 2147483647, %v859
    %vm870 = vcmp.eq.f32.partialorder %v869, 8.507059e+37
    %v871 = vand.u32 %v859, 2147483648
    %v872 = vor.u32 1.1754944e-38, %v871
    %v873 = vsel %vm870, %v872, %v868
    %v874 = vmul.f32 1.0, %v873
    %v875 = vadd.f32 %v833, %v425
    %v876 = vmul.f32 %v855, %v875
    %v877 = vadd.f32 %v774, %v876
    %v878 = vtanh.pop %v877
    %v879 = vsub.f32 1.0, %v874
    %v880 = vmul.f32 %v879, %v878
    %v881 = vmul.f32 %v874, %v770
    %v882 = vadd.f32 %v880, %v881
    %s883 = scalar_lea.vmem [#allocation2], 120
    %v884 = vld [vmem:[%s883] sm:$0xff]
    %v885 = vld [vmem:[%s883 + $0x8] sm:$0xff]
    %v886 = vld [vmem:[%s883 + $0x10] sm:$0xff]
    %887 = vmatpush.msra.mxu0 %v316
    %888 = vmatpush.msra.mxu0 %v313
    %889 = vmatpush.msra.mxu0 %v310
    %890 = vmatpush.msra.mxu0 %v307
    %891 = vmatpush.msra.mxu0 %v304
    %892 = vmatpush.msra.mxu0 %v301
    %893 = vmatpush.msra.mxu0 %v298
    %894 = vmatpush.msra.mxu0 %v295
    %895 = vmatpush.msra.mxu0 %v292
    %896 = vmatpush.msra.mxu0 %v289
    %897 = vmatpush.msra.mxu0 %v286
    %898 = vmatpush.msra.mxu0 %v283
    %899 = vmatpush.msra.mxu0 %v280
    %900 = vmatpush.msra.mxu0 %v277
    %901 = vmatpush.msra.mxu0 %v274
    %902 = vmatpush.msra.mxu0 %v271
    %903 = vmatmul.f32.gmra.mxu0 %v882
    %v904 = vpop.f32.mrf.mxu0
    %v905 = vadd.f32 0.0, %v904
    %906 = vdwg.mxu0
    %907 = vmatpush.msra.mxu0 %v317
    %908 = vmatpush.msra.mxu0 %v314
    %909 = vmatpush.msra.mxu0 %v311
    %910 = vmatpush.msra.mxu0 %v308
    %911 = vmatpush.msra.mxu0 %v305
    %912 = vmatpush.msra.mxu0 %v302
    %913 = vmatpush.msra.mxu0 %v299
    %914 = vmatpush.msra.mxu0 %v296
    %915 = vmatpush.msra.mxu0 %v293
    %916 = vmatpush.msra.mxu0 %v290
    %917 = vmatpush.msra.mxu0 %v287
    %918 = vmatpush.msra.mxu0 %v284
    %919 = vmatpush.msra.mxu0 %v281
    %920 = vmatpush.msra.mxu0 %v278
    %921 = vmatpush.msra.mxu0 %v275
    %922 = vmatpush.msra.mxu0 %v272
    %923 = vmatmul.f32.gmra.mxu0 %v882
    %v924 = vpop.f32.mrf.mxu0
    %v925 = vadd.f32 0.0, %v924
    %926 = vdwg.mxu0
    %927 = vmatpush.msra.mxu0 %v318
    %928 = vmatpush.msra.mxu0 %v315
    %929 = vmatpush.msra.mxu0 %v312
    %930 = vmatpush.msra.mxu0 %v309
    %931 = vmatpush.msra.mxu0 %v306
    %932 = vmatpush.msra.mxu0 %v303
    %933 = vmatpush.msra.mxu0 %v300
    %934 = vmatpush.msra.mxu0 %v297
    %935 = vmatpush.msra.mxu0 %v294
    %936 = vmatpush.msra.mxu0 %v291
    %937 = vmatpush.msra.mxu0 %v288
    %938 = vmatpush.msra.mxu0 %v285
    %939 = vmatpush.msra.mxu0 %v282
    %940 = vmatpush.msra.mxu0 %v279
    %941 = vmatpush.msra.mxu0 %v276
    %942 = vmatpush.msra.mxu0 %v273
    %943 = vmatmul.f32.gmra.mxu0 %v882
    %v944 = vpop.f32.mrf.mxu0
    %v945 = vadd.f32 0.0, %v944
    %946 = vdwg.mxu0
    %v947 = vadd.f32 %v885, %v925
    %v948 = vadd.f32 %v884, %v905
    %v949 = vxor.u32 %v948, 2147483648
    %v950 = vmul.f32 %v949, 1.442695
    %v951 = vpow.pop %v950
    %v952 = vadd.f32 %v951, 1.0
    %v953 = vrcp.pop %v952
    %v954 = vmul.f32 %v952, %v953
    %v955 = vsub.f32 1.0, %v954
    %v956 = vmul.f32 %v953, %v955
    %v957 = vadd.f32 %v953, %v956
    %vm958 = vweird.f32 %v952
    %vm959 = vweird.f32 %v953
    %vm960 = vmor %vm958, %vm959
    %v961 = vsel %vm960, %v953, %v957
    %v962 = vand.u32 2147483647, %v952
    %vm963 = vcmp.eq.f32.partialorder %v962, 8.507059e+37
    %v964 = vand.u32 %v952, 2147483648
    %v965 = vor.u32 1.1754944e-38, %v964
    %v966 = vsel %vm963, %v965, %v961
    %v967 = vmul.f32 1.0, %v966
    %v968 = vxor.u32 %v947, 2147483648
    %v969 = vmul.f32 %v968, 1.442695
    %v970 = vpow.pop %v969
    %v971 = vadd.f32 %v970, 1.0
    %v972 = vrcp.pop %v971
    %v973 = vmul.f32 %v971, %v972
    %v974 = vsub.f32 1.0, %v973
    %v975 = vmul.f32 %v972, %v974
    %v976 = vadd.f32 %v972, %v975
    %vm977 = vweird.f32 %v971
    %vm978 = vweird.f32 %v972
    %vm979 = vmor %vm977, %vm978
    %v980 = vsel %vm979, %v972, %v976
    %v981 = vand.u32 2147483647, %v971
    %vm982 = vcmp.eq.f32.partialorder %v981, 8.507059e+37
    %v983 = vand.u32 %v971, 2147483648
    %v984 = vor.u32 1.1754944e-38, %v983
    %v985 = vsel %vm982, %v984, %v980
    %v986 = vmul.f32 1.0, %v985
    %v987 = vadd.f32 %v945, %v425
    %v988 = vmul.f32 %v967, %v987
    %v989 = vadd.f32 %v886, %v988
    %v990 = vtanh.pop %v989
    %v991 = vsub.f32 1.0, %v986
    %v992 = vmul.f32 %v991, %v990
    %v993 = vmul.f32 %v986, %v882
    %v994 = vadd.f32 %v992, %v993
    %s995 = scalar_lea.vmem [#allocation2], 144
    %v996 = vld [vmem:[%s995] sm:$0xff]
    %v997 = vld [vmem:[%s995 + $0x8] sm:$0xff]
    %v998 = vld [vmem:[%s995 + $0x10] sm:$0xff]
    %999 = vmatpush.msra.mxu0 %v316
    %1000 = vmatpush.msra.mxu0 %v313
    %1001 = vmatpush.msra.mxu0 %v310
    %1002 = vmatpush.msra.mxu0 %v307
    %1003 = vmatpush.msra.mxu0 %v304
    %1004 = vmatpush.msra.mxu0 %v301
    %1005 = vmatpush.msra.mxu0 %v298
    %1006 = vmatpush.msra.mxu0 %v295
    %1007 = vmatpush.msra.mxu0 %v292
    %1008 = vmatpush.msra.mxu0 %v289
    %1009 = vmatpush.msra.mxu0 %v286
    %1010 = vmatpush.msra.mxu0 %v283
    %1011 = vmatpush.msra.mxu0 %v280
    %1012 = vmatpush.msra.mxu0 %v277
    %1013 = vmatpush.msra.mxu0 %v274
    %1014 = vmatpush.msra.mxu0 %v271
    %1015 = vmatmul.f32.gmra.mxu0 %v994
    %v1016 = vpop.f32.mrf.mxu0
    %v1017 = vadd.f32 0.0, %v1016
    %1018 = vdwg.mxu0
    %1019 = vmatpush.msra.mxu0 %v317
    %1020 = vmatpush.msra.mxu0 %v314
    %1021 = vmatpush.msra.mxu0 %v311
    %1022 = vmatpush.msra.mxu0 %v308
    %1023 = vmatpush.msra.mxu0 %v305
    %1024 = vmatpush.msra.mxu0 %v302
    %1025 = vmatpush.msra.mxu0 %v299
    %1026 = vmatpush.msra.mxu0 %v296
    %1027 = vmatpush.msra.mxu0 %v293
    %1028 = vmatpush.msra.mxu0 %v290
    %1029 = vmatpush.msra.mxu0 %v287
    %1030 = vmatpush.msra.mxu0 %v284
    %1031 = vmatpush.msra.mxu0 %v281
    %1032 = vmatpush.msra.mxu0 %v278
    %1033 = vmatpush.msra.mxu0 %v275
    %1034 = vmatpush.msra.mxu0 %v272
    %1035 = vmatmul.f32.gmra.mxu0 %v994
    %v1036 = vpop.f32.mrf.mxu0
    %v1037 = vadd.f32 0.0, %v1036
    %1038 = vdwg.mxu0
    %1039 = vmatpush.msra.mxu0 %v318
    %1040 = vmatpush.msra.mxu0 %v315
    %1041 = vmatpush.msra.mxu0 %v312
    %1042 = vmatpush.msra.mxu0 %v309
    %1043 = vmatpush.msra.mxu0 %v306
    %1044 = vmatpush.msra.mxu0 %v303
    %1045 = vmatpush.msra.mxu0 %v300
    %1046 = vmatpush.msra.mxu0 %v297
    %1047 = vmatpush.msra.mxu0 %v294
    %1048 = vmatpush.msra.mxu0 %v291
    %1049 = vmatpush.msra.mxu0 %v288
    %1050 = vmatpush.msra.mxu0 %v285
    %1051 = vmatpush.msra.mxu0 %v282
    %1052 = vmatpush.msra.mxu0 %v279
    %1053 = vmatpush.msra.mxu0 %v276
    %1054 = vmatpush.msra.mxu0 %v273
    %1055 = vmatmul.f32.gmra.mxu0 %v994
    %v1056 = vpop.f32.mrf.mxu0
    %v1057 = vadd.f32 0.0, %v1056
    %1058 = vdwg.mxu0
    %v1059 = vadd.f32 %v997, %v1037
    %v1060 = vadd.f32 %v996, %v1017
    %v1061 = vxor.u32 %v1060, 2147483648
    %v1062 = vmul.f32 %v1061, 1.442695
    %v1063 = vpow.pop %v1062
    %v1064 = vadd.f32 %v1063, 1.0
    %v1065 = vrcp.pop %v1064
    %v1066 = vmul.f32 %v1064, %v1065
    %v1067 = vsub.f32 1.0, %v1066
    %v1068 = vmul.f32 %v1065, %v1067
    %v1069 = vadd.f32 %v1065, %v1068
    %vm1070 = vweird.f32 %v1064
    %vm1071 = vweird.f32 %v1065
    %vm1072 = vmor %vm1070, %vm1071
    %v1073 = vsel %vm1072, %v1065, %v1069
    %v1074 = vand.u32 2147483647, %v1064
    %vm1075 = vcmp.eq.f32.partialorder %v1074, 8.507059e+37
    %v1076 = vand.u32 %v1064, 2147483648
    %v1077 = vor.u32 1.1754944e-38, %v1076
    %v1078 = vsel %vm1075, %v1077, %v1073
    %v1079 = vmul.f32 1.0, %v1078
    %v1080 = vxor.u32 %v1059, 2147483648
    %v1081 = vmul.f32 %v1080, 1.442695
    %v1082 = vpow.pop %v1081
    %v1083 = vadd.f32 %v1082, 1.0
    %v1084 = vrcp.pop %v1083
    %v1085 = vmul.f32 %v1083, %v1084
    %v1086 = vsub.f32 1.0, %v1085
    %v1087 = vmul.f32 %v1084, %v1086
    %v1088 = vadd.f32 %v1084, %v1087
    %vm1089 = vweird.f32 %v1083
    %vm1090 = vweird.f32 %v1084
    %vm1091 = vmor %vm1089, %vm1090
    %v1092 = vsel %vm1091, %v1084, %v1088
    %v1093 = vand.u32 2147483647, %v1083
    %vm1094 = vcmp.eq.f32.partialorder %v1093, 8.507059e+37
    %v1095 = vand.u32 %v1083, 2147483648
    %v1096 = vor.u32 1.1754944e-38, %v1095
    %v1097 = vsel %vm1094, %v1096, %v1092
    %v1098 = vmul.f32 1.0, %v1097
    %v1099 = vadd.f32 %v1057, %v425
    %v1100 = vmul.f32 %v1079, %v1099
    %v1101 = vadd.f32 %v998, %v1100
    %v1102 = vtanh.pop %v1101
    %v1103 = vsub.f32 1.0, %v1098
    %v1104 = vmul.f32 %v1103, %v1102
    %v1105 = vmul.f32 %v1098, %v994
    %v1106 = vadd.f32 %v1104, %v1105
    %s1107 = scalar_lea.vmem [#allocation2], 168
    %v1108 = vld [vmem:[%s1107] sm:$0xff]
    %v1109 = vld [vmem:[%s1107 + $0x8] sm:$0xff]
    %v1110 = vld [vmem:[%s1107 + $0x10] sm:$0xff]
    %1111 = vmatpush.msra.mxu0 %v316
    %1112 = vmatpush.msra.mxu0 %v313
    %1113 = vmatpush.msra.mxu0 %v310
    %1114 = vmatpush.msra.mxu0 %v307
    %1115 = vmatpush.msra.mxu0 %v304
    %1116 = vmatpush.msra.mxu0 %v301
    %1117 = vmatpush.msra.mxu0 %v298
    %1118 = vmatpush.msra.mxu0 %v295
    %1119 = vmatpush.msra.mxu0 %v292
    %1120 = vmatpush.msra.mxu0 %v289
    %1121 = vmatpush.msra.mxu0 %v286
    %1122 = vmatpush.msra.mxu0 %v283
    %1123 = vmatpush.msra.mxu0 %v280
    %1124 = vmatpush.msra.mxu0 %v277
    %1125 = vmatpush.msra.mxu0 %v274
    %1126 = vmatpush.msra.mxu0 %v271
    %1127 = vmatmul.f32.gmra.mxu0 %v1106
    %v1128 = vpop.f32.mrf.mxu0
    %v1129 = vadd.f32 0.0, %v1128
    %1130 = vdwg.mxu0
    %1131 = vmatpush.msra.mxu0 %v317
    %1132 = vmatpush.msra.mxu0 %v314
    %1133 = vmatpush.msra.mxu0 %v311
    %1134 = vmatpush.msra.mxu0 %v308
    %1135 = vmatpush.msra.mxu0 %v305
    %1136 = vmatpush.msra.mxu0 %v302
    %1137 = vmatpush.msra.mxu0 %v299
    %1138 = vmatpush.msra.mxu0 %v296
    %1139 = vmatpush.msra.mxu0 %v293
    %1140 = vmatpush.msra.mxu0 %v290
    %1141 = vmatpush.msra.mxu0 %v287
    %1142 = vmatpush.msra.mxu0 %v284
    %1143 = vmatpush.msra.mxu0 %v281
    %1144 = vmatpush.msra.mxu0 %v278
    %1145 = vmatpush.msra.mxu0 %v275
    %1146 = vmatpush.msra.mxu0 %v272
    %1147 = vmatmul.f32.gmra.mxu0 %v1106
    %v1148 = vpop.f32.mrf.mxu0
    %v1149 = vadd.f32 0.0, %v1148
    %1150 = vdwg.mxu0
    %1151 = vmatpush.msra.mxu0 %v318
    %1152 = vmatpush.msra.mxu0 %v315
    %1153 = vmatpush.msra.mxu0 %v312
    %1154 = vmatpush.msra.mxu0 %v309
    %1155 = vmatpush.msra.mxu0 %v306
    %1156 = vmatpush.msra.mxu0 %v303
    %1157 = vmatpush.msra.mxu0 %v300
    %1158 = vmatpush.msra.mxu0 %v297
    %1159 = vmatpush.msra.mxu0 %v294
    %1160 = vmatpush.msra.mxu0 %v291
    %1161 = vmatpush.msra.mxu0 %v288
    %1162 = vmatpush.msra.mxu0 %v285
    %1163 = vmatpush.msra.mxu0 %v282
    %1164 = vmatpush.msra.mxu0 %v279
    %1165 = vmatpush.msra.mxu0 %v276
    %1166 = vmatpush.msra.mxu0 %v273
    %1167 = vmatmul.f32.gmra.mxu0 %v1106
    %v1168 = vpop.f32.mrf.mxu0
    %v1169 = vadd.f32 0.0, %v1168
    %1170 = vdwg.mxu0
    %v1171 = vadd.f32 %v1109, %v1149
    %v1172 = vadd.f32 %v1108, %v1129
    %v1173 = vxor.u32 %v1172, 2147483648
    %v1174 = vmul.f32 %v1173, 1.442695
    %v1175 = vpow.pop %v1174
    %v1176 = vadd.f32 %v1175, 1.0
    %v1177 = vrcp.pop %v1176
    %v1178 = vmul.f32 %v1176, %v1177
    %v1179 = vsub.f32 1.0, %v1178
    %v1180 = vmul.f32 %v1177, %v1179
    %v1181 = vadd.f32 %v1177, %v1180
    %vm1182 = vweird.f32 %v1176
    %vm1183 = vweird.f32 %v1177
    %vm1184 = vmor %vm1182, %vm1183
    %v1185 = vsel %vm1184, %v1177, %v1181
    %v1186 = vand.u32 2147483647, %v1176
    %vm1187 = vcmp.eq.f32.partialorder %v1186, 8.507059e+37
    %v1188 = vand.u32 %v1176, 2147483648
    %v1189 = vor.u32 1.1754944e-38, %v1188
    %v1190 = vsel %vm1187, %v1189, %v1185
    %v1191 = vmul.f32 1.0, %v1190
    %v1192 = vxor.u32 %v1171, 2147483648
    %v1193 = vmul.f32 %v1192, 1.442695
    %v1194 = vpow.pop %v1193
    %v1195 = vadd.f32 %v1194, 1.0
    %v1196 = vrcp.pop %v1195
    %v1197 = vmul.f32 %v1195, %v1196
    %v1198 = vsub.f32 1.0, %v1197
    %v1199 = vmul.f32 %v1196, %v1198
    %v1200 = vadd.f32 %v1196, %v1199
    %vm1201 = vweird.f32 %v1195
    %vm1202 = vweird.f32 %v1196
    %vm1203 = vmor %vm1201, %vm1202
    %v1204 = vsel %vm1203, %v1196, %v1200
    %v1205 = vand.u32 2147483647, %v1195
    %vm1206 = vcmp.eq.f32.partialorder %v1205, 8.507059e+37
    %v1207 = vand.u32 %v1195, 2147483648
    %v1208 = vor.u32 1.1754944e-38, %v1207
    %v1209 = vsel %vm1206, %v1208, %v1204
    %v1210 = vmul.f32 1.0, %v1209
    %v1211 = vadd.f32 %v1169, %v425
    %v1212 = vmul.f32 %v1191, %v1211
    %v1213 = vadd.f32 %v1110, %v1212
    %v1214 = vtanh.pop %v1213
    %v1215 = vsub.f32 1.0, %v1210
    %v1216 = vmul.f32 %v1215, %v1214
    %v1217 = vmul.f32 %v1210, %v1106
    %v1218 = vadd.f32 %v1216, %v1217
    %1219 = vst [vmem:[#allocation11] sm:$0xff] %v1218
    // Predicated region
    $region38: #{tpu_custom_call.1} parent=1 // pred_check
      _
    $region39: #{tpu_custom_call.1} parent=1 // pred_check_branch
      %1221 = sbr.rel (0) target = $region41
    $region40: #{tpu_custom_call.1} parent=1 // pred_region
      %1223 = vsyncadd [#allocation7], 0
      %s1225 = sshll.u32 [#allocation11], 4
      %s1226 = int_to_ptr.vmem [resolvable:$true] %s1225
      %s1227 = sshll.u32 %s6, 4
      %s1228 = int_to_ptr.hbm [resolvable:$true] %s1227
      %1230 = dma.vmem_to_hbm [thread:$0]  %s1226, 128, %s1228, [#allocation7]
    $region41: #{tpu_custom_call.1} parent=1 // pred_fallthru
      _
    // Predicated region
    $region42: #{tpu_custom_call.1} parent=1 // pred_check
      _
    $region43: #{tpu_custom_call.1} parent=1 // pred_check_branch
      %1232 = sbr.rel (0) target = $region45
    $region44: #{tpu_custom_call.1} parent=1 // pred_region
      %1234 = dma.done [#allocation7], 128
    $region45: #{tpu_custom_call.1} parent=1 // pred_fallthru
      _
    %1235 = vsyncpa [#allocation6], 1
    %1236 = vsyncpa [#allocation9], 1
    %1237 = vsyncpa [#allocation7], 1

</llo_original>
